<compile_context>
chip_gen: v7x
topology: tpu7x:2x2x1
jax: 0.10.0
libtpu: 0.0.40
codegen_flags: <defaults>
</compile_context>

<pallas_src>
import jax
import jax.numpy as jnp
from jax import lax
from jax.experimental import pallas as pl
from jax.experimental.pallas import tpu as pltpu

BN_EPS = 1e-5
LP = 8  # left W-pad of the conv scratch -> sublane-aligned interior store


def _conv3x3(apad_ref, wmat, bt, h, w, cin, col_off):
    """3x3 / stride-1 conv reading a zero-haloed activation scratch (VMEM ref).

    Small Cin (< 128): fold the 9 taps into the MXU contraction dim -> one
    (bt*h*w, 9*Cin) @ (9*Cin, Cout) matmul; tap slices are cast to bf16 before
    the concat so the im2col transient is bf16.
    Large Cin (>= 128): 9 accumulating K=Cin matmuls into an f32 accumulator,
    skipping the im2col buffer (K=Cin already saturates the MXU contraction).
    """
    m = bt * h * w
    cout = wmat.shape[-1]
    if cin < 128:
        cols = [apad_ref[:, dy:dy + h, col_off + dx:col_off + dx + w, :]
                .astype(jnp.bfloat16)
                for dy in range(3) for dx in range(3)]
        patches = jnp.concatenate(cols, axis=-1).reshape(m, 9 * cin)
        return jnp.dot(patches, wmat, preferred_element_type=jnp.float32)
    acc = jnp.zeros((m, cout), jnp.float32)
    for t, (dy, dx) in enumerate((dy, dx) for dy in range(3) for dx in range(3)):
        tap = (apad_ref[:, dy:dy + h, col_off + dx:col_off + dx + w, :]
               .astype(jnp.bfloat16).reshape(m, cin))
        acc = acc + jnp.dot(tap, wmat[t * cin:(t + 1) * cin, :],
                            preferred_element_type=jnp.float32)
    return acc


def _pad_into_scratch(apad_ref, act_f32, bt, h, w, c):
    """Write `act` into the conv scratch with a 1-element zero halo.

    The two width-1 halo columns are folded into the interior store (one store
    of width w+2), leaving only two full-row zero stores.  Columns left of
    LP-1 are never read by the taps so they are not initialized.  Halo zeroing
    happens every step: under a "parallel" grid each core owns its own
    scratch, so a first-step-only guard would be wrong on multi-TC chips.
    """
    zrow = jnp.zeros((bt, 1, LP + w + 1, c), jnp.float32)
    apad_ref[:, 0:1, :, :] = zrow
    apad_ref[:, h + 1:h + 2, :, :] = zrow
    zcol = jnp.zeros((bt, h, 1, c), jnp.float32)
    apad_ref[:, 1:1 + h, LP - 1:LP + w + 1, :] = jnp.concatenate(
        [zcol, act_f32, zcol], axis=2)


def conv1_stats_kernel(x_ref, w1_ref, y1_ref, st_ref, apad_ref):
    """In-kernel halo + conv1 on one batch tile + single-pass partial BN stats."""
    bt, h, w, cin = x_ref.shape
    cout = y1_ref.shape[-1]
    _pad_into_scratch(apad_ref, x_ref[...], bt, h, w, cin)
    y = _conv3x3(apad_ref, w1_ref[...], bt, h, w, cin, LP - 1)   # (bt*h*w, cout) f32
    y1_ref[...] = y.reshape(bt, h, w, cout).astype(y1_ref.dtype)  # bf16 stream
    s = jnp.sum(y, axis=0, keepdims=True)                         # (1, cout) f32
    q = jnp.sum(y * y, axis=0, keepdims=True)
    st_ref[...] = jnp.concatenate([s, q], axis=0).reshape(1, 2, cout)


def bn_relu_conv2_stats_kernel(y1_ref, s1_ref, b1_ref, w2_ref,
                               y2_ref, st_ref, apad_ref):
    """BN1 affine (pre-folded scale/bias) + ReLU + halo + conv2 + partial BN2 stats."""
    bt, h, w, c = y1_ref.shape
    cout = y2_ref.shape[-1]
    s1 = s1_ref[...].reshape(1, 1, 1, c)
    b1 = b1_ref[...].reshape(1, 1, 1, c)
    act = jnp.maximum(y1_ref[...].astype(jnp.float32) * s1 + b1, 0.0)
    _pad_into_scratch(apad_ref, act, bt, h, w, c)
    y2 = _conv3x3(apad_ref, w2_ref[...], bt, h, w, c, LP - 1)
    y2_ref[...] = y2.reshape(bt, h, w, cout).astype(y2_ref.dtype)  # bf16 stream
    s = jnp.sum(y2, axis=0, keepdims=True)
    q = jnp.sum(y2 * y2, axis=0, keepdims=True)
    st_ref[...] = jnp.concatenate([s, q], axis=0).reshape(1, 2, cout)


def bn_add_relu_kernel(y2_ref, s2_ref, b2_ref, x_ref, out_ref):
    """BN2 affine + residual add + ReLU; pure 4-D elementwise."""
    c = out_ref.shape[-1]
    s2 = s2_ref[...].reshape(1, 1, 1, c)
    b2 = b2_ref[...].reshape(1, 1, 1, c)
    out_ref[...] = jnp.maximum(
        y2_ref[...].astype(jnp.float32) * s2 + b2 + x_ref[...], 0.0)


def _fold_bn(stats, gamma, beta, count):
    """Reduce per-tile (sum, sumsq) partials -> train-mode BN scale/bias (f32)."""
    s = jnp.sum(stats[:, 0, :], axis=0)
    q = jnp.sum(stats[:, 1, :], axis=0)
    mean = s / count
    var = jnp.maximum(q / count - mean * mean, 0.0)   # biased batch variance
    scale = gamma.astype(jnp.float32) * lax.rsqrt(var + BN_EPS)
    bias = beta.astype(jnp.float32) - mean * scale
    return scale.reshape(1, -1), bias.reshape(1, -1)


def _pick_batch_tile(n, h, w):
    """Smallest divisor of n with bt*h*w >= 256 (amortizes per-step overhead
    and keeps the per-step matmul M sublane-dense for deep, small-H*W layers)."""
    for bt in range(1, n + 1):
        if n % bt == 0 and bt * h * w >= 256:
            return bt
    return n


@jax.jit
def basic_block_forward_nhwc(x_nhwc, params):
    """BasciBlock forward in NHWC (per-block fast path; no layout conversions)."""
    w1, g1, b1, w2, g2, b2 = params
    n, h, w, c_in = x_nhwc.shape
    c_out = w1.shape[0]
    assert c_in == c_out, "BasciBlock forward requires in_channle == out_channle"
    # TODO(synk): stride!=1 / downsample branch is not representable with this
    # module's forward (Conv2 takes in_channle inputs); stride=1 path only.

    x_nhwc = x_nhwc.astype(jnp.float32)
    bt = _pick_batch_tile(n, h, w)
    n_tiles = n // bt

    def to_wmat(wt):   # (Cout,Cin,3,3) -> (9*Cin, Cout): taps folded into K, bf16
        return (jnp.transpose(wt, (2, 3, 1, 0))
                .reshape(9 * c_in, c_out).astype(jnp.bfloat16))

    w1m, w2m = to_wmat(w1), to_wmat(w2)

    # Explicit per-step VMEM budget: double-buffered activation streams + the
    # halo scratch + the bf16 im2col transient + folded weights, with headroom;
    # clamped to stay inside v7x's 64 MiB/TC while allowing larger tiles on
    # v5e/v6e's 128 MiB.
    step_bytes = (bt * h * w * c_out * (4 + 2 + 2)              # f32 act + bf16 in/out
                  + 9 * c_in * c_out * 2                        # folded weights (bf16)
                  + bt * (h + 2) * (LP + w + 1) * c_out * 4     # halo scratch (f32)
                  + bt * h * w * 9 * c_in * 2)                  # bf16 patch transient
    vmem_limit = int(min(max(3 * step_bytes + (8 << 20), 32 << 20), 48 << 20))
    cparams = pltpu.CompilerParams(
        dimension_semantics=("parallel",),      # megacore sharding on multi-TC chips
        vmem_limit_bytes=vmem_limit)

    tile4 = lambda c: pl.BlockSpec((bt, h, w, c), lambda i: (i, 0, 0, 0))
    rep2 = lambda shp: pl.BlockSpec(shp, lambda i: (0, 0))
    stat_spec = pl.BlockSpec((1, 2, c_out), lambda i: (i, 0, 0))

    # ---- kernel 1: halo + conv1 + per-tile BN1 partial stats ------------------
    y1, st1 = pl.pallas_call(
        conv1_stats_kernel,
        out_shape=(jax.ShapeDtypeStruct((n, h, w, c_out), jnp.bfloat16),
                   jax.ShapeDtypeStruct((n_tiles, 2, c_out), jnp.float32)),
        grid=(n_tiles,),
        in_specs=[tile4(c_in), rep2((9 * c_in, c_out))],
        out_specs=(tile4(c_out), stat_spec),
        scratch_shapes=[pltpu.VMEM((bt, h + 2, LP + w + 1, c_in), jnp.float32)],
        compiler_params=cparams,
    )(x_nhwc, w1m)

    scale1, bias1 = _fold_bn(st1, g1, b1, n * h * w)

    # ---- kernel 2: BN1 + ReLU + halo + conv2 + per-tile BN2 partial stats -----
    y2, st2 = pl.pallas_call(
        bn_relu_conv2_stats_kernel,
        out_shape=(jax.ShapeDtypeStruct((n, h, w, c_out), jnp.bfloat16),
                   jax.ShapeDtypeStruct((n_tiles, 2, c_out), jnp.float32)),
        grid=(n_tiles,),
        in_specs=[tile4(c_out), rep2((1, c_out)), rep2((1, c_out)),
                  rep2((9 * c_out, c_out))],
        out_specs=(tile4(c_out), stat_spec),
        scratch_shapes=[pltpu.VMEM((bt, h + 2, LP + w + 1, c_out), jnp.float32)],
        compiler_params=cparams,
    )(y1, scale1, bias1, w2m)

    scale2, bias2 = _fold_bn(st2, g2, b2, n * h * w)

    # ---- kernel 3: BN2 + residual add + ReLU (residual = the unpadded x) ------
    out_nhwc = pl.pallas_call(
        bn_add_relu_kernel,
        out_shape=jax.ShapeDtypeStruct((n, h, w, c_out), jnp.float32),
        grid=(n_tiles,),
        in_specs=[tile4(c_out), rep2((1, c_out)), rep2((1, c_out)), tile4(c_out)],
        out_specs=tile4(c_out),
        compiler_params=cparams,
    )(y2, scale2, bias2, x_nhwc)

    return out_nhwc


@jax.jit
def basic_block_forward(x_nchw, params):
    """NCHW interface shim matching the PyTorch module.  In a real network keep
    activations NHWC end-to-end and call basic_block_forward_nhwc per block."""
    x_nhwc = jnp.transpose(x_nchw, (0, 2, 3, 1))
    out_nhwc = basic_block_forward_nhwc(x_nhwc, params)
    return jnp.transpose(out_nhwc, (0, 3, 1, 2))


def basic_block_reference(x, params):
    """Pure-JAX NCHW reference matching the PyTorch module in train() mode."""
    w1, g1, b1, w2, g2, b2 = params

    def conv(x, w):
        return lax.conv_general_dilated(
            x, w, window_strides=(1, 1), padding=((1, 1), (1, 1)),
            dimension_numbers=("NCHW", "OIHW", "NCHW"))

    def bn(x, g, b):
        mean = jnp.mean(x, axis=(0, 2, 3), keepdims=True)
        var = jnp.mean((x - mean) ** 2, axis=(0, 2, 3), keepdims=True)
        return ((x - mean) / jnp.sqrt(var + BN_EPS)
                * g[None, :, None, None] + b[None, :, None, None])

    out = jax.nn.relu(bn(conv(x, w1), g1, b1))
    out = bn(conv(out, w2), g2, b2)
    return jax.nn.relu(out + x)


if __name__ == "__main__":
    key = jax.random.PRNGKey(0)
    k = jax.random.split(key, 7)
    N, C, H, W = 2, 4, 16, 16  # in_channle == out_channle, stride == 1

    x = jax.random.normal(k[0], (N, C, H, W), jnp.float32)
    w1 = 0.1 * jax.random.normal(k[1], (C, C, 3, 3), jnp.float32)
    w2 = 0.1 * jax.random.normal(k[2], (C, C, 3, 3), jnp.float32)
    g1 = jax.random.uniform(k[3], (C,), jnp.float32, 0.5, 1.5)
    b1 = 0.1 * jax.random.normal(k[4], (C,), jnp.float32)
    g2 = jax.random.uniform(k[5], (C,), jnp.float32, 0.5, 1.5)
    b2 = 0.1 * jax.random.normal(k[6], (C,), jnp.float32)
    params = (w1, g1, b1, w2, g2, b2)

    out = jax.block_until_ready(basic_block_forward(x, params))
    ref = jax.block_until_ready(basic_block_reference(x, params))

    assert out.shape == (N, C, H, W), out.shape
    max_err = float(jnp.max(jnp.abs(out - ref)))
    # bf16 activation streams + bf16 MXU operands (f32 accumulation) vs an
    # all-f32 reference; the BN 1/sigma scaling amplifies the bf16 rounding,
    # so allow a wider (but still tight vs O(1) activations) tolerance.
    assert jnp.allclose(out, ref, atol=8e-2, rtol=8e-2), f"max_err={max_err}"
    print("KERNEL_OK")
</pallas_src>

<mosaic_0001>
module attributes {stable_mosaic.version = 11 : i64} {
  func.func @bn_add_relu_kernel(%arg0: i32, %arg1: memref<1x16x16x4xbf16, #tpu.memory_space<vmem>>, %arg2: memref<1x4xf32, #tpu.memory_space<vmem>>, %arg3: memref<1x4xf32, #tpu.memory_space<vmem>>, %arg4: memref<1x16x16x4xf32, #tpu.memory_space<vmem>>, %arg5: memref<1x16x16x4xf32, #tpu.memory_space<vmem>>) attributes {dimension_semantics = [#tpu.dimension_semantics<parallel>], iteration_bounds = array<i64: 2>, scalar_prefetch = 0 : i64, scratch_operands = 0 : i64, tpu.core_type = #tpu.core_type<tc>, window_params = [{transform_indices = @transform_0, window_bounds = array<i64: 1, 16, 16, 4>}, {pipeline_mode = #tpu.pipeline_mode<synchronous>, transform_indices = @transform_1, window_bounds = array<i64: 1, 4>}, {pipeline_mode = #tpu.pipeline_mode<synchronous>, transform_indices = @transform_2, window_bounds = array<i64: 1, 4>}, {transform_indices = @transform_3, window_bounds = array<i64: 1, 16, 16, 4>}, {transform_indices = @transform_4, window_bounds = array<i64: 1, 16, 16, 4>}]} {
    %c0 = arith.constant 0 : index
    %c0_0 = arith.constant 0 : index
    %0 = vector.load %arg2[%c0, %c0_0] : memref<1x4xf32, #tpu.memory_space<vmem>>, vector<1x4xf32>
    %1 = vector.shape_cast %0 : vector<1x4xf32> to vector<1x1x1x4xf32>
    %c0_1 = arith.constant 0 : index
    %c0_2 = arith.constant 0 : index
    %2 = vector.load %arg3[%c0_1, %c0_2] : memref<1x4xf32, #tpu.memory_space<vmem>>, vector<1x4xf32>
    %3 = vector.shape_cast %2 : vector<1x4xf32> to vector<1x1x1x4xf32>
    %c0_3 = arith.constant 0 : index
    %c0_4 = arith.constant 0 : index
    %c0_5 = arith.constant 0 : index
    %c0_6 = arith.constant 0 : index
    %4 = vector.load %arg1[%c0_3, %c0_4, %c0_5, %c0_6] : memref<1x16x16x4xbf16, #tpu.memory_space<vmem>>, vector<1x16x16x4xbf16>
    %5 = arith.extf %4 : vector<1x16x16x4xbf16> to vector<1x16x16x4xf32>
    %6 = vector.broadcast %1 : vector<1x1x1x4xf32> to vector<1x16x16x4xf32>
    %7 = arith.mulf %5, %6 : vector<1x16x16x4xf32>
    %8 = vector.broadcast %3 : vector<1x1x1x4xf32> to vector<1x16x16x4xf32>
    %9 = arith.addf %7, %8 : vector<1x16x16x4xf32>
    %c0_7 = arith.constant 0 : index
    %c0_8 = arith.constant 0 : index
    %c0_9 = arith.constant 0 : index
    %c0_10 = arith.constant 0 : index
    %10 = vector.load %arg4[%c0_7, %c0_8, %c0_9, %c0_10] : memref<1x16x16x4xf32, #tpu.memory_space<vmem>>, vector<1x16x16x4xf32>
    %11 = arith.addf %9, %10 : vector<1x16x16x4xf32>
    %cst = arith.constant 0.000000e+00 : f32
    %12 = vector.broadcast %cst : f32 to vector<1x16x16x4xf32>
    %13 = arith.maximumf %11, %12 : vector<1x16x16x4xf32>
    %c0_11 = arith.constant 0 : index
    %c0_12 = arith.constant 0 : index
    %c0_13 = arith.constant 0 : index
    %c0_14 = arith.constant 0 : index
    %14 = vector.load %arg5[%c0_11, %c0_12, %c0_13, %c0_14] : memref<1x16x16x4xf32, #tpu.memory_space<vmem>>, vector<1x16x16x4xf32>
    tpu.vector_store %arg5[%c0_11, %c0_12, %c0_13, %c0_14], %13 {strides = array<i32>} : memref<1x16x16x4xf32, #tpu.memory_space<vmem>>, vector<1x16x16x4xf32>,
    return
  }
  func.func @transform_0(%arg0: i32) -> (i32, i32, i32, i32) {
    %c0_i32 = arith.constant 0 : i32
    %c0_i32_0 = arith.constant 0 : i32
    %c0_i32_1 = arith.constant 0 : i32
    %c0_i32_2 = arith.constant 0 : i32
    return %arg0, %c0_i32, %c0_i32_0, %c0_i32_1 : i32, i32, i32, i32
  }
  func.func @transform_1(%arg0: i32) -> (i32, i32) {
    %c0_i32 = arith.constant 0 : i32
    %c0_i32_0 = arith.constant 0 : i32
    %c0_i32_1 = arith.constant 0 : i32
    return %c0_i32, %c0_i32_0 : i32, i32
  }
  func.func @transform_2(%arg0: i32) -> (i32, i32) {
    %c0_i32 = arith.constant 0 : i32
    %c0_i32_0 = arith.constant 0 : i32
    %c0_i32_1 = arith.constant 0 : i32
    return %c0_i32, %c0_i32_0 : i32, i32
  }
  func.func @transform_3(%arg0: i32) -> (i32, i32, i32, i32) {
    %c0_i32 = arith.constant 0 : i32
    %c0_i32_0 = arith.constant 0 : i32
    %c0_i32_1 = arith.constant 0 : i32
    %c0_i32_2 = arith.constant 0 : i32
    return %arg0, %c0_i32, %c0_i32_0, %c0_i32_1 : i32, i32, i32, i32
  }
  func.func @transform_4(%arg0: i32) -> (i32, i32, i32, i32) {
    %c0_i32 = arith.constant 0 : i32
    %c0_i32_0 = arith.constant 0 : i32
    %c0_i32_1 = arith.constant 0 : i32
    %c0_i32_2 = arith.constant 0 : i32
    return %arg0, %c0_i32, %c0_i32_0, %c0_i32_1 : i32, i32, i32, i32
  }
}

module attributes {stable_mosaic.version = 11 : i64} {
  func.func @conv1_stats_kernel(%arg0: i32, %arg1: memref<1x16x16x4xf32, #tpu.memory_space<vmem>>, %arg2: memref<36x4xbf16, #tpu.memory_space<vmem>>, %arg3: memref<1x16x16x4xbf16, #tpu.memory_space<vmem>>, %arg4: memref<1x2x4xf32, #tpu.memory_space<vmem>>, %arg5: memref<1x18x25x4xf32, #tpu.memory_space<vmem>>) attributes {dimension_semantics = [#tpu.dimension_semantics<parallel>], iteration_bounds = array<i64: 2>, scalar_prefetch = 0 : i64, scratch_operands = 1 : i64, tpu.core_type = #tpu.core_type<tc>, window_params = [{transform_indices = @transform_0, window_bounds = array<i64: 1, 16, 16, 4>}, {pipeline_mode = #tpu.pipeline_mode<synchronous>, transform_indices = @transform_1, window_bounds = array<i64: 36, 4>}, {transform_indices = @transform_2, window_bounds = array<i64: 1, 16, 16, 4>}, {transform_indices = @transform_3, window_bounds = array<i64: 1, 2, 4>}]} {
    %c0 = arith.constant 0 : index
    %c0_0 = arith.constant 0 : index
    %c0_1 = arith.constant 0 : index
    %c0_2 = arith.constant 0 : index
    %0 = vector.load %arg1[%c0, %c0_0, %c0_1, %c0_2] : memref<1x16x16x4xf32, #tpu.memory_space<vmem>>, vector<1x16x16x4xf32>
    %cst = arith.constant 0.000000e+00 : f32
    %1 = vector.broadcast %cst : f32 to vector<1x1x25x4xf32>
    %c0_3 = arith.constant 0 : index
    %c0_4 = arith.constant 0 : index
    %c0_5 = arith.constant 0 : index
    %c0_6 = arith.constant 0 : index
    %2 = vector.load %arg5[%c0_3, %c0_4, %c0_5, %c0_6] : memref<1x18x25x4xf32, #tpu.memory_space<vmem>>, vector<1x1x25x4xf32>
    tpu.vector_store %arg5[%c0_3, %c0_4, %c0_5, %c0_6], %1 {strides = array<i32>} : memref<1x18x25x4xf32, #tpu.memory_space<vmem>>, vector<1x1x25x4xf32>,
    %c0_7 = arith.constant 0 : index
    %c17 = arith.constant 17 : index
    %c0_8 = arith.constant 0 : index
    %c0_9 = arith.constant 0 : index
    %3 = vector.load %arg5[%c0_7, %c17, %c0_8, %c0_9] : memref<1x18x25x4xf32, #tpu.memory_space<vmem>>, vector<1x1x25x4xf32>
    tpu.vector_store %arg5[%c0_7, %c17, %c0_8, %c0_9], %1 {strides = array<i32>} : memref<1x18x25x4xf32, #tpu.memory_space<vmem>>, vector<1x1x25x4xf32>,
    %cst_10 = arith.constant 0.000000e+00 : f32
    %4 = vector.broadcast %cst_10 : f32 to vector<1x16x1x4xf32>
    %5 = tpu.concatenate %4, %0, %4 in 2 : vector<1x16x1x4xf32>, vector<1x16x16x4xf32>, vector<1x16x1x4xf32> -> vector<1x16x18x4xf32>
    %c0_11 = arith.constant 0 : index
    %c1 = arith.constant 1 : index
    %c7 = arith.constant 7 : index
    %c0_12 = arith.constant 0 : index
    %6 = vector.load %arg5[%c0_11, %c1, %c7, %c0_12] : memref<1x18x25x4xf32, #tpu.memory_space<vmem>>, vector<1x16x18x4xf32>
    tpu.vector_store %arg5[%c0_11, %c1, %c7, %c0_12], %5 {strides = array<i32>} : memref<1x18x25x4xf32, #tpu.memory_space<vmem>>, vector<1x16x18x4xf32>,
    %c0_13 = arith.constant 0 : index
    %c0_14 = arith.constant 0 : index
    %7 = vector.load %arg2[%c0_13, %c0_14] : memref<36x4xbf16, #tpu.memory_space<vmem>>, vector<36x4xbf16>
    %c0_15 = arith.constant 0 : index
    %c0_16 = arith.constant 0 : index
    %c7_17 = arith.constant 7 : index
    %c0_18 = arith.constant 0 : index
    %8 = vector.load %arg5[%c0_15, %c0_16, %c7_17, %c0_18] : memref<1x18x25x4xf32, #tpu.memory_space<vmem>>, vector<1x16x16x4xf32>
    %9 = arith.truncf %8 : vector<1x16x16x4xf32> to vector<1x16x16x4xbf16>
    %c0_19 = arith.constant 0 : index
    %c0_20 = arith.constant 0 : index
    %c8 = arith.constant 8 : index
    %c0_21 = arith.constant 0 : index
    %10 = vector.load %arg5[%c0_19, %c0_20, %c8, %c0_21] : memref<1x18x25x4xf32, #tpu.memory_space<vmem>>, vector<1x16x16x4xf32>
    %11 = arith.truncf %10 : vector<1x16x16x4xf32> to vector<1x16x16x4xbf16>
    %c0_22 = arith.constant 0 : index
    %c0_23 = arith.constant 0 : index
    %c9 = arith.constant 9 : index
    %c0_24 = arith.constant 0 : index
    %12 = vector.load %arg5[%c0_22, %c0_23, %c9, %c0_24] : memref<1x18x25x4xf32, #tpu.memory_space<vmem>>, vector<1x16x16x4xf32>
    %13 = arith.truncf %12 : vector<1x16x16x4xf32> to vector<1x16x16x4xbf16>
    %c0_25 = arith.constant 0 : index
    %c1_26 = arith.constant 1 : index
    %c7_27 = arith.constant 7 : index
    %c0_28 = arith.constant 0 : index
    %14 = vector.load %arg5[%c0_25, %c1_26, %c7_27, %c0_28] : memref<1x18x25x4xf32, #tpu.memory_space<vmem>>, vector<1x16x16x4xf32>
    %15 = arith.truncf %14 : vector<1x16x16x4xf32> to vector<1x16x16x4xbf16>
    %c0_29 = arith.constant 0 : index
    %c1_30 = arith.constant 1 : index
    %c8_31 = arith.constant 8 : index
    %c0_32 = arith.constant 0 : index
    %16 = vector.load %arg5[%c0_29, %c1_30, %c8_31, %c0_32] : memref<1x18x25x4xf32, #tpu.memory_space<vmem>>, vector<1x16x16x4xf32>
    %17 = arith.truncf %16 : vector<1x16x16x4xf32> to vector<1x16x16x4xbf16>
    %c0_33 = arith.constant 0 : index
    %c1_34 = arith.constant 1 : index
    %c9_35 = arith.constant 9 : index
    %c0_36 = arith.constant 0 : index
    %18 = vector.load %arg5[%c0_33, %c1_34, %c9_35, %c0_36] : memref<1x18x25x4xf32, #tpu.memory_space<vmem>>, vector<1x16x16x4xf32>
    %19 = arith.truncf %18 : vector<1x16x16x4xf32> to vector<1x16x16x4xbf16>
    %c0_37 = arith.constant 0 : index
    %c2 = arith.constant 2 : index
    %c7_38 = arith.constant 7 : index
    %c0_39 = arith.constant 0 : index
    %20 = vector.load %arg5[%c0_37, %c2, %c7_38, %c0_39] : memref<1x18x25x4xf32, #tpu.memory_space<vmem>>, vector<1x16x16x4xf32>
    %21 = arith.truncf %20 : vector<1x16x16x4xf32> to vector<1x16x16x4xbf16>
    %c0_40 = arith.constant 0 : index
    %c2_41 = arith.constant 2 : index
    %c8_42 = arith.constant 8 : index
    %c0_43 = arith.constant 0 : index
    %22 = vector.load %arg5[%c0_40, %c2_41, %c8_42, %c0_43] : memref<1x18x25x4xf32, #tpu.memory_space<vmem>>, vector<1x16x16x4xf32>
    %23 = arith.truncf %22 : vector<1x16x16x4xf32> to vector<1x16x16x4xbf16>
    %c0_44 = arith.constant 0 : index
    %c2_45 = arith.constant 2 : index
    %c9_46 = arith.constant 9 : index
    %c0_47 = arith.constant 0 : index
    %24 = vector.load %arg5[%c0_44, %c2_45, %c9_46, %c0_47] : memref<1x18x25x4xf32, #tpu.memory_space<vmem>>, vector<1x16x16x4xf32>
    %25 = arith.truncf %24 : vector<1x16x16x4xf32> to vector<1x16x16x4xbf16>
    %26 = tpu.concatenate %9, %11, %13, %15, %17, %19, %21, %23, %25 in 3 : vector<1x16x16x4xbf16>, vector<1x16x16x4xbf16>, vector<1x16x16x4xbf16>, vector<1x16x16x4xbf16>, vector<1x16x16x4xbf16>, vector<1x16x16x4xbf16>, vector<1x16x16x4xbf16>, vector<1x16x16x4xbf16>, vector<1x16x16x4xbf16> -> vector<1x16x16x36xbf16>
    %27 = vector.shape_cast %26 : vector<1x16x16x36xbf16> to vector<256x36xbf16>
    %cst_48 = arith.constant dense<0.000000e+00> : vector<256x4xf32>
    %28 = tpu.matmul %27, %7, %cst_48 {dimension_numbers = #tpu.dot_dimension_numbers<[1], [0], [0], [1], [0, 0, 1, 1], [], []>} : vector<256x36xbf16>, vector<36x4xbf16>, vector<256x4xf32> -> vector<256x4xf32>
    %29 = vector.shape_cast %28 : vector<256x4xf32> to vector<1x16x16x4xf32>
    %30 = arith.truncf %29 : vector<1x16x16x4xf32> to vector<1x16x16x4xbf16>
    %c0_49 = arith.constant 0 : index
    %c0_50 = arith.constant 0 : index
    %c0_51 = arith.constant 0 : index
    %c0_52 = arith.constant 0 : index
    %31 = vector.load %arg3[%c0_49, %c0_50, %c0_51, %c0_52] : memref<1x16x16x4xbf16, #tpu.memory_space<vmem>>, vector<1x16x16x4xbf16>
    tpu.vector_store %arg3[%c0_49, %c0_50, %c0_51, %c0_52], %30 {strides = array<i32>} : memref<1x16x16x4xbf16, #tpu.memory_space<vmem>>, vector<1x16x16x4xbf16>,
    %cst_53 = arith.constant dense<0.000000e+00> : vector<4xf32>
    %32 = vector.multi_reduction <add>, %28, %cst_53 [0] : vector<256x4xf32> to vector<4xf32>
    %33 = vector.shape_cast %32 : vector<4xf32> to vector<1x4xf32>
    %34 = arith.mulf %28, %28 : vector<256x4xf32>
    %cst_54 = arith.constant dense<0.000000e+00> : vector<4xf32>
    %35 = vector.multi_reduction <add>, %34, %cst_54 [0] : vector<256x4xf32> to vector<4xf32>
    %36 = vector.shape_cast %35 : vector<4xf32> to vector<1x4xf32>
    %37 = tpu.concatenate %33, %36 in 0 : vector<1x4xf32>, vector<1x4xf32> -> vector<2x4xf32>
    %38 = vector.shape_cast %37 : vector<2x4xf32> to vector<1x2x4xf32>
    %c0_55 = arith.constant 0 : index
    %c0_56 = arith.constant 0 : index
    %c0_57 = arith.constant 0 : index
    %39 = vector.load %arg4[%c0_55, %c0_56, %c0_57] : memref<1x2x4xf32, #tpu.memory_space<vmem>>, vector<1x2x4xf32>
    tpu.vector_store %arg4[%c0_55, %c0_56, %c0_57], %38 {strides = array<i32>} : memref<1x2x4xf32, #tpu.memory_space<vmem>>, vector<1x2x4xf32>,
    return
  }
  func.func @transform_0(%arg0: i32) -> (i32, i32, i32, i32) {
    %c0_i32 = arith.constant 0 : i32
    %c0_i32_0 = arith.constant 0 : i32
    %c0_i32_1 = arith.constant 0 : i32
    %c0_i32_2 = arith.constant 0 : i32
    return %arg0, %c0_i32, %c0_i32_0, %c0_i32_1 : i32, i32, i32, i32
  }
  func.func @transform_1(%arg0: i32) -> (i32, i32) {
    %c0_i32 = arith.constant 0 : i32
    %c0_i32_0 = arith.constant 0 : i32
    %c0_i32_1 = arith.constant 0 : i32
    return %c0_i32, %c0_i32_0 : i32, i32
  }
  func.func @transform_2(%arg0: i32) -> (i32, i32, i32, i32) {
    %c0_i32 = arith.constant 0 : i32
    %c0_i32_0 = arith.constant 0 : i32
    %c0_i32_1 = arith.constant 0 : i32
    %c0_i32_2 = arith.constant 0 : i32
    return %arg0, %c0_i32, %c0_i32_0, %c0_i32_1 : i32, i32, i32, i32
  }
  func.func @transform_3(%arg0: i32) -> (i32, i32, i32) {
    %c0_i32 = arith.constant 0 : i32
    %c0_i32_0 = arith.constant 0 : i32
    %c0_i32_1 = arith.constant 0 : i32
    return %arg0, %c0_i32, %c0_i32_0 : i32, i32, i32
  }
}

module attributes {stable_mosaic.version = 11 : i64} {
  func.func @bn_relu_conv2_stats_kernel(%arg0: i32, %arg1: memref<1x16x16x4xbf16, #tpu.memory_space<vmem>>, %arg2: memref<1x4xf32, #tpu.memory_space<vmem>>, %arg3: memref<1x4xf32, #tpu.memory_space<vmem>>, %arg4: memref<36x4xbf16, #tpu.memory_space<vmem>>, %arg5: memref<1x16x16x4xbf16, #tpu.memory_space<vmem>>, %arg6: memref<1x2x4xf32, #tpu.memory_space<vmem>>, %arg7: memref<1x18x25x4xf32, #tpu.memory_space<vmem>>) attributes {dimension_semantics = [#tpu.dimension_semantics<parallel>], iteration_bounds = array<i64: 2>, scalar_prefetch = 0 : i64, scratch_operands = 1 : i64, tpu.core_type = #tpu.core_type<tc>, window_params = [{transform_indices = @transform_0, window_bounds = array<i64: 1, 16, 16, 4>}, {pipeline_mode = #tpu.pipeline_mode<synchronous>, transform_indices = @transform_1, window_bounds = array<i64: 1, 4>}, {pipeline_mode = #tpu.pipeline_mode<synchronous>, transform_indices = @transform_2, window_bounds = array<i64: 1, 4>}, {pipeline_mode = #tpu.pipeline_mode<synchronous>, transform_indices = @transform_3, window_bounds = array<i64: 36, 4>}, {transform_indices = @transform_4, window_bounds = array<i64: 1, 16, 16, 4>}, {transform_indices = @transform_5, window_bounds = array<i64: 1, 2, 4>}]} {
    %c0 = arith.constant 0 : index
    %c0_0 = arith.constant 0 : index
    %0 = vector.load %arg2[%c0, %c0_0] : memref<1x4xf32, #tpu.memory_space<vmem>>, vector<1x4xf32>
    %1 = vector.shape_cast %0 : vector<1x4xf32> to vector<1x1x1x4xf32>
    %c0_1 = arith.constant 0 : index
    %c0_2 = arith.constant 0 : index
    %2 = vector.load %arg3[%c0_1, %c0_2] : memref<1x4xf32, #tpu.memory_space<vmem>>, vector<1x4xf32>
    %3 = vector.shape_cast %2 : vector<1x4xf32> to vector<1x1x1x4xf32>
    %c0_3 = arith.constant 0 : index
    %c0_4 = arith.constant 0 : index
    %c0_5 = arith.constant 0 : index
    %c0_6 = arith.constant 0 : index
    %4 = vector.load %arg1[%c0_3, %c0_4, %c0_5, %c0_6] : memref<1x16x16x4xbf16, #tpu.memory_space<vmem>>, vector<1x16x16x4xbf16>
    %5 = arith.extf %4 : vector<1x16x16x4xbf16> to vector<1x16x16x4xf32>
    %6 = vector.broadcast %1 : vector<1x1x1x4xf32> to vector<1x16x16x4xf32>
    %7 = arith.mulf %5, %6 : vector<1x16x16x4xf32>
    %8 = vector.broadcast %3 : vector<1x1x1x4xf32> to vector<1x16x16x4xf32>
    %9 = arith.addf %7, %8 : vector<1x16x16x4xf32>
    %cst = arith.constant 0.000000e+00 : f32
    %10 = vector.broadcast %cst : f32 to vector<1x16x16x4xf32>
    %11 = arith.maximumf %9, %10 : vector<1x16x16x4xf32>
    %cst_7 = arith.constant 0.000000e+00 : f32
    %12 = vector.broadcast %cst_7 : f32 to vector<1x1x25x4xf32>
    %c0_8 = arith.constant 0 : index
    %c0_9 = arith.constant 0 : index
    %c0_10 = arith.constant 0 : index
    %c0_11 = arith.constant 0 : index
    %13 = vector.load %arg7[%c0_8, %c0_9, %c0_10, %c0_11] : memref<1x18x25x4xf32, #tpu.memory_space<vmem>>, vector<1x1x25x4xf32>
    tpu.vector_store %arg7[%c0_8, %c0_9, %c0_10, %c0_11], %12 {strides = array<i32>} : memref<1x18x25x4xf32, #tpu.memory_space<vmem>>, vector<1x1x25x4xf32>,
    %c0_12 = arith.constant 0 : index
    %c17 = arith.constant 17 : index
    %c0_13 = arith.constant 0 : index
    %c0_14 = arith.constant 0 : index
    %14 = vector.load %arg7[%c0_12, %c17, %c0_13, %c0_14] : memref<1x18x25x4xf32, #tpu.memory_space<vmem>>, vector<1x1x25x4xf32>
    tpu.vector_store %arg7[%c0_12, %c17, %c0_13, %c0_14], %12 {strides = array<i32>} : memref<1x18x25x4xf32, #tpu.memory_space<vmem>>, vector<1x1x25x4xf32>,
    %cst_15 = arith.constant 0.000000e+00 : f32
    %15 = vector.broadcast %cst_15 : f32 to vector<1x16x1x4xf32>
    %16 = tpu.concatenate %15, %11, %15 in 2 : vector<1x16x1x4xf32>, vector<1x16x16x4xf32>, vector<1x16x1x4xf32> -> vector<1x16x18x4xf32>
    %c0_16 = arith.constant 0 : index
    %c1 = arith.constant 1 : index
    %c7 = arith.constant 7 : index
    %c0_17 = arith.constant 0 : index
    %17 = vector.load %arg7[%c0_16, %c1, %c7, %c0_17] : memref<1x18x25x4xf32, #tpu.memory_space<vmem>>, vector<1x16x18x4xf32>
    tpu.vector_store %arg7[%c0_16, %c1, %c7, %c0_17], %16 {strides = array<i32>} : memref<1x18x25x4xf32, #tpu.memory_space<vmem>>, vector<1x16x18x4xf32>,
    %c0_18 = arith.constant 0 : index
    %c0_19 = arith.constant 0 : index
    %18 = vector.load %arg4[%c0_18, %c0_19] : memref<36x4xbf16, #tpu.memory_space<vmem>>, vector<36x4xbf16>
    %c0_20 = arith.constant 0 : index
    %c0_21 = arith.constant 0 : index
    %c7_22 = arith.constant 7 : index
    %c0_23 = arith.constant 0 : index
    %19 = vector.load %arg7[%c0_20, %c0_21, %c7_22, %c0_23] : memref<1x18x25x4xf32, #tpu.memory_space<vmem>>, vector<1x16x16x4xf32>
    %20 = arith.truncf %19 : vector<1x16x16x4xf32> to vector<1x16x16x4xbf16>
    %c0_24 = arith.constant 0 : index
    %c0_25 = arith.constant 0 : index
    %c8 = arith.constant 8 : index
    %c0_26 = arith.constant 0 : index
    %21 = vector.load %arg7[%c0_24, %c0_25, %c8, %c0_26] : memref<1x18x25x4xf32, #tpu.memory_space<vmem>>, vector<1x16x16x4xf32>
    %22 = arith.truncf %21 : vector<1x16x16x4xf32> to vector<1x16x16x4xbf16>
    %c0_27 = arith.constant 0 : index
    %c0_28 = arith.constant 0 : index
    %c9 = arith.constant 9 : index
    %c0_29 = arith.constant 0 : index
    %23 = vector.load %arg7[%c0_27, %c0_28, %c9, %c0_29] : memref<1x18x25x4xf32, #tpu.memory_space<vmem>>, vector<1x16x16x4xf32>
    %24 = arith.truncf %23 : vector<1x16x16x4xf32> to vector<1x16x16x4xbf16>
    %c0_30 = arith.constant 0 : index
    %c1_31 = arith.constant 1 : index
    %c7_32 = arith.constant 7 : index
    %c0_33 = arith.constant 0 : index
    %25 = vector.load %arg7[%c0_30, %c1_31, %c7_32, %c0_33] : memref<1x18x25x4xf32, #tpu.memory_space<vmem>>, vector<1x16x16x4xf32>
    %26 = arith.truncf %25 : vector<1x16x16x4xf32> to vector<1x16x16x4xbf16>
    %c0_34 = arith.constant 0 : index
    %c1_35 = arith.constant 1 : index
    %c8_36 = arith.constant 8 : index
    %c0_37 = arith.constant 0 : index
    %27 = vector.load %arg7[%c0_34, %c1_35, %c8_36, %c0_37] : memref<1x18x25x4xf32, #tpu.memory_space<vmem>>, vector<1x16x16x4xf32>
    %28 = arith.truncf %27 : vector<1x16x16x4xf32> to vector<1x16x16x4xbf16>
    %c0_38 = arith.constant 0 : index
    %c1_39 = arith.constant 1 : index
    %c9_40 = arith.constant 9 : index
    %c0_41 = arith.constant 0 : index
    %29 = vector.load %arg7[%c0_38, %c1_39, %c9_40, %c0_41] : memref<1x18x25x4xf32, #tpu.memory_space<vmem>>, vector<1x16x16x4xf32>
    %30 = arith.truncf %29 : vector<1x16x16x4xf32> to vector<1x16x16x4xbf16>
    %c0_42 = arith.constant 0 : index
    %c2 = arith.constant 2 : index
    %c7_43 = arith.constant 7 : index
    %c0_44 = arith.constant 0 : index
    %31 = vector.load %arg7[%c0_42, %c2, %c7_43, %c0_44] : memref<1x18x25x4xf32, #tpu.memory_space<vmem>>, vector<1x16x16x4xf32>
    %32 = arith.truncf %31 : vector<1x16x16x4xf32> to vector<1x16x16x4xbf16>
    %c0_45 = arith.constant 0 : index
    %c2_46 = arith.constant 2 : index
    %c8_47 = arith.constant 8 : index
    %c0_48 = arith.constant 0 : index
    %33 = vector.load %arg7[%c0_45, %c2_46, %c8_47, %c0_48] : memref<1x18x25x4xf32, #tpu.memory_space<vmem>>, vector<1x16x16x4xf32>
    %34 = arith.truncf %33 : vector<1x16x16x4xf32> to vector<1x16x16x4xbf16>
    %c0_49 = arith.constant 0 : index
    %c2_50 = arith.constant 2 : index
    %c9_51 = arith.constant 9 : index
    %c0_52 = arith.constant 0 : index
    %35 = vector.load %arg7[%c0_49, %c2_50, %c9_51, %c0_52] : memref<1x18x25x4xf32, #tpu.memory_space<vmem>>, vector<1x16x16x4xf32>
    %36 = arith.truncf %35 : vector<1x16x16x4xf32> to vector<1x16x16x4xbf16>
    %37 = tpu.concatenate %20, %22, %24, %26, %28, %30, %32, %34, %36 in 3 : vector<1x16x16x4xbf16>, vector<1x16x16x4xbf16>, vector<1x16x16x4xbf16>, vector<1x16x16x4xbf16>, vector<1x16x16x4xbf16>, vector<1x16x16x4xbf16>, vector<1x16x16x4xbf16>, vector<1x16x16x4xbf16>, vector<1x16x16x4xbf16> -> vector<1x16x16x36xbf16>
    %38 = vector.shape_cast %37 : vector<1x16x16x36xbf16> to vector<256x36xbf16>
    %cst_53 = arith.constant dense<0.000000e+00> : vector<256x4xf32>
    %39 = tpu.matmul %38, %18, %cst_53 {dimension_numbers = #tpu.dot_dimension_numbers<[1], [0], [0], [1], [0, 0, 1, 1], [], []>} : vector<256x36xbf16>, vector<36x4xbf16>, vector<256x4xf32> -> vector<256x4xf32>
    %40 = vector.shape_cast %39 : vector<256x4xf32> to vector<1x16x16x4xf32>
    %41 = arith.truncf %40 : vector<1x16x16x4xf32> to vector<1x16x16x4xbf16>
    %c0_54 = arith.constant 0 : index
    %c0_55 = arith.constant 0 : index
    %c0_56 = arith.constant 0 : index
    %c0_57 = arith.constant 0 : index
    %42 = vector.load %arg5[%c0_54, %c0_55, %c0_56, %c0_57] : memref<1x16x16x4xbf16, #tpu.memory_space<vmem>>, vector<1x16x16x4xbf16>
    tpu.vector_store %arg5[%c0_54, %c0_55, %c0_56, %c0_57], %41 {strides = array<i32>} : memref<1x16x16x4xbf16, #tpu.memory_space<vmem>>, vector<1x16x16x4xbf16>,
    %cst_58 = arith.constant dense<0.000000e+00> : vector<4xf32>
    %43 = vector.multi_reduction <add>, %39, %cst_58 [0] : vector<256x4xf32> to vector<4xf32>
    %44 = vector.shape_cast %43 : vector<4xf32> to vector<1x4xf32>
    %45 = arith.mulf %39, %39 : vector<256x4xf32>
    %cst_59 = arith.constant dense<0.000000e+00> : vector<4xf32>
    %46 = vector.multi_reduction <add>, %45, %cst_59 [0] : vector<256x4xf32> to vector<4xf32>
    %47 = vector.shape_cast %46 : vector<4xf32> to vector<1x4xf32>
    %48 = tpu.concatenate %44, %47 in 0 : vector<1x4xf32>, vector<1x4xf32> -> vector<2x4xf32>
    %49 = vector.shape_cast %48 : vector<2x4xf32> to vector<1x2x4xf32>
    %c0_60 = arith.constant 0 : index
    %c0_61 = arith.constant 0 : index
    %c0_62 = arith.constant 0 : index
    %50 = vector.load %arg6[%c0_60, %c0_61, %c0_62] : memref<1x2x4xf32, #tpu.memory_space<vmem>>, vector<1x2x4xf32>
    tpu.vector_store %arg6[%c0_60, %c0_61, %c0_62], %49 {strides = array<i32>} : memref<1x2x4xf32, #tpu.memory_space<vmem>>, vector<1x2x4xf32>,
    return
  }
  func.func @transform_0(%arg0: i32) -> (i32, i32, i32, i32) {
    %c0_i32 = arith.constant 0 : i32
    %c0_i32_0 = arith.constant 0 : i32
    %c0_i32_1 = arith.constant 0 : i32
    %c0_i32_2 = arith.constant 0 : i32
    return %arg0, %c0_i32, %c0_i32_0, %c0_i32_1 : i32, i32, i32, i32
  }
  func.func @transform_1(%arg0: i32) -> (i32, i32) {
    %c0_i32 = arith.constant 0 : i32
    %c0_i32_0 = arith.constant 0 : i32
    %c0_i32_1 = arith.constant 0 : i32
    return %c0_i32, %c0_i32_0 : i32, i32
  }
  func.func @transform_2(%arg0: i32) -> (i32, i32) {
    %c0_i32 = arith.constant 0 : i32
    %c0_i32_0 = arith.constant 0 : i32
    %c0_i32_1 = arith.constant 0 : i32
    return %c0_i32, %c0_i32_0 : i32, i32
  }
  func.func @transform_3(%arg0: i32) -> (i32, i32) {
    %c0_i32 = arith.constant 0 : i32
    %c0_i32_0 = arith.constant 0 : i32
    %c0_i32_1 = arith.constant 0 : i32
    return %c0_i32, %c0_i32_0 : i32, i32
  }
  func.func @transform_4(%arg0: i32) -> (i32, i32, i32, i32) {
    %c0_i32 = arith.constant 0 : i32
    %c0_i32_0 = arith.constant 0 : i32
    %c0_i32_1 = arith.constant 0 : i32
    %c0_i32_2 = arith.constant 0 : i32
    return %arg0, %c0_i32, %c0_i32_0, %c0_i32_1 : i32, i32, i32, i32
  }
  func.func @transform_5(%arg0: i32) -> (i32, i32, i32) {
    %c0_i32 = arith.constant 0 : i32
    %c0_i32_0 = arith.constant 0 : i32
    %c0_i32_1 = arith.constant 0 : i32
    return %arg0, %c0_i32, %c0_i32_0 : i32, i32, i32
  }
}

</mosaic_0001>

<llo_original>
// kernel: basic_block_forward_nhwc.5
$region0: #{basic_block_forward_nhwc.5}
  #allocation0 [shape = 'u32[]', space=smem, size = 0x4, offset = 0x4, fixed_abs, tag = 'smem constant byte address 0x4 - core index']
  #allocation1 [shape = 'u32[144,128]{1,0:T(1,128)}', space=vmem, size = 0x12000, scoped, tag = 'internal scratch']
  %s0 = inlined_call_operand.vmem [shape: bf16[2,16,16,4], index: 0, kind: input, shape index: {}]
  %s1 = inlined_call_operand.vmem [shape: f32[1,4], index: 1, kind: input, shape index: {}]
  %s2 = inlined_call_operand.vmem [shape: f32[1,4], index: 2, kind: input, shape index: {}]
  %s3 = inlined_call_operand.vmem [shape: f32[2,16,16,4], index: 3, kind: input, shape index: {}]
  %s4 = inlined_call_operand.vmem [shape: f32[2,16,16,4], index: 4, kind: output, shape index: {}]
  %s5 = sld [smem:[#allocation0]]
  $region49: #{basic_block_forward_nhwc.5} parent=0
    _
  %s7 = ssub.s32 1, %s5
  %s8 = scalar_select 0, %s7, %s5
  loop: start=0, step=1, limit=4
  $region2: #{basic_block_forward_nhwc.5} parent=0 // loop_pre_header
    _
  $region3: #{basic_block_forward_nhwc.5} parent=0 // loop_header
    %s10 = sphi 0, %s14
    %p11 = scmp.ge.s32.totalorder %s10, 4
    %s20 = sphi 0, %s22
    %s23 = sphi 0, %s20
    %s24 = sphi 0, %s23
    %s40 = sphi 0, %s24
    %s44 = sphi 0, %s44
    %s46 = sphi 0, %s44
    %s47 = sphi 0, %s46
    %s61 = sphi 0, %s47
    %s65 = sphi 0, %s65
    %s67 = sphi 0, %s65
    %s68 = sphi 0, %s67
    %s82 = sphi 0, %s68
    %s88 = sphi 0, %s90
    %s91 = sphi 0, %s88
    %s92 = sphi 0, %s91
    %s108 = sphi 0, %s92
    %s114 = sphi 0, %s116
    %s117 = sphi 0, %s114
    %s118 = sphi 0, %s117
    %s134 = sphi 0, %s118
  $region4: #{basic_block_forward_nhwc.5} parent=0 // loop_header_branch
    %13 = sbr.rel (%p11) target = $region8
  $region5: #{basic_block_forward_nhwc.5} parent=0 // loop_body
    %s15 = ssub.s32 %s10, 1
    %s16 = ssub.s32 %s10, 2
    %s17 = sadd.s32 %s10, 1
    %s18 = ssub.s32 %s10, %s17
    %p19 = scmp.eq.s32.totalorder %s18, 0
    %s21 = sadd.s32 %s20, 1
    %s22 = scalar_select %p19, %s20, %s21
    %p25 = pneg %p19
    %p26 = scmp.eq.s32.totalorder %s10, 1
    %p27 = por %p25, %p26
    %p28 = scmp.ne.s32.totalorder %s20, %s23
    %p29 = scmp.eq.s32.totalorder %s10, 0
    %p30 = por %p28, %p29
    %p31 = scmp.ne.s32.totalorder %s20, %s23
    %p32 = scmp.eq.s32.totalorder %s15, 1
    %p33 = por %p31, %p32
    %p34 = scmp.ne.s32.totalorder %s23, %s24
    %p35 = scmp.eq.s32.totalorder %s15, 0
    %p36 = por %p34, %p35
    %p37 = scmp.ne.s32.totalorder %s23, %s24
    %p38 = scmp.eq.s32.totalorder %s16, 1
    %p39 = por %p37, %p38
    %p41 = scmp.ne.s32.totalorder %s24, %s40
    %p42 = scmp.eq.s32.totalorder %s16, 0
    %p43 = por %p41, %p42
    %s45 = sadd.s32 %s44, 1
    %p48 = scmp.eq.s32.totalorder %s10, 1
    %p49 = scmp.ne.s32.totalorder %s44, %s46
    %p50 = scmp.eq.s32.totalorder %s10, 0
    %p51 = por %p49, %p50
    %p52 = scmp.ne.s32.totalorder %s44, %s46
    %p53 = scmp.eq.s32.totalorder %s15, 1
    %p54 = por %p52, %p53
    %p55 = scmp.ne.s32.totalorder %s46, %s47
    %p56 = scmp.eq.s32.totalorder %s15, 0
    %p57 = por %p55, %p56
    %p58 = scmp.ne.s32.totalorder %s46, %s47
    %p59 = scmp.eq.s32.totalorder %s16, 1
    %p60 = por %p58, %p59
    %p62 = scmp.ne.s32.totalorder %s47, %s61
    %p63 = scmp.eq.s32.totalorder %s16, 0
    %p64 = por %p62, %p63
    %s66 = sadd.s32 %s65, 1
    %p69 = scmp.eq.s32.totalorder %s10, 1
    %p70 = scmp.ne.s32.totalorder %s65, %s67
    %p71 = scmp.eq.s32.totalorder %s10, 0
    %p72 = por %p70, %p71
    %p73 = scmp.ne.s32.totalorder %s65, %s67
    %p74 = scmp.eq.s32.totalorder %s15, 1
    %p75 = por %p73, %p74
    %p76 = scmp.ne.s32.totalorder %s67, %s68
    %p77 = scmp.eq.s32.totalorder %s15, 0
    %p78 = por %p76, %p77
    %p79 = scmp.ne.s32.totalorder %s67, %s68
    %p80 = scmp.eq.s32.totalorder %s16, 1
    %p81 = por %p79, %p80
    %p83 = scmp.ne.s32.totalorder %s68, %s82
    %p84 = scmp.eq.s32.totalorder %s16, 0
    %p85 = por %p83, %p84
    %s86 = ssub.s32 %s10, %s17
    %p87 = scmp.eq.s32.totalorder %s86, 0
    %s89 = sadd.s32 %s88, 1
    %s90 = scalar_select %p87, %s88, %s89
    %p93 = pneg %p87
    %p94 = scmp.eq.s32.totalorder %s10, 1
    %p95 = por %p93, %p94
    %p96 = scmp.ne.s32.totalorder %s88, %s91
    %p97 = scmp.eq.s32.totalorder %s10, 0
    %p98 = por %p96, %p97
    %p99 = scmp.ne.s32.totalorder %s88, %s91
    %p100 = scmp.eq.s32.totalorder %s15, 1
    %p101 = por %p99, %p100
    %p102 = scmp.ne.s32.totalorder %s91, %s92
    %p103 = scmp.eq.s32.totalorder %s15, 0
    %p104 = por %p102, %p103
    %p105 = scmp.ne.s32.totalorder %s91, %s92
    %p106 = scmp.eq.s32.totalorder %s16, 1
    %p107 = por %p105, %p106
    %p109 = scmp.ne.s32.totalorder %s92, %s108
    %p110 = scmp.eq.s32.totalorder %s16, 0
    %p111 = por %p109, %p110
    %s112 = ssub.s32 %s10, %s17
    %p113 = scmp.eq.s32.totalorder %s112, 0
    %s115 = sadd.s32 %s114, 1
    %s116 = scalar_select %p113, %s114, %s115
    %p119 = pneg %p113
    %p120 = scmp.eq.s32.totalorder %s10, 1
    %p121 = por %p119, %p120
    %p122 = scmp.ne.s32.totalorder %s114, %s117
    %p123 = scmp.eq.s32.totalorder %s10, 0
    %p124 = por %p122, %p123
    %p125 = scmp.ne.s32.totalorder %s114, %s117
    %p126 = scmp.eq.s32.totalorder %s15, 1
    %p127 = por %p125, %p126
    %p128 = scmp.ne.s32.totalorder %s117, %s118
    %p129 = scmp.eq.s32.totalorder %s15, 0
    %p130 = por %p128, %p129
    %p131 = scmp.ne.s32.totalorder %s117, %s118
    %p132 = scmp.eq.s32.totalorder %s16, 1
    %p133 = por %p131, %p132
    %p135 = scmp.ne.s32.totalorder %s118, %s134
    %p136 = scmp.eq.s32.totalorder %s16, 0
    %p137 = por %p135, %p136
    %p138 = scmp.le.s32.totalorder 1, %s10
    %p139 = scmp.lt.s32.totalorder %s10, 3
    %p140 = pnand %p138, %p139
    %p141 = pneg %p140
    // Predicated region
    $region9: #{basic_block_forward_nhwc.5} parent=5 // pred_check
      _
    $region10: #{basic_block_forward_nhwc.5} parent=5 // pred_check_branch
      %143 = sbr.rel (%p140) target = $region12
    $region11: #{basic_block_forward_nhwc.5} parent=5 // pred_region
      %s144 = ssub.s32 %s10, 1
      // Predicated region
      $region13: #{basic_block_forward_nhwc.5} parent=11 // pred_check
        %p145 = pneg %p57
      $region14: #{basic_block_forward_nhwc.5} parent=11 // pred_check_branch
        %147 = sbr.rel (%p145) target = $region16
      $region15: #{basic_block_forward_nhwc.5} parent=11 // pred_region
        _
      $region16: #{basic_block_forward_nhwc.5} parent=11 // pred_fallthru
        _
      // Predicated region
      $region17: #{basic_block_forward_nhwc.5} parent=11 // pred_check
        %p148 = pneg %p78
      $region18: #{basic_block_forward_nhwc.5} parent=11 // pred_check_branch
        %150 = sbr.rel (%p148) target = $region20
      $region19: #{basic_block_forward_nhwc.5} parent=11 // pred_region
        _
      $region20: #{basic_block_forward_nhwc.5} parent=11 // pred_fallthru
        _
    $region12: #{basic_block_forward_nhwc.5} parent=5 // pred_fallthru
      _
    %p151 = scmp.lt.s32.totalorder %s10, 2
    // Predicated region
    $region21: #{basic_block_forward_nhwc.5} parent=5 // pred_check
      %p152 = pneg %p151
    $region22: #{basic_block_forward_nhwc.5} parent=5 // pred_check_branch
      %154 = sbr.rel (%p152) target = $region24
    $region23: #{basic_block_forward_nhwc.5} parent=5 // pred_region
      // Predicated region
      $region25: #{basic_block_forward_nhwc.5} parent=23 // pred_check
        %p155 = pneg %p30
      $region26: #{basic_block_forward_nhwc.5} parent=23 // pred_check_branch
        %157 = sbr.rel (%p155) target = $region28
      $region27: #{basic_block_forward_nhwc.5} parent=23 // pred_region
        %p158 = scmp.lt.s32.totalorder %s10, 1
        %s159 = scalar_select %p158, %s10, 1
        %s160 = smul.addr %s159, 32
        %s161 = smul.addr %s160, 4
        %s162 = scalar_lea.vmem %s0, %s161
      $region28: #{basic_block_forward_nhwc.5} parent=23 // pred_fallthru
        _
      // Predicated region
      $region29: #{basic_block_forward_nhwc.5} parent=23 // pred_check
        %p163 = pneg %p98
      $region30: #{basic_block_forward_nhwc.5} parent=23 // pred_check_branch
        %165 = sbr.rel (%p163) target = $region32
      $region31: #{basic_block_forward_nhwc.5} parent=23 // pred_region
        %p166 = scmp.lt.s32.totalorder %s10, 1
        %s167 = scalar_select %p166, %s10, 1
        %s168 = smul.addr %s167, 32
        %s169 = smul.addr %s168, 8
        %s170 = scalar_lea.vmem %s3, %s169
      $region32: #{basic_block_forward_nhwc.5} parent=23 // pred_fallthru
        _
    $region24: #{basic_block_forward_nhwc.5} parent=5 // pred_fallthru
      _
    %p171 = scmp.le.s32.totalorder 1, %s10
    %p172 = scmp.lt.s32.totalorder %s10, 3
    %p173 = pnand %p171, %p172
    %p174 = pneg %p173
    // Predicated region
    $region33: #{basic_block_forward_nhwc.5} parent=5 // pred_check
      _
    $region34: #{basic_block_forward_nhwc.5} parent=5 // pred_check_branch
      %176 = sbr.rel (%p173) target = $region36
    $region35: #{basic_block_forward_nhwc.5} parent=5 // pred_region
      %s177 = ssub.s32 %s10, 1
      %p178 = scmp.lt.s32.totalorder %s15, 1
      %s179 = scalar_select %p178, %s15, 1
      %s180 = smul.addr %s179, 32
      %s181 = smul.addr %s180, 4
      %s182 = scalar_lea.vmem %s0, %s181
      %p183 = pneg %p36
      %p184 = pneg %p33
      %p185 = pneg %p57
      %p186 = pneg %p54
      %p187 = pneg %p78
      %p188 = pneg %p75
      %p189 = scmp.lt.s32.totalorder %s15, 1
      %s190 = scalar_select %p189, %s15, 1
      %s191 = smul.addr %s190, 32
      %s192 = smul.addr %s191, 8
      %s193 = scalar_lea.vmem %s3, %s192
      %p194 = pneg %p104
      %p195 = pneg %p101
      %p196 = pneg %p130
      %p197 = pneg %p127
      %p198 = scmp.lt.s32.totalorder %s15, 1
      %s199 = scalar_select %p198, %s15, 1
      %s200 = smul.addr %s199, 32
      %s201 = smul.addr %s200, 8
      %s202 = scalar_lea.vmem %s4, %s201
      %p203 = scmp.lt.s32.totalorder %s15, 1
      %s204 = scalar_select %p203, %s15, 1
      %s205 = smul.addr %s204, 32
      %s206 = smul.addr %s205, 4
      %s207 = scalar_lea.vmem %s0, %s206
      %p208 = scmp.lt.s32.totalorder %s15, 1
      %s209 = scalar_select %p208, %s15, 1
      %s210 = smul.addr %s209, 32
      %s211 = smul.addr %s210, 8
      %s212 = scalar_lea.vmem %s3, %s211
      %p213 = scmp.lt.s32.totalorder %s15, 1
      %s214 = scalar_select %p213, %s15, 1
      %s215 = smul.addr %s214, 32
      %s216 = smul.addr %s215, 8
      %s217 = scalar_lea.vmem %s4, %s216
      %v218 = vld [vmem:[%s1] sm:$0x1]
      %v219 = vld [vmem:[%s2] sm:$0x1]
      %v220 = vld [vmem:[%s207] sm:$0xf]
      %v221 = vld [vmem:[%s207 + $0x4] sm:$0xf]
      %v222 = vld [vmem:[%s207 + $0x8] sm:$0xf]
      %v223 = vld [vmem:[%s207 + $0xc] sm:$0xf]
      %v224 = vld [vmem:[%s207 + $0x10] sm:$0xf]
      %v225 = vld [vmem:[%s207 + $0x14] sm:$0xf]
      %v226 = vld [vmem:[%s207 + $0x18] sm:$0xf]
      %v227 = vld [vmem:[%s207 + $0x1c] sm:$0xf]
      %v228 = vld [vmem:[%s207 + $0x20] sm:$0xf]
      %v229 = vld [vmem:[%s207 + $0x24] sm:$0xf]
      %v230 = vld [vmem:[%s207 + $0x28] sm:$0xf]
      %v231 = vld [vmem:[%s207 + $0x2c] sm:$0xf]
      %v232 = vld [vmem:[%s207 + $0x30] sm:$0xf]
      %v233 = vld [vmem:[%s207 + $0x34] sm:$0xf]
      %v234 = vld [vmem:[%s207 + $0x38] sm:$0xf]
      %v235 = vld [vmem:[%s207 + $0x3c] sm:$0xf]
      %v236 = vld [vmem:[%s207 + $0x40] sm:$0xf]
      %v237 = vld [vmem:[%s207 + $0x44] sm:$0xf]
      %v238 = vld [vmem:[%s207 + $0x48] sm:$0xf]
      %v239 = vld [vmem:[%s207 + $0x4c] sm:$0xf]
      %v240 = vld [vmem:[%s207 + $0x50] sm:$0xf]
      %v241 = vld [vmem:[%s207 + $0x54] sm:$0xf]
      %v242 = vld [vmem:[%s207 + $0x58] sm:$0xf]
      %v243 = vld [vmem:[%s207 + $0x5c] sm:$0xf]
      %v244 = vld [vmem:[%s207 + $0x60] sm:$0xf]
      %v245 = vld [vmem:[%s207 + $0x64] sm:$0xf]
      %v246 = vld [vmem:[%s207 + $0x68] sm:$0xf]
      %v247 = vld [vmem:[%s207 + $0x6c] sm:$0xf]
      %v248 = vld [vmem:[%s207 + $0x70] sm:$0xf]
      %v249 = vld [vmem:[%s207 + $0x74] sm:$0xf]
      %v250 = vld [vmem:[%s207 + $0x78] sm:$0xf]
      %v251 = vld [vmem:[%s207 + $0x7c] sm:$0xf]
      %v252 = vunpack.c.l.bf16 %v220
      %v253 = vunpack.c.l.bf16 %v221
      %v254 = vunpack.c.l.bf16 %v222
      %v255 = vunpack.c.l.bf16 %v223
      %v256 = vunpack.c.l.bf16 %v224
      %v257 = vunpack.c.l.bf16 %v225
      %v258 = vunpack.c.l.bf16 %v226
      %v259 = vunpack.c.l.bf16 %v227
      %v260 = vunpack.c.l.bf16 %v228
      %v261 = vunpack.c.l.bf16 %v229
      %v262 = vunpack.c.l.bf16 %v230
      %v263 = vunpack.c.l.bf16 %v231
      %v264 = vunpack.c.l.bf16 %v232
      %v265 = vunpack.c.l.bf16 %v233
      %v266 = vunpack.c.l.bf16 %v234
      %v267 = vunpack.c.l.bf16 %v235
      %v268 = vunpack.c.l.bf16 %v236
      %v269 = vunpack.c.l.bf16 %v237
      %v270 = vunpack.c.l.bf16 %v238
      %v271 = vunpack.c.l.bf16 %v239
      %v272 = vunpack.c.l.bf16 %v240
      %v273 = vunpack.c.l.bf16 %v241
      %v274 = vunpack.c.l.bf16 %v242
      %v275 = vunpack.c.l.bf16 %v243
      %v276 = vunpack.c.l.bf16 %v244
      %v277 = vunpack.c.l.bf16 %v245
      %v278 = vunpack.c.l.bf16 %v246
      %v279 = vunpack.c.l.bf16 %v247
      %v280 = vunpack.c.l.bf16 %v248
      %v281 = vunpack.c.l.bf16 %v249
      %v282 = vunpack.c.l.bf16 %v250
      %v283 = vunpack.c.l.bf16 %v251
      %v285 = vlaneseq
      %v286 = vshrl.u32 %v285, 7
      %v287 = vsub.s32 0, %v286
      %v288 = vrot.slane %v218, %v287
      %v290 = vmul.f32 %v252, %v288
      %v291 = vmul.f32 %v253, %v288
      %v292 = vmul.f32 %v254, %v288
      %v293 = vmul.f32 %v255, %v288
      %v294 = vmul.f32 %v256, %v288
      %v295 = vmul.f32 %v257, %v288
      %v296 = vmul.f32 %v258, %v288
      %v297 = vmul.f32 %v259, %v288
      %v298 = vmul.f32 %v260, %v288
      %v299 = vmul.f32 %v261, %v288
      %v300 = vmul.f32 %v262, %v288
      %v301 = vmul.f32 %v263, %v288
      %v302 = vmul.f32 %v264, %v288
      %v303 = vmul.f32 %v265, %v288
      %v304 = vmul.f32 %v266, %v288
      %v305 = vmul.f32 %v267, %v288
      %v306 = vmul.f32 %v268, %v288
      %v307 = vmul.f32 %v269, %v288
      %v308 = vmul.f32 %v270, %v288
      %v309 = vmul.f32 %v271, %v288
      %v310 = vmul.f32 %v272, %v288
      %v311 = vmul.f32 %v273, %v288
      %v312 = vmul.f32 %v274, %v288
      %v313 = vmul.f32 %v275, %v288
      %v314 = vmul.f32 %v276, %v288
      %v315 = vmul.f32 %v277, %v288
      %v316 = vmul.f32 %v278, %v288
      %v317 = vmul.f32 %v279, %v288
      %v318 = vmul.f32 %v280, %v288
      %v319 = vmul.f32 %v281, %v288
      %v320 = vmul.f32 %v282, %v288
      %v321 = vmul.f32 %v283, %v288
      %v323 = vlaneseq
      %v324 = vshrl.u32 %v323, 7
      %v325 = vsub.s32 0, %v324
      %v326 = vrot.slane %v219, %v325
      %v328 = vadd.f32 %v290, %v326
      %v329 = vadd.f32 %v291, %v326
      %v330 = vadd.f32 %v292, %v326
      %v331 = vadd.f32 %v293, %v326
      %v332 = vadd.f32 %v294, %v326
      %v333 = vadd.f32 %v295, %v326
      %v334 = vadd.f32 %v296, %v326
      %v335 = vadd.f32 %v297, %v326
      %v336 = vadd.f32 %v298, %v326
      %v337 = vadd.f32 %v299, %v326
      %v338 = vadd.f32 %v300, %v326
      %v339 = vadd.f32 %v301, %v326
      %v340 = vadd.f32 %v302, %v326
      %v341 = vadd.f32 %v303, %v326
      %v342 = vadd.f32 %v304, %v326
      %v343 = vadd.f32 %v305, %v326
      %v344 = vadd.f32 %v306, %v326
      %v345 = vadd.f32 %v307, %v326
      %v346 = vadd.f32 %v308, %v326
      %v347 = vadd.f32 %v309, %v326
      %v348 = vadd.f32 %v310, %v326
      %v349 = vadd.f32 %v311, %v326
      %v350 = vadd.f32 %v312, %v326
      %v351 = vadd.f32 %v313, %v326
      %v352 = vadd.f32 %v314, %v326
      %v353 = vadd.f32 %v315, %v326
      %v354 = vadd.f32 %v316, %v326
      %v355 = vadd.f32 %v317, %v326
      %v356 = vadd.f32 %v318, %v326
      %v357 = vadd.f32 %v319, %v326
      %v358 = vadd.f32 %v320, %v326
      %v359 = vadd.f32 %v321, %v326
      %v360 = vld [vmem:[%s212] sm:$0xff]
      %v361 = vld [vmem:[%s212 + $0x8] sm:$0xff]
      %v362 = vld [vmem:[%s212 + $0x10] sm:$0xff]
      %v363 = vld [vmem:[%s212 + $0x18] sm:$0xff]
      %v364 = vld [vmem:[%s212 + $0x20] sm:$0xff]
      %v365 = vld [vmem:[%s212 + $0x28] sm:$0xff]
      %v366 = vld [vmem:[%s212 + $0x30] sm:$0xff]
      %v367 = vld [vmem:[%s212 + $0x38] sm:$0xff]
      %v368 = vld [vmem:[%s212 + $0x40] sm:$0xff]
      %v369 = vld [vmem:[%s212 + $0x48] sm:$0xff]
      %v370 = vld [vmem:[%s212 + $0x50] sm:$0xff]
      %v371 = vld [vmem:[%s212 + $0x58] sm:$0xff]
      %v372 = vld [vmem:[%s212 + $0x60] sm:$0xff]
      %v373 = vld [vmem:[%s212 + $0x68] sm:$0xff]
      %v374 = vld [vmem:[%s212 + $0x70] sm:$0xff]
      %v375 = vld [vmem:[%s212 + $0x78] sm:$0xff]
      %v376 = vld [vmem:[%s212 + $0x80] sm:$0xff]
      %v377 = vld [vmem:[%s212 + $0x88] sm:$0xff]
      %v378 = vld [vmem:[%s212 + $0x90] sm:$0xff]
      %v379 = vld [vmem:[%s212 + $0x98] sm:$0xff]
      %v380 = vld [vmem:[%s212 + $0xa0] sm:$0xff]
      %v381 = vld [vmem:[%s212 + $0xa8] sm:$0xff]
      %v382 = vld [vmem:[%s212 + $0xb0] sm:$0xff]
      %v383 = vld [vmem:[%s212 + $0xb8] sm:$0xff]
      %v384 = vld [vmem:[%s212 + $0xc0] sm:$0xff]
      %v385 = vld [vmem:[%s212 + $0xc8] sm:$0xff]
      %v386 = vld [vmem:[%s212 + $0xd0] sm:$0xff]
      %v387 = vld [vmem:[%s212 + $0xd8] sm:$0xff]
      %v388 = vld [vmem:[%s212 + $0xe0] sm:$0xff]
      %v389 = vld [vmem:[%s212 + $0xe8] sm:$0xff]
      %v390 = vld [vmem:[%s212 + $0xf0] sm:$0xff]
      %v391 = vld [vmem:[%s212 + $0xf8] sm:$0xff]
      %v392 = vadd.f32 %v328, %v360
      %v393 = vadd.f32 %v329, %v361
      %v394 = vadd.f32 %v330, %v362
      %v395 = vadd.f32 %v331, %v363
      %v396 = vadd.f32 %v332, %v364
      %v397 = vadd.f32 %v333, %v365
      %v398 = vadd.f32 %v334, %v366
      %v399 = vadd.f32 %v335, %v367
      %v400 = vadd.f32 %v336, %v368
      %v401 = vadd.f32 %v337, %v369
      %v402 = vadd.f32 %v338, %v370
      %v403 = vadd.f32 %v339, %v371
      %v404 = vadd.f32 %v340, %v372
      %v405 = vadd.f32 %v341, %v373
      %v406 = vadd.f32 %v342, %v374
      %v407 = vadd.f32 %v343, %v375
      %v408 = vadd.f32 %v344, %v376
      %v409 = vadd.f32 %v345, %v377
      %v410 = vadd.f32 %v346, %v378
      %v411 = vadd.f32 %v347, %v379
      %v412 = vadd.f32 %v348, %v380
      %v413 = vadd.f32 %v349, %v381
      %v414 = vadd.f32 %v350, %v382
      %v415 = vadd.f32 %v351, %v383
      %v416 = vadd.f32 %v352, %v384
      %v417 = vadd.f32 %v353, %v385
      %v418 = vadd.f32 %v354, %v386
      %v419 = vadd.f32 %v355, %v387
      %v420 = vadd.f32 %v356, %v388
      %v421 = vadd.f32 %v357, %v389
      %v422 = vadd.f32 %v358, %v390
      %v423 = vadd.f32 %v359, %v391
      %v424 = vmax.f32 %v392, 0.0
      %v425 = vmax.f32 %v393, 0.0
      %v426 = vmax.f32 %v394, 0.0
      %v427 = vmax.f32 %v395, 0.0
      %v428 = vmax.f32 %v396, 0.0
      %v429 = vmax.f32 %v397, 0.0
      %v430 = vmax.f32 %v398, 0.0
      %v431 = vmax.f32 %v399, 0.0
      %v432 = vmax.f32 %v400, 0.0
      %v433 = vmax.f32 %v401, 0.0
      %v434 = vmax.f32 %v402, 0.0
      %v435 = vmax.f32 %v403, 0.0
      %v436 = vmax.f32 %v404, 0.0
      %v437 = vmax.f32 %v405, 0.0
      %v438 = vmax.f32 %v406, 0.0
      %v439 = vmax.f32 %v407, 0.0
      %v440 = vmax.f32 %v408, 0.0
      %v441 = vmax.f32 %v409, 0.0
      %v442 = vmax.f32 %v410, 0.0
      %v443 = vmax.f32 %v411, 0.0
      %v444 = vmax.f32 %v412, 0.0
      %v445 = vmax.f32 %v413, 0.0
      %v446 = vmax.f32 %v414, 0.0
      %v447 = vmax.f32 %v415, 0.0
      %v448 = vmax.f32 %v416, 0.0
      %v449 = vmax.f32 %v417, 0.0
      %v450 = vmax.f32 %v418, 0.0
      %v451 = vmax.f32 %v419, 0.0
      %v452 = vmax.f32 %v420, 0.0
      %v453 = vmax.f32 %v421, 0.0
      %v454 = vmax.f32 %v422, 0.0
      %v455 = vmax.f32 %v423, 0.0
      %vm456 = vcmask 31744
      %457 = vst.msk [vmem:[%s217] sm:$0xff] %vm456, %v424
      %458 = vst.msk [vmem:[%s217 + $0x8] sm:$0xff] %vm456, %v425
      %459 = vst.msk [vmem:[%s217 + $0x10] sm:$0xff] %vm456, %v426
      %460 = vst.msk [vmem:[%s217 + $0x18] sm:$0xff] %vm456, %v427
      %461 = vst.msk [vmem:[%s217 + $0x20] sm:$0xff] %vm456, %v428
      %462 = vst.msk [vmem:[%s217 + $0x28] sm:$0xff] %vm456, %v429
      %463 = vst.msk [vmem:[%s217 + $0x30] sm:$0xff] %vm456, %v430
      %464 = vst.msk [vmem:[%s217 + $0x38] sm:$0xff] %vm456, %v431
      %465 = vst.msk [vmem:[%s217 + $0x40] sm:$0xff] %vm456, %v432
      %466 = vst.msk [vmem:[%s217 + $0x48] sm:$0xff] %vm456, %v433
      %467 = vst.msk [vmem:[%s217 + $0x50] sm:$0xff] %vm456, %v434
      %468 = vst.msk [vmem:[%s217 + $0x58] sm:$0xff] %vm456, %v435
      %469 = vst.msk [vmem:[%s217 + $0x60] sm:$0xff] %vm456, %v436
      %470 = vst.msk [vmem:[%s217 + $0x68] sm:$0xff] %vm456, %v437
      %471 = vst.msk [vmem:[%s217 + $0x70] sm:$0xff] %vm456, %v438
      %472 = vst.msk [vmem:[%s217 + $0x78] sm:$0xff] %vm456, %v439
      %473 = vst.msk [vmem:[%s217 + $0x80] sm:$0xff] %vm456, %v440
      %474 = vst.msk [vmem:[%s217 + $0x88] sm:$0xff] %vm456, %v441
      %475 = vst.msk [vmem:[%s217 + $0x90] sm:$0xff] %vm456, %v442
      %476 = vst.msk [vmem:[%s217 + $0x98] sm:$0xff] %vm456, %v443
      %477 = vst.msk [vmem:[%s217 + $0xa0] sm:$0xff] %vm456, %v444
      %478 = vst.msk [vmem:[%s217 + $0xa8] sm:$0xff] %vm456, %v445
      %479 = vst.msk [vmem:[%s217 + $0xb0] sm:$0xff] %vm456, %v446
      %480 = vst.msk [vmem:[%s217 + $0xb8] sm:$0xff] %vm456, %v447
      %481 = vst.msk [vmem:[%s217 + $0xc0] sm:$0xff] %vm456, %v448
      %482 = vst.msk [vmem:[%s217 + $0xc8] sm:$0xff] %vm456, %v449
      %483 = vst.msk [vmem:[%s217 + $0xd0] sm:$0xff] %vm456, %v450
      %484 = vst.msk [vmem:[%s217 + $0xd8] sm:$0xff] %vm456, %v451
      %485 = vst.msk [vmem:[%s217 + $0xe0] sm:$0xff] %vm456, %v452
      %486 = vst.msk [vmem:[%s217 + $0xe8] sm:$0xff] %vm456, %v453
      %487 = vst.msk [vmem:[%s217 + $0xf0] sm:$0xff] %vm456, %v454
      %488 = vst.msk [vmem:[%s217 + $0xf8] sm:$0xff] %vm456, %v455
      %p489 = scmp.lt.s32.totalorder %s15, 1
      %s490 = scalar_select %p489, %s15, 1
      %s491 = smul.addr %s490, 32
      %s492 = smul.addr %s491, 8
      %s493 = scalar_lea.vmem %s4, %s492
      // Predicated region
      $region37: #{basic_block_forward_nhwc.5} parent=35 // pred_check
        %p494 = pneg %p127
      $region38: #{basic_block_forward_nhwc.5} parent=35 // pred_check_branch
        %496 = sbr.rel (%p494) target = $region40
      $region39: #{basic_block_forward_nhwc.5} parent=35 // pred_region
        _
      $region40: #{basic_block_forward_nhwc.5} parent=35 // pred_fallthru
        _
    $region36: #{basic_block_forward_nhwc.5} parent=5 // pred_fallthru
      _
    %p497 = scmp.le.s32.totalorder 2, %s10
    // Predicated region
    $region41: #{basic_block_forward_nhwc.5} parent=5 // pred_check
      %p498 = pneg %p497
    $region42: #{basic_block_forward_nhwc.5} parent=5 // pred_check_branch
      %500 = sbr.rel (%p498) target = $region44
    $region43: #{basic_block_forward_nhwc.5} parent=5 // pred_region
      %s501 = ssub.s32 %s10, 2
      // Predicated region
      $region45: #{basic_block_forward_nhwc.5} parent=43 // pred_check
        %p502 = pneg %p133
      $region46: #{basic_block_forward_nhwc.5} parent=43 // pred_check_branch
        %504 = sbr.rel (%p502) target = $region48
      $region47: #{basic_block_forward_nhwc.5} parent=43 // pred_region
        %p505 = scmp.lt.s32.totalorder %s16, 1
        %s506 = scalar_select %p505, %s16, 1
        %s507 = smul.addr %s506, 32
        %s508 = smul.addr %s507, 8
        %s509 = scalar_lea.vmem %s4, %s508
      $region48: #{basic_block_forward_nhwc.5} parent=43 // pred_fallthru
        _
    $region44: #{basic_block_forward_nhwc.5} parent=5 // pred_fallthru
      _
  $region6: #{basic_block_forward_nhwc.5} parent=0 // loop_footer
    %s14 = sadd.s32 1, %s10
  $region7: #{basic_block_forward_nhwc.5} parent=0 // loop_footer_branch
    %9 = sbr.rel target = $region3
  $region8: #{basic_block_forward_nhwc.5} parent=0 // loop_exit
    _

// kernel: basic_block_forward_nhwc.4
$region0: #{basic_block_forward_nhwc.4}
  #allocation0 [shape = 'u32[]', space=smem, size = 0x4, offset = 0x4, fixed_abs, tag = 'smem constant byte address 0x4 - core index']
  #allocation1 [shape = 'u32[144,128]{1,0:T(1,128)}', space=vmem, size = 0x12000, scoped, tag = 'internal scratch']
  #allocation2 [shape = 'f32[1,18,25,4]{3,2,1,0:T(8,128)}', space=vmem, size = 0x48000, scoped, tag = 'scratch operand']
  %s0 = inlined_call_operand.vmem [shape: bf16[2,16,16,4], index: 0, kind: input, shape index: {}]
  %s1 = inlined_call_operand.vmem [shape: f32[1,4], index: 1, kind: input, shape index: {}]
  %s2 = inlined_call_operand.vmem [shape: f32[1,4], index: 2, kind: input, shape index: {}]
  %s3 = inlined_call_operand.vmem [shape: bf16[36,4], index: 3, kind: input, shape index: {}]
  %s4 = inlined_call_operand.vmem [shape: bf16[2,16,16,4], index: 4, kind: output, shape index: {0}]
  %s5 = inlined_call_operand.vmem [shape: f32[2,2,4], index: 5, kind: output, shape index: {1}]
  %6 = xla_tuple %s4, %s5
  %s7 = sld [smem:[#allocation0]]
  $region57: #{basic_block_forward_nhwc.4} parent=0
    _
  %s9 = ssub.s32 1, %s7
  %s10 = scalar_select 0, %s9, %s7
  loop: start=0, step=1, limit=4
  $region2: #{basic_block_forward_nhwc.4} parent=0 // loop_pre_header
    _
  $region3: #{basic_block_forward_nhwc.4} parent=0 // loop_header
    %s12 = sphi 0, %s16
    %p13 = scmp.ge.s32.totalorder %s12, 4
    %s22 = sphi 0, %s24
    %s25 = sphi 0, %s22
    %s26 = sphi 0, %s25
    %s42 = sphi 0, %s26
    %s46 = sphi 0, %s46
    %s48 = sphi 0, %s46
    %s49 = sphi 0, %s48
    %s63 = sphi 0, %s49
    %s67 = sphi 0, %s67
    %s69 = sphi 0, %s67
    %s70 = sphi 0, %s69
    %s84 = sphi 0, %s70
    %s88 = sphi 0, %s88
    %s90 = sphi 0, %s88
    %s91 = sphi 0, %s90
    %s105 = sphi 0, %s91
    %s111 = sphi 0, %s113
    %s114 = sphi 0, %s111
    %s115 = sphi 0, %s114
    %s131 = sphi 0, %s115
    %s137 = sphi 0, %s139
    %s140 = sphi 0, %s137
    %s141 = sphi 0, %s140
    %s157 = sphi 0, %s141
  $region4: #{basic_block_forward_nhwc.4} parent=0 // loop_header_branch
    %15 = sbr.rel (%p13) target = $region8
  $region5: #{basic_block_forward_nhwc.4} parent=0 // loop_body
    %s17 = ssub.s32 %s12, 1
    %s18 = ssub.s32 %s12, 2
    %s19 = sadd.s32 %s12, 1
    %s20 = ssub.s32 %s12, %s19
    %p21 = scmp.eq.s32.totalorder %s20, 0
    %s23 = sadd.s32 %s22, 1
    %s24 = scalar_select %p21, %s22, %s23
    %p27 = pneg %p21
    %p28 = scmp.eq.s32.totalorder %s12, 1
    %p29 = por %p27, %p28
    %p30 = scmp.ne.s32.totalorder %s22, %s25
    %p31 = scmp.eq.s32.totalorder %s12, 0
    %p32 = por %p30, %p31
    %p33 = scmp.ne.s32.totalorder %s22, %s25
    %p34 = scmp.eq.s32.totalorder %s17, 1
    %p35 = por %p33, %p34
    %p36 = scmp.ne.s32.totalorder %s25, %s26
    %p37 = scmp.eq.s32.totalorder %s17, 0
    %p38 = por %p36, %p37
    %p39 = scmp.ne.s32.totalorder %s25, %s26
    %p40 = scmp.eq.s32.totalorder %s18, 1
    %p41 = por %p39, %p40
    %p43 = scmp.ne.s32.totalorder %s26, %s42
    %p44 = scmp.eq.s32.totalorder %s18, 0
    %p45 = por %p43, %p44
    %s47 = sadd.s32 %s46, 1
    %p50 = scmp.eq.s32.totalorder %s12, 1
    %p51 = scmp.ne.s32.totalorder %s46, %s48
    %p52 = scmp.eq.s32.totalorder %s12, 0
    %p53 = por %p51, %p52
    %p54 = scmp.ne.s32.totalorder %s46, %s48
    %p55 = scmp.eq.s32.totalorder %s17, 1
    %p56 = por %p54, %p55
    %p57 = scmp.ne.s32.totalorder %s48, %s49
    %p58 = scmp.eq.s32.totalorder %s17, 0
    %p59 = por %p57, %p58
    %p60 = scmp.ne.s32.totalorder %s48, %s49
    %p61 = scmp.eq.s32.totalorder %s18, 1
    %p62 = por %p60, %p61
    %p64 = scmp.ne.s32.totalorder %s49, %s63
    %p65 = scmp.eq.s32.totalorder %s18, 0
    %p66 = por %p64, %p65
    %s68 = sadd.s32 %s67, 1
    %p71 = scmp.eq.s32.totalorder %s12, 1
    %p72 = scmp.ne.s32.totalorder %s67, %s69
    %p73 = scmp.eq.s32.totalorder %s12, 0
    %p74 = por %p72, %p73
    %p75 = scmp.ne.s32.totalorder %s67, %s69
    %p76 = scmp.eq.s32.totalorder %s17, 1
    %p77 = por %p75, %p76
    %p78 = scmp.ne.s32.totalorder %s69, %s70
    %p79 = scmp.eq.s32.totalorder %s17, 0
    %p80 = por %p78, %p79
    %p81 = scmp.ne.s32.totalorder %s69, %s70
    %p82 = scmp.eq.s32.totalorder %s18, 1
    %p83 = por %p81, %p82
    %p85 = scmp.ne.s32.totalorder %s70, %s84
    %p86 = scmp.eq.s32.totalorder %s18, 0
    %p87 = por %p85, %p86
    %s89 = sadd.s32 %s88, 1
    %p92 = scmp.eq.s32.totalorder %s12, 1
    %p93 = scmp.ne.s32.totalorder %s88, %s90
    %p94 = scmp.eq.s32.totalorder %s12, 0
    %p95 = por %p93, %p94
    %p96 = scmp.ne.s32.totalorder %s88, %s90
    %p97 = scmp.eq.s32.totalorder %s17, 1
    %p98 = por %p96, %p97
    %p99 = scmp.ne.s32.totalorder %s90, %s91
    %p100 = scmp.eq.s32.totalorder %s17, 0
    %p101 = por %p99, %p100
    %p102 = scmp.ne.s32.totalorder %s90, %s91
    %p103 = scmp.eq.s32.totalorder %s18, 1
    %p104 = por %p102, %p103
    %p106 = scmp.ne.s32.totalorder %s91, %s105
    %p107 = scmp.eq.s32.totalorder %s18, 0
    %p108 = por %p106, %p107
    %s109 = ssub.s32 %s12, %s19
    %p110 = scmp.eq.s32.totalorder %s109, 0
    %s112 = sadd.s32 %s111, 1
    %s113 = scalar_select %p110, %s111, %s112
    %p116 = pneg %p110
    %p117 = scmp.eq.s32.totalorder %s12, 1
    %p118 = por %p116, %p117
    %p119 = scmp.ne.s32.totalorder %s111, %s114
    %p120 = scmp.eq.s32.totalorder %s12, 0
    %p121 = por %p119, %p120
    %p122 = scmp.ne.s32.totalorder %s111, %s114
    %p123 = scmp.eq.s32.totalorder %s17, 1
    %p124 = por %p122, %p123
    %p125 = scmp.ne.s32.totalorder %s114, %s115
    %p126 = scmp.eq.s32.totalorder %s17, 0
    %p127 = por %p125, %p126
    %p128 = scmp.ne.s32.totalorder %s114, %s115
    %p129 = scmp.eq.s32.totalorder %s18, 1
    %p130 = por %p128, %p129
    %p132 = scmp.ne.s32.totalorder %s115, %s131
    %p133 = scmp.eq.s32.totalorder %s18, 0
    %p134 = por %p132, %p133
    %s135 = ssub.s32 %s12, %s19
    %p136 = scmp.eq.s32.totalorder %s135, 0
    %s138 = sadd.s32 %s137, 1
    %s139 = scalar_select %p136, %s137, %s138
    %p142 = pneg %p136
    %p143 = scmp.eq.s32.totalorder %s12, 1
    %p144 = por %p142, %p143
    %p145 = scmp.ne.s32.totalorder %s137, %s140
    %p146 = scmp.eq.s32.totalorder %s12, 0
    %p147 = por %p145, %p146
    %p148 = scmp.ne.s32.totalorder %s137, %s140
    %p149 = scmp.eq.s32.totalorder %s17, 1
    %p150 = por %p148, %p149
    %p151 = scmp.ne.s32.totalorder %s140, %s141
    %p152 = scmp.eq.s32.totalorder %s17, 0
    %p153 = por %p151, %p152
    %p154 = scmp.ne.s32.totalorder %s140, %s141
    %p155 = scmp.eq.s32.totalorder %s18, 1
    %p156 = por %p154, %p155
    %p158 = scmp.ne.s32.totalorder %s141, %s157
    %p159 = scmp.eq.s32.totalorder %s18, 0
    %p160 = por %p158, %p159
    %p161 = scmp.le.s32.totalorder 1, %s12
    %p162 = scmp.lt.s32.totalorder %s12, 3
    %p163 = pnand %p161, %p162
    %p164 = pneg %p163
    // Predicated region
    $region9: #{basic_block_forward_nhwc.4} parent=5 // pred_check
      _
    $region10: #{basic_block_forward_nhwc.4} parent=5 // pred_check_branch
      %166 = sbr.rel (%p163) target = $region12
    $region11: #{basic_block_forward_nhwc.4} parent=5 // pred_region
      %s167 = ssub.s32 %s12, 1
      // Predicated region
      $region13: #{basic_block_forward_nhwc.4} parent=11 // pred_check
        %p168 = pneg %p59
      $region14: #{basic_block_forward_nhwc.4} parent=11 // pred_check_branch
        %170 = sbr.rel (%p168) target = $region16
      $region15: #{basic_block_forward_nhwc.4} parent=11 // pred_region
        _
      $region16: #{basic_block_forward_nhwc.4} parent=11 // pred_fallthru
        _
      // Predicated region
      $region17: #{basic_block_forward_nhwc.4} parent=11 // pred_check
        %p171 = pneg %p80
      $region18: #{basic_block_forward_nhwc.4} parent=11 // pred_check_branch
        %173 = sbr.rel (%p171) target = $region20
      $region19: #{basic_block_forward_nhwc.4} parent=11 // pred_region
        _
      $region20: #{basic_block_forward_nhwc.4} parent=11 // pred_fallthru
        _
      // Predicated region
      $region21: #{basic_block_forward_nhwc.4} parent=11 // pred_check
        %p174 = pneg %p101
      $region22: #{basic_block_forward_nhwc.4} parent=11 // pred_check_branch
        %176 = sbr.rel (%p174) target = $region24
      $region23: #{basic_block_forward_nhwc.4} parent=11 // pred_region
        _
      $region24: #{basic_block_forward_nhwc.4} parent=11 // pred_fallthru
        _
    $region12: #{basic_block_forward_nhwc.4} parent=5 // pred_fallthru
      _
    %p177 = scmp.lt.s32.totalorder %s12, 2
    // Predicated region
    $region25: #{basic_block_forward_nhwc.4} parent=5 // pred_check
      %p178 = pneg %p177
    $region26: #{basic_block_forward_nhwc.4} parent=5 // pred_check_branch
      %180 = sbr.rel (%p178) target = $region28
    $region27: #{basic_block_forward_nhwc.4} parent=5 // pred_region
      // Predicated region
      $region29: #{basic_block_forward_nhwc.4} parent=27 // pred_check
        %p181 = pneg %p32
      $region30: #{basic_block_forward_nhwc.4} parent=27 // pred_check_branch
        %183 = sbr.rel (%p181) target = $region32
      $region31: #{basic_block_forward_nhwc.4} parent=27 // pred_region
        %p184 = scmp.lt.s32.totalorder %s12, 1
        %s185 = scalar_select %p184, %s12, 1
        %s186 = smul.addr %s185, 32
        %s187 = smul.addr %s186, 4
        %s188 = scalar_lea.vmem %s0, %s187
      $region32: #{basic_block_forward_nhwc.4} parent=27 // pred_fallthru
        _
    $region28: #{basic_block_forward_nhwc.4} parent=5 // pred_fallthru
      _
    %p189 = scmp.le.s32.totalorder 1, %s12
    %p190 = scmp.lt.s32.totalorder %s12, 3
    %p191 = pnand %p189, %p190
    %p192 = pneg %p191
    // Predicated region
    $region33: #{basic_block_forward_nhwc.4} parent=5 // pred_check
      _
    $region34: #{basic_block_forward_nhwc.4} parent=5 // pred_check_branch
      %194 = sbr.rel (%p191) target = $region36
    $region35: #{basic_block_forward_nhwc.4} parent=5 // pred_region
      %s195 = ssub.s32 %s12, 1
      %p196 = scmp.lt.s32.totalorder %s17, 1
      %s197 = scalar_select %p196, %s17, 1
      %s198 = smul.addr %s197, 32
      %s199 = smul.addr %s198, 4
      %s200 = scalar_lea.vmem %s0, %s199
      %p201 = pneg %p38
      %p202 = pneg %p35
      %p203 = pneg %p59
      %p204 = pneg %p56
      %p205 = pneg %p80
      %p206 = pneg %p77
      %p207 = pneg %p101
      %p208 = pneg %p98
      %p209 = pneg %p127
      %p210 = pneg %p124
      %p211 = scmp.lt.s32.totalorder %s17, 1
      %s212 = scalar_select %p211, %s17, 1
      %s213 = smul.addr %s212, 32
      %s214 = smul.addr %s213, 4
      %s215 = scalar_lea.vmem %s4, %s214
      %p216 = pneg %p153
      %p217 = pneg %p150
      %p218 = scmp.lt.s32.totalorder %s17, 1
      %s219 = scalar_select %p218, %s17, 1
      %s220 = smul.addr %s219, 2
      %s221 = scalar_lea.vmem %s5, %s220
      %p222 = scmp.lt.s32.totalorder %s17, 1
      %s223 = scalar_select %p222, %s17, 1
      %s224 = smul.addr %s223, 32
      %s225 = smul.addr %s224, 4
      %s226 = scalar_lea.vmem %s0, %s225
      %p227 = scmp.lt.s32.totalorder %s17, 1
      %s228 = scalar_select %p227, %s17, 1
      %s229 = smul.addr %s228, 32
      %s230 = smul.addr %s229, 4
      %s231 = scalar_lea.vmem %s4, %s230
      %p232 = scmp.lt.s32.totalorder %s17, 1
      %s233 = scalar_select %p232, %s17, 1
      %s234 = smul.addr %s233, 2
      %s235 = scalar_lea.vmem %s5, %s234
      %v237 = vld [vmem:[%s1] sm:$0x1]
      %v238 = vld [vmem:[%s2] sm:$0x1]
      %v239 = vld [vmem:[%s226] sm:$0xf]
      %v240 = vld [vmem:[%s226 + $0x4] sm:$0xf]
      %v241 = vld [vmem:[%s226 + $0x8] sm:$0xf]
      %v242 = vld [vmem:[%s226 + $0xc] sm:$0xf]
      %v243 = vld [vmem:[%s226 + $0x10] sm:$0xf]
      %v244 = vld [vmem:[%s226 + $0x14] sm:$0xf]
      %v245 = vld [vmem:[%s226 + $0x18] sm:$0xf]
      %v246 = vld [vmem:[%s226 + $0x1c] sm:$0xf]
      %v247 = vld [vmem:[%s226 + $0x20] sm:$0xf]
      %v248 = vld [vmem:[%s226 + $0x24] sm:$0xf]
      %v249 = vld [vmem:[%s226 + $0x28] sm:$0xf]
      %v250 = vld [vmem:[%s226 + $0x2c] sm:$0xf]
      %v251 = vld [vmem:[%s226 + $0x30] sm:$0xf]
      %v252 = vld [vmem:[%s226 + $0x34] sm:$0xf]
      %v253 = vld [vmem:[%s226 + $0x38] sm:$0xf]
      %v254 = vld [vmem:[%s226 + $0x3c] sm:$0xf]
      %v255 = vld [vmem:[%s226 + $0x40] sm:$0xf]
      %v256 = vld [vmem:[%s226 + $0x44] sm:$0xf]
      %v257 = vld [vmem:[%s226 + $0x48] sm:$0xf]
      %v258 = vld [vmem:[%s226 + $0x4c] sm:$0xf]
      %v259 = vld [vmem:[%s226 + $0x50] sm:$0xf]
      %v260 = vld [vmem:[%s226 + $0x54] sm:$0xf]
      %v261 = vld [vmem:[%s226 + $0x58] sm:$0xf]
      %v262 = vld [vmem:[%s226 + $0x5c] sm:$0xf]
      %v263 = vld [vmem:[%s226 + $0x60] sm:$0xf]
      %v264 = vld [vmem:[%s226 + $0x64] sm:$0xf]
      %v265 = vld [vmem:[%s226 + $0x68] sm:$0xf]
      %v266 = vld [vmem:[%s226 + $0x6c] sm:$0xf]
      %v267 = vld [vmem:[%s226 + $0x70] sm:$0xf]
      %v268 = vld [vmem:[%s226 + $0x74] sm:$0xf]
      %v269 = vld [vmem:[%s226 + $0x78] sm:$0xf]
      %v270 = vld [vmem:[%s226 + $0x7c] sm:$0xf]
      %v271 = vunpack.c.l.bf16 %v239
      %v272 = vunpack.c.l.bf16 %v240
      %v273 = vunpack.c.l.bf16 %v241
      %v274 = vunpack.c.l.bf16 %v242
      %v275 = vunpack.c.l.bf16 %v243
      %v276 = vunpack.c.l.bf16 %v244
      %v277 = vunpack.c.l.bf16 %v245
      %v278 = vunpack.c.l.bf16 %v246
      %v279 = vunpack.c.l.bf16 %v247
      %v280 = vunpack.c.l.bf16 %v248
      %v281 = vunpack.c.l.bf16 %v249
      %v282 = vunpack.c.l.bf16 %v250
      %v283 = vunpack.c.l.bf16 %v251
      %v284 = vunpack.c.l.bf16 %v252
      %v285 = vunpack.c.l.bf16 %v253
      %v286 = vunpack.c.l.bf16 %v254
      %v287 = vunpack.c.l.bf16 %v255
      %v288 = vunpack.c.l.bf16 %v256
      %v289 = vunpack.c.l.bf16 %v257
      %v290 = vunpack.c.l.bf16 %v258
      %v291 = vunpack.c.l.bf16 %v259
      %v292 = vunpack.c.l.bf16 %v260
      %v293 = vunpack.c.l.bf16 %v261
      %v294 = vunpack.c.l.bf16 %v262
      %v295 = vunpack.c.l.bf16 %v263
      %v296 = vunpack.c.l.bf16 %v264
      %v297 = vunpack.c.l.bf16 %v265
      %v298 = vunpack.c.l.bf16 %v266
      %v299 = vunpack.c.l.bf16 %v267
      %v300 = vunpack.c.l.bf16 %v268
      %v301 = vunpack.c.l.bf16 %v269
      %v302 = vunpack.c.l.bf16 %v270
      %v304 = vlaneseq
      %v305 = vshrl.u32 %v304, 7
      %v306 = vsub.s32 0, %v305
      %v307 = vrot.slane %v237, %v306
      %v309 = vmul.f32 %v271, %v307
      %v310 = vmul.f32 %v272, %v307
      %v311 = vmul.f32 %v273, %v307
      %v312 = vmul.f32 %v274, %v307
      %v313 = vmul.f32 %v275, %v307
      %v314 = vmul.f32 %v276, %v307
      %v315 = vmul.f32 %v277, %v307
      %v316 = vmul.f32 %v278, %v307
      %v317 = vmul.f32 %v279, %v307
      %v318 = vmul.f32 %v280, %v307
      %v319 = vmul.f32 %v281, %v307
      %v320 = vmul.f32 %v282, %v307
      %v321 = vmul.f32 %v283, %v307
      %v322 = vmul.f32 %v284, %v307
      %v323 = vmul.f32 %v285, %v307
      %v324 = vmul.f32 %v286, %v307
      %v325 = vmul.f32 %v287, %v307
      %v326 = vmul.f32 %v288, %v307
      %v327 = vmul.f32 %v289, %v307
      %v328 = vmul.f32 %v290, %v307
      %v329 = vmul.f32 %v291, %v307
      %v330 = vmul.f32 %v292, %v307
      %v331 = vmul.f32 %v293, %v307
      %v332 = vmul.f32 %v294, %v307
      %v333 = vmul.f32 %v295, %v307
      %v334 = vmul.f32 %v296, %v307
      %v335 = vmul.f32 %v297, %v307
      %v336 = vmul.f32 %v298, %v307
      %v337 = vmul.f32 %v299, %v307
      %v338 = vmul.f32 %v300, %v307
      %v339 = vmul.f32 %v301, %v307
      %v340 = vmul.f32 %v302, %v307
      %v342 = vlaneseq
      %v343 = vshrl.u32 %v342, 7
      %v344 = vsub.s32 0, %v343
      %v345 = vrot.slane %v238, %v344
      %v347 = vadd.f32 %v309, %v345
      %v348 = vadd.f32 %v310, %v345
      %v349 = vadd.f32 %v311, %v345
      %v350 = vadd.f32 %v312, %v345
      %v351 = vadd.f32 %v313, %v345
      %v352 = vadd.f32 %v314, %v345
      %v353 = vadd.f32 %v315, %v345
      %v354 = vadd.f32 %v316, %v345
      %v355 = vadd.f32 %v317, %v345
      %v356 = vadd.f32 %v318, %v345
      %v357 = vadd.f32 %v319, %v345
      %v358 = vadd.f32 %v320, %v345
      %v359 = vadd.f32 %v321, %v345
      %v360 = vadd.f32 %v322, %v345
      %v361 = vadd.f32 %v323, %v345
      %v362 = vadd.f32 %v324, %v345
      %v363 = vadd.f32 %v325, %v345
      %v364 = vadd.f32 %v326, %v345
      %v365 = vadd.f32 %v327, %v345
      %v366 = vadd.f32 %v328, %v345
      %v367 = vadd.f32 %v329, %v345
      %v368 = vadd.f32 %v330, %v345
      %v369 = vadd.f32 %v331, %v345
      %v370 = vadd.f32 %v332, %v345
      %v371 = vadd.f32 %v333, %v345
      %v372 = vadd.f32 %v334, %v345
      %v373 = vadd.f32 %v335, %v345
      %v374 = vadd.f32 %v336, %v345
      %v375 = vadd.f32 %v337, %v345
      %v376 = vadd.f32 %v338, %v345
      %v377 = vadd.f32 %v339, %v345
      %v378 = vadd.f32 %v340, %v345
      %v379 = vmax.f32 %v347, 0.0
      %v380 = vmax.f32 %v348, 0.0
      %v381 = vmax.f32 %v349, 0.0
      %v382 = vmax.f32 %v350, 0.0
      %v383 = vmax.f32 %v351, 0.0
      %v384 = vmax.f32 %v352, 0.0
      %v385 = vmax.f32 %v353, 0.0
      %v386 = vmax.f32 %v354, 0.0
      %v387 = vmax.f32 %v355, 0.0
      %v388 = vmax.f32 %v356, 0.0
      %v389 = vmax.f32 %v357, 0.0
      %v390 = vmax.f32 %v358, 0.0
      %v391 = vmax.f32 %v359, 0.0
      %v392 = vmax.f32 %v360, 0.0
      %v393 = vmax.f32 %v361, 0.0
      %v394 = vmax.f32 %v362, 0.0
      %v395 = vmax.f32 %v363, 0.0
      %v396 = vmax.f32 %v364, 0.0
      %v397 = vmax.f32 %v365, 0.0
      %v398 = vmax.f32 %v366, 0.0
      %v399 = vmax.f32 %v367, 0.0
      %v400 = vmax.f32 %v368, 0.0
      %v401 = vmax.f32 %v369, 0.0
      %v402 = vmax.f32 %v370, 0.0
      %v403 = vmax.f32 %v371, 0.0
      %v404 = vmax.f32 %v372, 0.0
      %v405 = vmax.f32 %v373, 0.0
      %v406 = vmax.f32 %v374, 0.0
      %v407 = vmax.f32 %v375, 0.0
      %v408 = vmax.f32 %v376, 0.0
      %v409 = vmax.f32 %v377, 0.0
      %v410 = vmax.f32 %v378, 0.0
      %vm411 = vcmask 31744
      %412 = vst.msk [vmem:[#allocation2] sm:$0xff] %vm411, 0.0
      %413 = vst.msk [vmem:[#allocation2 + $0x8] sm:$0xff] %vm411, 0.0
      %414 = vst.msk [vmem:[#allocation2 + $0x10] sm:$0xff] %vm411, 0.0
      %vm415 = vcmask 24576
      %416 = vst.msk [vmem:[#allocation2 + $0x18] sm:$0x1] %vm415, 0.0
      %s417 = scalar_lea.vmem [#allocation2], 544
      %418 = vst.msk [vmem:[%s417] sm:$0xff] %vm411, 0.0
      %419 = vst.msk [vmem:[%s417 + $0x8] sm:$0xff] %vm411, 0.0
      %420 = vst.msk [vmem:[%s417 + $0x10] sm:$0xff] %vm411, 0.0
      %421 = vst.msk [vmem:[%s417 + $0x18] sm:$0x1] %vm415, 0.0
      %vm454 = vcmask 1040384
      %v455 = vrot.slane %v379, 7
      %v456 = vrot.slane %v380, 7
      %v457 = vsel %vm454, %v455, %v456
      %v458 = vrot.slane %v381, 7
      %v459 = vrot.slane %v382, 7
      %v460 = vsel %vm454, %v458, %v459
      %v461 = vrot.slane %v383, 7
      %v462 = vrot.slane %v384, 7
      %v463 = vsel %vm454, %v461, %v462
      %v464 = vrot.slane %v385, 7
      %v465 = vrot.slane %v386, 7
      %v466 = vsel %vm454, %v464, %v465
      %v467 = vrot.slane %v387, 7
      %v468 = vrot.slane %v388, 7
      %v469 = vsel %vm454, %v467, %v468
      %v470 = vrot.slane %v389, 7
      %v471 = vrot.slane %v390, 7
      %v472 = vsel %vm454, %v470, %v471
      %v473 = vrot.slane %v391, 7
      %v474 = vrot.slane %v392, 7
      %v475 = vsel %vm454, %v473, %v474
      %v476 = vrot.slane %v393, 7
      %v477 = vrot.slane %v394, 7
      %v478 = vsel %vm454, %v476, %v477
      %v479 = vrot.slane %v395, 7
      %v480 = vrot.slane %v396, 7
      %v481 = vsel %vm454, %v479, %v480
      %v482 = vrot.slane %v397, 7
      %v483 = vrot.slane %v398, 7
      %v484 = vsel %vm454, %v482, %v483
      %v485 = vrot.slane %v399, 7
      %v486 = vrot.slane %v400, 7
      %v487 = vsel %vm454, %v485, %v486
      %v488 = vrot.slane %v401, 7
      %v489 = vrot.slane %v402, 7
      %v490 = vsel %vm454, %v488, %v489
      %v491 = vrot.slane %v403, 7
      %v492 = vrot.slane %v404, 7
      %v493 = vsel %vm454, %v491, %v492
      %v494 = vrot.slane %v405, 7
      %v495 = vrot.slane %v406, 7
      %v496 = vsel %vm454, %v494, %v495
      %v497 = vrot.slane %v407, 7
      %v498 = vrot.slane %v408, 7
      %v499 = vsel %vm454, %v497, %v498
      %v500 = vrot.slane %v409, 7
      %v501 = vrot.slane %v410, 7
      %v502 = vsel %vm454, %v500, %v501
      %v551 = vsel %vm454, 0.0, %v455
      %v552 = vsel %vm454, 0.0, %v458
      %v553 = vsel %vm454, 0.0, %v461
      %v554 = vsel %vm454, 0.0, %v464
      %v555 = vsel %vm454, 0.0, %v467
      %v556 = vsel %vm454, 0.0, %v470
      %v557 = vsel %vm454, 0.0, %v473
      %v558 = vsel %vm454, 0.0, %v476
      %v559 = vsel %vm454, 0.0, %v479
      %v560 = vsel %vm454, 0.0, %v482
      %v561 = vsel %vm454, 0.0, %v485
      %v562 = vsel %vm454, 0.0, %v488
      %v563 = vsel %vm454, 0.0, %v491
      %v564 = vsel %vm454, 0.0, %v494
      %v565 = vsel %vm454, 0.0, %v497
      %v566 = vsel %vm454, 0.0, %v500
      %v567 = vsel %vm454, %v456, 0.0
      %v568 = vsel %vm454, %v459, 0.0
      %v569 = vsel %vm454, %v462, 0.0
      %v570 = vsel %vm454, %v465, 0.0
      %v571 = vsel %vm454, %v468, 0.0
      %v572 = vsel %vm454, %v471, 0.0
      %v573 = vsel %vm454, %v474, 0.0
      %v574 = vsel %vm454, %v477, 0.0
      %v575 = vsel %vm454, %v480, 0.0
      %v576 = vsel %vm454, %v483, 0.0
      %v577 = vsel %vm454, %v486, 0.0
      %v578 = vsel %vm454, %v489, 0.0
      %v579 = vsel %vm454, %v492, 0.0
      %v580 = vsel %vm454, %v495, 0.0
      %v581 = vsel %vm454, %v498, 0.0
      %v582 = vsel %vm454, %v501, 0.0
      %s583 = scalar_lea.vmem [#allocation2], 32
      %584 = vst.msk [vmem:[%s583 + $0x7] sm:$0xff] %vm411, %v551
      %585 = vst.msk [vmem:[%s583 + $0xf] sm:$0xff] %vm411, %v457
      %vm586 = vcmask 25600
      %587 = vst.msk [vmem:[%s583 + $0x17] sm:$0x3] %vm586, %v567
      %588 = vst.msk [vmem:[%s583 + $0x27] sm:$0xff] %vm411, %v552
      %589 = vst.msk [vmem:[%s583 + $0x2f] sm:$0xff] %vm411, %v460
      %590 = vst.msk [vmem:[%s583 + $0x37] sm:$0x3] %vm586, %v568
      %591 = vst.msk [vmem:[%s583 + $0x47] sm:$0xff] %vm411, %v553
      %592 = vst.msk [vmem:[%s583 + $0x4f] sm:$0xff] %vm411, %v463
      %593 = vst.msk [vmem:[%s583 + $0x57] sm:$0x3] %vm586, %v569
      %594 = vst.msk [vmem:[%s583 + $0x67] sm:$0xff] %vm411, %v554
      %595 = vst.msk [vmem:[%s583 + $0x6f] sm:$0xff] %vm411, %v466
      %596 = vst.msk [vmem:[%s583 + $0x77] sm:$0x3] %vm586, %v570
      %597 = vst.msk [vmem:[%s583 + $0x87] sm:$0xff] %vm411, %v555
      %598 = vst.msk [vmem:[%s583 + $0x8f] sm:$0xff] %vm411, %v469
      %599 = vst.msk [vmem:[%s583 + $0x97] sm:$0x3] %vm586, %v571
      %600 = vst.msk [vmem:[%s583 + $0xa7] sm:$0xff] %vm411, %v556
      %601 = vst.msk [vmem:[%s583 + $0xaf] sm:$0xff] %vm411, %v472
      %602 = vst.msk [vmem:[%s583 + $0xb7] sm:$0x3] %vm586, %v572
      %603 = vst.msk [vmem:[%s583 + $0xc7] sm:$0xff] %vm411, %v557
      %604 = vst.msk [vmem:[%s583 + $0xcf] sm:$0xff] %vm411, %v475
      %605 = vst.msk [vmem:[%s583 + $0xd7] sm:$0x3] %vm586, %v573
      %606 = vst.msk [vmem:[%s583 + $0xe7] sm:$0xff] %vm411, %v558
      %607 = vst.msk [vmem:[%s583 + $0xef] sm:$0xff] %vm411, %v478
      %608 = vst.msk [vmem:[%s583 + $0xf7] sm:$0x3] %vm586, %v574
      %609 = vst.msk [vmem:[%s583 + $0x107] sm:$0xff] %vm411, %v559
      %610 = vst.msk [vmem:[%s583 + $0x10f] sm:$0xff] %vm411, %v481
      %611 = vst.msk [vmem:[%s583 + $0x117] sm:$0x3] %vm586, %v575
      %612 = vst.msk [vmem:[%s583 + $0x127] sm:$0xff] %vm411, %v560
      %613 = vst.msk [vmem:[%s583 + $0x12f] sm:$0xff] %vm411, %v484
      %614 = vst.msk [vmem:[%s583 + $0x137] sm:$0x3] %vm586, %v576
      %615 = vst.msk [vmem:[%s583 + $0x147] sm:$0xff] %vm411, %v561
      %616 = vst.msk [vmem:[%s583 + $0x14f] sm:$0xff] %vm411, %v487
      %617 = vst.msk [vmem:[%s583 + $0x157] sm:$0x3] %vm586, %v577
      %618 = vst.msk [vmem:[%s583 + $0x167] sm:$0xff] %vm411, %v562
      %619 = vst.msk [vmem:[%s583 + $0x16f] sm:$0xff] %vm411, %v490
      %620 = vst.msk [vmem:[%s583 + $0x177] sm:$0x3] %vm586, %v578
      %621 = vst.msk [vmem:[%s583 + $0x187] sm:$0xff] %vm411, %v563
      %622 = vst.msk [vmem:[%s583 + $0x18f] sm:$0xff] %vm411, %v493
      %623 = vst.msk [vmem:[%s583 + $0x197] sm:$0x3] %vm586, %v579
      %624 = vst.msk [vmem:[%s583 + $0x1a7] sm:$0xff] %vm411, %v564
      %625 = vst.msk [vmem:[%s583 + $0x1af] sm:$0xff] %vm411, %v496
      %626 = vst.msk [vmem:[%s583 + $0x1b7] sm:$0x3] %vm586, %v580
      %627 = vst.msk [vmem:[%s583 + $0x1c7] sm:$0xff] %vm411, %v565
      %628 = vst.msk [vmem:[%s583 + $0x1cf] sm:$0xff] %vm411, %v499
      %629 = vst.msk [vmem:[%s583 + $0x1d7] sm:$0x3] %vm586, %v581
      %630 = vst.msk [vmem:[%s583 + $0x1e7] sm:$0xff] %vm411, %v566
      %631 = vst.msk [vmem:[%s583 + $0x1ef] sm:$0xff] %vm411, %v502
      %632 = vst.msk [vmem:[%s583 + $0x1f7] sm:$0x3] %vm586, %v582
      %v633 = vld [vmem:[%s3] sm:$0xf]
      %v634 = vld [vmem:[%s3 + $0x4] sm:$0xf]
      %v635 = vld [vmem:[%s3 + $0x8] sm:$0xf]
      %v636 = vld [vmem:[%s3 + $0xc] sm:$0xf]
      %v637 = vld [vmem:[%s3 + $0x10] sm:$0x3]
      %v638 = vld [vmem:[#allocation2 + $0x7] sm:$0xff]
      %v639 = vld [vmem:[#allocation2 + $0xf] sm:$0xff]
      %v640 = vld [vmem:[#allocation2 + $0x27] sm:$0xff]
      %v641 = vld [vmem:[#allocation2 + $0x2f] sm:$0xff]
      %v642 = vld [vmem:[#allocation2 + $0x47] sm:$0xff]
      %v643 = vld [vmem:[#allocation2 + $0x4f] sm:$0xff]
      %v644 = vld [vmem:[#allocation2 + $0x67] sm:$0xff]
      %v645 = vld [vmem:[#allocation2 + $0x6f] sm:$0xff]
      %v646 = vld [vmem:[#allocation2 + $0x87] sm:$0xff]
      %v647 = vld [vmem:[#allocation2 + $0x8f] sm:$0xff]
      %v648 = vld [vmem:[#allocation2 + $0xa7] sm:$0xff]
      %v649 = vld [vmem:[#allocation2 + $0xaf] sm:$0xff]
      %v650 = vld [vmem:[#allocation2 + $0xc7] sm:$0xff]
      %v651 = vld [vmem:[#allocation2 + $0xcf] sm:$0xff]
      %v652 = vld [vmem:[#allocation2 + $0xe7] sm:$0xff]
      %v653 = vld [vmem:[#allocation2 + $0xef] sm:$0xff]
      %v654 = vld [vmem:[#allocation2 + $0x107] sm:$0xff]
      %v655 = vld [vmem:[#allocation2 + $0x10f] sm:$0xff]
      %v656 = vld [vmem:[#allocation2 + $0x127] sm:$0xff]
      %v657 = vld [vmem:[#allocation2 + $0x12f] sm:$0xff]
      %v658 = vld [vmem:[#allocation2 + $0x147] sm:$0xff]
      %v659 = vld [vmem:[#allocation2 + $0x14f] sm:$0xff]
      %v660 = vld [vmem:[#allocation2 + $0x167] sm:$0xff]
      %v661 = vld [vmem:[#allocation2 + $0x16f] sm:$0xff]
      %v662 = vld [vmem:[#allocation2 + $0x187] sm:$0xff]
      %v663 = vld [vmem:[#allocation2 + $0x18f] sm:$0xff]
      %v664 = vld [vmem:[#allocation2 + $0x1a7] sm:$0xff]
      %v665 = vld [vmem:[#allocation2 + $0x1af] sm:$0xff]
      %v666 = vld [vmem:[#allocation2 + $0x1c7] sm:$0xff]
      %v667 = vld [vmem:[#allocation2 + $0x1cf] sm:$0xff]
      %v668 = vld [vmem:[#allocation2 + $0x1e7] sm:$0xff]
      %v669 = vld [vmem:[#allocation2 + $0x1ef] sm:$0xff]
      %v670 = vpack.c.bf16 %v639, %v638
      %v671 = vpack.c.bf16 %v641, %v640
      %v672 = vpack.c.bf16 %v643, %v642
      %v673 = vpack.c.bf16 %v645, %v644
      %v674 = vpack.c.bf16 %v647, %v646
      %v675 = vpack.c.bf16 %v649, %v648
      %v676 = vpack.c.bf16 %v651, %v650
      %v677 = vpack.c.bf16 %v653, %v652
      %v678 = vpack.c.bf16 %v655, %v654
      %v679 = vpack.c.bf16 %v657, %v656
      %v680 = vpack.c.bf16 %v659, %v658
      %v681 = vpack.c.bf16 %v661, %v660
      %v682 = vpack.c.bf16 %v663, %v662
      %v683 = vpack.c.bf16 %v665, %v664
      %v684 = vpack.c.bf16 %v667, %v666
      %v685 = vpack.c.bf16 %v669, %v668
      %v686 = vld [vmem:[#allocation2 + $0x8] sm:$0xff]
      %v687 = vld [vmem:[#allocation2 + $0x10] sm:$0xff]
      %v688 = vld [vmem:[#allocation2 + $0x28] sm:$0xff]
      %v689 = vld [vmem:[#allocation2 + $0x30] sm:$0xff]
      %v690 = vld [vmem:[#allocation2 + $0x48] sm:$0xff]
      %v691 = vld [vmem:[#allocation2 + $0x50] sm:$0xff]
      %v692 = vld [vmem:[#allocation2 + $0x68] sm:$0xff]
      %v693 = vld [vmem:[#allocation2 + $0x70] sm:$0xff]
      %v694 = vld [vmem:[#allocation2 + $0x88] sm:$0xff]
      %v695 = vld [vmem:[#allocation2 + $0x90] sm:$0xff]
      %v696 = vld [vmem:[#allocation2 + $0xa8] sm:$0xff]
      %v697 = vld [vmem:[#allocation2 + $0xb0] sm:$0xff]
      %v698 = vld [vmem:[#allocation2 + $0xc8] sm:$0xff]
      %v699 = vld [vmem:[#allocation2 + $0xd0] sm:$0xff]
      %v700 = vld [vmem:[#allocation2 + $0xe8] sm:$0xff]
      %v701 = vld [vmem:[#allocation2 + $0xf0] sm:$0xff]
      %v702 = vld [vmem:[#allocation2 + $0x108] sm:$0xff]
      %v703 = vld [vmem:[#allocation2 + $0x110] sm:$0xff]
      %v704 = vld [vmem:[#allocation2 + $0x128] sm:$0xff]
      %v705 = vld [vmem:[#allocation2 + $0x130] sm:$0xff]
      %v706 = vld [vmem:[#allocation2 + $0x148] sm:$0xff]
      %v707 = vld [vmem:[#allocation2 + $0x150] sm:$0xff]
      %v708 = vld [vmem:[#allocation2 + $0x168] sm:$0xff]
      %v709 = vld [vmem:[#allocation2 + $0x170] sm:$0xff]
      %v710 = vld [vmem:[#allocation2 + $0x188] sm:$0xff]
      %v711 = vld [vmem:[#allocation2 + $0x190] sm:$0xff]
      %v712 = vld [vmem:[#allocation2 + $0x1a8] sm:$0xff]
      %v713 = vld [vmem:[#allocation2 + $0x1b0] sm:$0xff]
      %v714 = vld [vmem:[#allocation2 + $0x1c8] sm:$0xff]
      %v715 = vld [vmem:[#allocation2 + $0x1d0] sm:$0xff]
      %v716 = vld [vmem:[#allocation2 + $0x1e8] sm:$0xff]
      %v717 = vld [vmem:[#allocation2 + $0x1f0] sm:$0xff]
      %v718 = vpack.c.bf16 %v687, %v686
      %v719 = vpack.c.bf16 %v689, %v688
      %v720 = vpack.c.bf16 %v691, %v690
      %v721 = vpack.c.bf16 %v693, %v692
      %v722 = vpack.c.bf16 %v695, %v694
      %v723 = vpack.c.bf16 %v697, %v696
      %v724 = vpack.c.bf16 %v699, %v698
      %v725 = vpack.c.bf16 %v701, %v700
      %v726 = vpack.c.bf16 %v703, %v702
      %v727 = vpack.c.bf16 %v705, %v704
      %v728 = vpack.c.bf16 %v707, %v706
      %v729 = vpack.c.bf16 %v709, %v708
      %v730 = vpack.c.bf16 %v711, %v710
      %v731 = vpack.c.bf16 %v713, %v712
      %v732 = vpack.c.bf16 %v715, %v714
      %v733 = vpack.c.bf16 %v717, %v716
      %v734 = vld [vmem:[#allocation2 + $0x9] sm:$0xff]
      %v735 = vld [vmem:[#allocation2 + $0x11] sm:$0xff]
      %v736 = vld [vmem:[#allocation2 + $0x29] sm:$0xff]
      %v737 = vld [vmem:[#allocation2 + $0x31] sm:$0xff]
      %v738 = vld [vmem:[#allocation2 + $0x49] sm:$0xff]
      %v739 = vld [vmem:[#allocation2 + $0x51] sm:$0xff]
      %v740 = vld [vmem:[#allocation2 + $0x69] sm:$0xff]
      %v741 = vld [vmem:[#allocation2 + $0x71] sm:$0xff]
      %v742 = vld [vmem:[#allocation2 + $0x89] sm:$0xff]
      %v743 = vld [vmem:[#allocation2 + $0x91] sm:$0xff]
      %v744 = vld [vmem:[#allocation2 + $0xa9] sm:$0xff]
      %v745 = vld [vmem:[#allocation2 + $0xb1] sm:$0xff]
      %v746 = vld [vmem:[#allocation2 + $0xc9] sm:$0xff]
      %v747 = vld [vmem:[#allocation2 + $0xd1] sm:$0xff]
      %v748 = vld [vmem:[#allocation2 + $0xe9] sm:$0xff]
      %v749 = vld [vmem:[#allocation2 + $0xf1] sm:$0xff]
      %v750 = vld [vmem:[#allocation2 + $0x109] sm:$0xff]
      %v751 = vld [vmem:[#allocation2 + $0x111] sm:$0xff]
      %v752 = vld [vmem:[#allocation2 + $0x129] sm:$0xff]
      %v753 = vld [vmem:[#allocation2 + $0x131] sm:$0xff]
      %v754 = vld [vmem:[#allocation2 + $0x149] sm:$0xff]
      %v755 = vld [vmem:[#allocation2 + $0x151] sm:$0xff]
      %v756 = vld [vmem:[#allocation2 + $0x169] sm:$0xff]
      %v757 = vld [vmem:[#allocation2 + $0x171] sm:$0xff]
      %v758 = vld [vmem:[#allocation2 + $0x189] sm:$0xff]
      %v759 = vld [vmem:[#allocation2 + $0x191] sm:$0xff]
      %v760 = vld [vmem:[#allocation2 + $0x1a9] sm:$0xff]
      %v761 = vld [vmem:[#allocation2 + $0x1b1] sm:$0xff]
      %v762 = vld [vmem:[#allocation2 + $0x1c9] sm:$0xff]
      %v763 = vld [vmem:[#allocation2 + $0x1d1] sm:$0xff]
      %v764 = vld [vmem:[#allocation2 + $0x1e9] sm:$0xff]
      %v765 = vld [vmem:[#allocation2 + $0x1f1] sm:$0xff]
      %v766 = vpack.c.bf16 %v735, %v734
      %v767 = vpack.c.bf16 %v737, %v736
      %v768 = vpack.c.bf16 %v739, %v738
      %v769 = vpack.c.bf16 %v741, %v740
      %v770 = vpack.c.bf16 %v743, %v742
      %v771 = vpack.c.bf16 %v745, %v744
      %v772 = vpack.c.bf16 %v747, %v746
      %v773 = vpack.c.bf16 %v749, %v748
      %v774 = vpack.c.bf16 %v751, %v750
      %v775 = vpack.c.bf16 %v753, %v752
      %v776 = vpack.c.bf16 %v755, %v754
      %v777 = vpack.c.bf16 %v757, %v756
      %v778 = vpack.c.bf16 %v759, %v758
      %v779 = vpack.c.bf16 %v761, %v760
      %v780 = vpack.c.bf16 %v763, %v762
      %v781 = vpack.c.bf16 %v765, %v764
      %v782 = vld [vmem:[%s583 + $0x7] sm:$0xff]
      %v783 = vld [vmem:[%s583 + $0xf] sm:$0xff]
      %v784 = vld [vmem:[%s583 + $0x27] sm:$0xff]
      %v785 = vld [vmem:[%s583 + $0x2f] sm:$0xff]
      %v786 = vld [vmem:[%s583 + $0x47] sm:$0xff]
      %v787 = vld [vmem:[%s583 + $0x4f] sm:$0xff]
      %v788 = vld [vmem:[%s583 + $0x67] sm:$0xff]
      %v789 = vld [vmem:[%s583 + $0x6f] sm:$0xff]
      %v790 = vld [vmem:[%s583 + $0x87] sm:$0xff]
      %v791 = vld [vmem:[%s583 + $0x8f] sm:$0xff]
      %v792 = vld [vmem:[%s583 + $0xa7] sm:$0xff]
      %v793 = vld [vmem:[%s583 + $0xaf] sm:$0xff]
      %v794 = vld [vmem:[%s583 + $0xc7] sm:$0xff]
      %v795 = vld [vmem:[%s583 + $0xcf] sm:$0xff]
      %v796 = vld [vmem:[%s583 + $0xe7] sm:$0xff]
      %v797 = vld [vmem:[%s583 + $0xef] sm:$0xff]
      %v798 = vld [vmem:[%s583 + $0x107] sm:$0xff]
      %v799 = vld [vmem:[%s583 + $0x10f] sm:$0xff]
      %v800 = vld [vmem:[%s583 + $0x127] sm:$0xff]
      %v801 = vld [vmem:[%s583 + $0x12f] sm:$0xff]
      %v802 = vld [vmem:[%s583 + $0x147] sm:$0xff]
      %v803 = vld [vmem:[%s583 + $0x14f] sm:$0xff]
      %v804 = vld [vmem:[%s583 + $0x167] sm:$0xff]
      %v805 = vld [vmem:[%s583 + $0x16f] sm:$0xff]
      %v806 = vld [vmem:[%s583 + $0x187] sm:$0xff]
      %v807 = vld [vmem:[%s583 + $0x18f] sm:$0xff]
      %v808 = vld [vmem:[%s583 + $0x1a7] sm:$0xff]
      %v809 = vld [vmem:[%s583 + $0x1af] sm:$0xff]
      %v810 = vld [vmem:[%s583 + $0x1c7] sm:$0xff]
      %v811 = vld [vmem:[%s583 + $0x1cf] sm:$0xff]
      %v812 = vld [vmem:[%s583 + $0x1e7] sm:$0xff]
      %v813 = vld [vmem:[%s583 + $0x1ef] sm:$0xff]
      %v814 = vpack.c.bf16 %v783, %v782
      %v815 = vpack.c.bf16 %v785, %v784
      %v816 = vpack.c.bf16 %v787, %v786
      %v817 = vpack.c.bf16 %v789, %v788
      %v818 = vpack.c.bf16 %v791, %v790
      %v819 = vpack.c.bf16 %v793, %v792
      %v820 = vpack.c.bf16 %v795, %v794
      %v821 = vpack.c.bf16 %v797, %v796
      %v822 = vpack.c.bf16 %v799, %v798
      %v823 = vpack.c.bf16 %v801, %v800
      %v824 = vpack.c.bf16 %v803, %v802
      %v825 = vpack.c.bf16 %v805, %v804
      %v826 = vpack.c.bf16 %v807, %v806
      %v827 = vpack.c.bf16 %v809, %v808
      %v828 = vpack.c.bf16 %v811, %v810
      %v829 = vpack.c.bf16 %v813, %v812
      %v830 = vld [vmem:[%s583 + $0x8] sm:$0xff]
      %v831 = vld [vmem:[%s583 + $0x10] sm:$0xff]
      %v832 = vld [vmem:[%s583 + $0x28] sm:$0xff]
      %v833 = vld [vmem:[%s583 + $0x30] sm:$0xff]
      %v834 = vld [vmem:[%s583 + $0x48] sm:$0xff]
      %v835 = vld [vmem:[%s583 + $0x50] sm:$0xff]
      %v836 = vld [vmem:[%s583 + $0x68] sm:$0xff]
      %v837 = vld [vmem:[%s583 + $0x70] sm:$0xff]
      %v838 = vld [vmem:[%s583 + $0x88] sm:$0xff]
      %v839 = vld [vmem:[%s583 + $0x90] sm:$0xff]
      %v840 = vld [vmem:[%s583 + $0xa8] sm:$0xff]
      %v841 = vld [vmem:[%s583 + $0xb0] sm:$0xff]
      %v842 = vld [vmem:[%s583 + $0xc8] sm:$0xff]
      %v843 = vld [vmem:[%s583 + $0xd0] sm:$0xff]
      %v844 = vld [vmem:[%s583 + $0xe8] sm:$0xff]
      %v845 = vld [vmem:[%s583 + $0xf0] sm:$0xff]
      %v846 = vld [vmem:[%s583 + $0x108] sm:$0xff]
      %v847 = vld [vmem:[%s583 + $0x110] sm:$0xff]
      %v848 = vld [vmem:[%s583 + $0x128] sm:$0xff]
      %v849 = vld [vmem:[%s583 + $0x130] sm:$0xff]
      %v850 = vld [vmem:[%s583 + $0x148] sm:$0xff]
      %v851 = vld [vmem:[%s583 + $0x150] sm:$0xff]
      %v852 = vld [vmem:[%s583 + $0x168] sm:$0xff]
      %v853 = vld [vmem:[%s583 + $0x170] sm:$0xff]
      %v854 = vld [vmem:[%s583 + $0x188] sm:$0xff]
      %v855 = vld [vmem:[%s583 + $0x190] sm:$0xff]
      %v856 = vld [vmem:[%s583 + $0x1a8] sm:$0xff]
      %v857 = vld [vmem:[%s583 + $0x1b0] sm:$0xff]
      %v858 = vld [vmem:[%s583 + $0x1c8] sm:$0xff]
      %v859 = vld [vmem:[%s583 + $0x1d0] sm:$0xff]
      %v860 = vld [vmem:[%s583 + $0x1e8] sm:$0xff]
      %v861 = vld [vmem:[%s583 + $0x1f0] sm:$0xff]
      %v862 = vpack.c.bf16 %v831, %v830
      %v863 = vpack.c.bf16 %v833, %v832
      %v864 = vpack.c.bf16 %v835, %v834
      %v865 = vpack.c.bf16 %v837, %v836
      %v866 = vpack.c.bf16 %v839, %v838
      %v867 = vpack.c.bf16 %v841, %v840
      %v868 = vpack.c.bf16 %v843, %v842
      %v869 = vpack.c.bf16 %v845, %v844
      %v870 = vpack.c.bf16 %v847, %v846
      %v871 = vpack.c.bf16 %v849, %v848
      %v872 = vpack.c.bf16 %v851, %v850
      %v873 = vpack.c.bf16 %v853, %v852
      %v874 = vpack.c.bf16 %v855, %v854
      %v875 = vpack.c.bf16 %v857, %v856
      %v876 = vpack.c.bf16 %v859, %v858
      %v877 = vpack.c.bf16 %v861, %v860
      %v878 = vld [vmem:[%s583 + $0x9] sm:$0xff]
      %v879 = vld [vmem:[%s583 + $0x11] sm:$0xff]
      %v880 = vld [vmem:[%s583 + $0x29] sm:$0xff]
      %v881 = vld [vmem:[%s583 + $0x31] sm:$0xff]
      %v882 = vld [vmem:[%s583 + $0x49] sm:$0xff]
      %v883 = vld [vmem:[%s583 + $0x51] sm:$0xff]
      %v884 = vld [vmem:[%s583 + $0x69] sm:$0xff]
      %v885 = vld [vmem:[%s583 + $0x71] sm:$0xff]
      %v886 = vld [vmem:[%s583 + $0x89] sm:$0xff]
      %v887 = vld [vmem:[%s583 + $0x91] sm:$0xff]
      %v888 = vld [vmem:[%s583 + $0xa9] sm:$0xff]
      %v889 = vld [vmem:[%s583 + $0xb1] sm:$0xff]
      %v890 = vld [vmem:[%s583 + $0xc9] sm:$0xff]
      %v891 = vld [vmem:[%s583 + $0xd1] sm:$0xff]
      %v892 = vld [vmem:[%s583 + $0xe9] sm:$0xff]
      %v893 = vld [vmem:[%s583 + $0xf1] sm:$0xff]
      %v894 = vld [vmem:[%s583 + $0x109] sm:$0xff]
      %v895 = vld [vmem:[%s583 + $0x111] sm:$0xff]
      %v896 = vld [vmem:[%s583 + $0x129] sm:$0xff]
      %v897 = vld [vmem:[%s583 + $0x131] sm:$0xff]
      %v898 = vld [vmem:[%s583 + $0x149] sm:$0xff]
      %v899 = vld [vmem:[%s583 + $0x151] sm:$0xff]
      %v900 = vld [vmem:[%s583 + $0x169] sm:$0xff]
      %v901 = vld [vmem:[%s583 + $0x171] sm:$0xff]
      %v902 = vld [vmem:[%s583 + $0x189] sm:$0xff]
      %v903 = vld [vmem:[%s583 + $0x191] sm:$0xff]
      %v904 = vld [vmem:[%s583 + $0x1a9] sm:$0xff]
      %v905 = vld [vmem:[%s583 + $0x1b1] sm:$0xff]
      %v906 = vld [vmem:[%s583 + $0x1c9] sm:$0xff]
      %v907 = vld [vmem:[%s583 + $0x1d1] sm:$0xff]
      %v908 = vld [vmem:[%s583 + $0x1e9] sm:$0xff]
      %v909 = vld [vmem:[%s583 + $0x1f1] sm:$0xff]
      %v910 = vpack.c.bf16 %v879, %v878
      %v911 = vpack.c.bf16 %v881, %v880
      %v912 = vpack.c.bf16 %v883, %v882
      %v913 = vpack.c.bf16 %v885, %v884
      %v914 = vpack.c.bf16 %v887, %v886
      %v915 = vpack.c.bf16 %v889, %v888
      %v916 = vpack.c.bf16 %v891, %v890
      %v917 = vpack.c.bf16 %v893, %v892
      %v918 = vpack.c.bf16 %v895, %v894
      %v919 = vpack.c.bf16 %v897, %v896
      %v920 = vpack.c.bf16 %v899, %v898
      %v921 = vpack.c.bf16 %v901, %v900
      %v922 = vpack.c.bf16 %v903, %v902
      %v923 = vpack.c.bf16 %v905, %v904
      %v924 = vpack.c.bf16 %v907, %v906
      %v925 = vpack.c.bf16 %v909, %v908
      %s926 = scalar_lea.vmem [#allocation2], 64
      %v927 = vld [vmem:[%s926 + $0x7] sm:$0xff]
      %v928 = vld [vmem:[%s926 + $0xf] sm:$0xff]
      %v929 = vld [vmem:[%s926 + $0x27] sm:$0xff]
      %v930 = vld [vmem:[%s926 + $0x2f] sm:$0xff]
      %v931 = vld [vmem:[%s926 + $0x47] sm:$0xff]
      %v932 = vld [vmem:[%s926 + $0x4f] sm:$0xff]
      %v933 = vld [vmem:[%s926 + $0x67] sm:$0xff]
      %v934 = vld [vmem:[%s926 + $0x6f] sm:$0xff]
      %v935 = vld [vmem:[%s926 + $0x87] sm:$0xff]
      %v936 = vld [vmem:[%s926 + $0x8f] sm:$0xff]
      %v937 = vld [vmem:[%s926 + $0xa7] sm:$0xff]
      %v938 = vld [vmem:[%s926 + $0xaf] sm:$0xff]
      %v939 = vld [vmem:[%s926 + $0xc7] sm:$0xff]
      %v940 = vld [vmem:[%s926 + $0xcf] sm:$0xff]
      %v941 = vld [vmem:[%s926 + $0xe7] sm:$0xff]
      %v942 = vld [vmem:[%s926 + $0xef] sm:$0xff]
      %v943 = vld [vmem:[%s926 + $0x107] sm:$0xff]
      %v944 = vld [vmem:[%s926 + $0x10f] sm:$0xff]
      %v945 = vld [vmem:[%s926 + $0x127] sm:$0xff]
      %v946 = vld [vmem:[%s926 + $0x12f] sm:$0xff]
      %v947 = vld [vmem:[%s926 + $0x147] sm:$0xff]
      %v948 = vld [vmem:[%s926 + $0x14f] sm:$0xff]
      %v949 = vld [vmem:[%s926 + $0x167] sm:$0xff]
      %v950 = vld [vmem:[%s926 + $0x16f] sm:$0xff]
      %v951 = vld [vmem:[%s926 + $0x187] sm:$0xff]
      %v952 = vld [vmem:[%s926 + $0x18f] sm:$0xff]
      %v953 = vld [vmem:[%s926 + $0x1a7] sm:$0xff]
      %v954 = vld [vmem:[%s926 + $0x1af] sm:$0xff]
      %v955 = vld [vmem:[%s926 + $0x1c7] sm:$0xff]
      %v956 = vld [vmem:[%s926 + $0x1cf] sm:$0xff]
      %v957 = vld [vmem:[%s926 + $0x1e7] sm:$0xff]
      %v958 = vld [vmem:[%s926 + $0x1ef] sm:$0xff]
      %v959 = vpack.c.bf16 %v928, %v927
      %v960 = vpack.c.bf16 %v930, %v929
      %v961 = vpack.c.bf16 %v932, %v931
      %v962 = vpack.c.bf16 %v934, %v933
      %v963 = vpack.c.bf16 %v936, %v935
      %v964 = vpack.c.bf16 %v938, %v937
      %v965 = vpack.c.bf16 %v940, %v939
      %v966 = vpack.c.bf16 %v942, %v941
      %v967 = vpack.c.bf16 %v944, %v943
      %v968 = vpack.c.bf16 %v946, %v945
      %v969 = vpack.c.bf16 %v948, %v947
      %v970 = vpack.c.bf16 %v950, %v949
      %v971 = vpack.c.bf16 %v952, %v951
      %v972 = vpack.c.bf16 %v954, %v953
      %v973 = vpack.c.bf16 %v956, %v955
      %v974 = vpack.c.bf16 %v958, %v957
      %v975 = vld [vmem:[%s926 + $0x8] sm:$0xff]
      %v976 = vld [vmem:[%s926 + $0x10] sm:$0xff]
      %v977 = vld [vmem:[%s926 + $0x28] sm:$0xff]
      %v978 = vld [vmem:[%s926 + $0x30] sm:$0xff]
      %v979 = vld [vmem:[%s926 + $0x48] sm:$0xff]
      %v980 = vld [vmem:[%s926 + $0x50] sm:$0xff]
      %v981 = vld [vmem:[%s926 + $0x68] sm:$0xff]
      %v982 = vld [vmem:[%s926 + $0x70] sm:$0xff]
      %v983 = vld [vmem:[%s926 + $0x88] sm:$0xff]
      %v984 = vld [vmem:[%s926 + $0x90] sm:$0xff]
      %v985 = vld [vmem:[%s926 + $0xa8] sm:$0xff]
      %v986 = vld [vmem:[%s926 + $0xb0] sm:$0xff]
      %v987 = vld [vmem:[%s926 + $0xc8] sm:$0xff]
      %v988 = vld [vmem:[%s926 + $0xd0] sm:$0xff]
      %v989 = vld [vmem:[%s926 + $0xe8] sm:$0xff]
      %v990 = vld [vmem:[%s926 + $0xf0] sm:$0xff]
      %v991 = vld [vmem:[%s926 + $0x108] sm:$0xff]
      %v992 = vld [vmem:[%s926 + $0x110] sm:$0xff]
      %v993 = vld [vmem:[%s926 + $0x128] sm:$0xff]
      %v994 = vld [vmem:[%s926 + $0x130] sm:$0xff]
      %v995 = vld [vmem:[%s926 + $0x148] sm:$0xff]
      %v996 = vld [vmem:[%s926 + $0x150] sm:$0xff]
      %v997 = vld [vmem:[%s926 + $0x168] sm:$0xff]
      %v998 = vld [vmem:[%s926 + $0x170] sm:$0xff]
      %v999 = vld [vmem:[%s926 + $0x188] sm:$0xff]
      %v1000 = vld [vmem:[%s926 + $0x190] sm:$0xff]
      %v1001 = vld [vmem:[%s926 + $0x1a8] sm:$0xff]
      %v1002 = vld [vmem:[%s926 + $0x1b0] sm:$0xff]
      %v1003 = vld [vmem:[%s926 + $0x1c8] sm:$0xff]
      %v1004 = vld [vmem:[%s926 + $0x1d0] sm:$0xff]
      %v1005 = vld [vmem:[%s926 + $0x1e8] sm:$0xff]
      %v1006 = vld [vmem:[%s926 + $0x1f0] sm:$0xff]
      %v1007 = vpack.c.bf16 %v976, %v975
      %v1008 = vpack.c.bf16 %v978, %v977
      %v1009 = vpack.c.bf16 %v980, %v979
      %v1010 = vpack.c.bf16 %v982, %v981
      %v1011 = vpack.c.bf16 %v984, %v983
      %v1012 = vpack.c.bf16 %v986, %v985
      %v1013 = vpack.c.bf16 %v988, %v987
      %v1014 = vpack.c.bf16 %v990, %v989
      %v1015 = vpack.c.bf16 %v992, %v991
      %v1016 = vpack.c.bf16 %v994, %v993
      %v1017 = vpack.c.bf16 %v996, %v995
      %v1018 = vpack.c.bf16 %v998, %v997
      %v1019 = vpack.c.bf16 %v1000, %v999
      %v1020 = vpack.c.bf16 %v1002, %v1001
      %v1021 = vpack.c.bf16 %v1004, %v1003
      %v1022 = vpack.c.bf16 %v1006, %v1005
      %v1023 = vld [vmem:[%s926 + $0x9] sm:$0xff]
      %v1024 = vld [vmem:[%s926 + $0x11] sm:$0xff]
      %v1025 = vld [vmem:[%s926 + $0x29] sm:$0xff]
      %v1026 = vld [vmem:[%s926 + $0x31] sm:$0xff]
      %v1027 = vld [vmem:[%s926 + $0x49] sm:$0xff]
      %v1028 = vld [vmem:[%s926 + $0x51] sm:$0xff]
      %v1029 = vld [vmem:[%s926 + $0x69] sm:$0xff]
      %v1030 = vld [vmem:[%s926 + $0x71] sm:$0xff]
      %v1031 = vld [vmem:[%s926 + $0x89] sm:$0xff]
      %v1032 = vld [vmem:[%s926 + $0x91] sm:$0xff]
      %v1033 = vld [vmem:[%s926 + $0xa9] sm:$0xff]
      %v1034 = vld [vmem:[%s926 + $0xb1] sm:$0xff]
      %v1035 = vld [vmem:[%s926 + $0xc9] sm:$0xff]
      %v1036 = vld [vmem:[%s926 + $0xd1] sm:$0xff]
      %v1037 = vld [vmem:[%s926 + $0xe9] sm:$0xff]
      %v1038 = vld [vmem:[%s926 + $0xf1] sm:$0xff]
      %v1039 = vld [vmem:[%s926 + $0x109] sm:$0xff]
      %v1040 = vld [vmem:[%s926 + $0x111] sm:$0xff]
      %v1041 = vld [vmem:[%s926 + $0x129] sm:$0xff]
      %v1042 = vld [vmem:[%s926 + $0x131] sm:$0xff]
      %v1043 = vld [vmem:[%s926 + $0x149] sm:$0xff]
      %v1044 = vld [vmem:[%s926 + $0x151] sm:$0xff]
      %v1045 = vld [vmem:[%s926 + $0x169] sm:$0xff]
      %v1046 = vld [vmem:[%s926 + $0x171] sm:$0xff]
      %v1047 = vld [vmem:[%s926 + $0x189] sm:$0xff]
      %v1048 = vld [vmem:[%s926 + $0x191] sm:$0xff]
      %v1049 = vld [vmem:[%s926 + $0x1a9] sm:$0xff]
      %v1050 = vld [vmem:[%s926 + $0x1b1] sm:$0xff]
      %v1051 = vld [vmem:[%s926 + $0x1c9] sm:$0xff]
      %v1052 = vld [vmem:[%s926 + $0x1d1] sm:$0xff]
      %v1053 = vld [vmem:[%s926 + $0x1e9] sm:$0xff]
      %v1054 = vld [vmem:[%s926 + $0x1f1] sm:$0xff]
      %v1055 = vpack.c.bf16 %v1024, %v1023
      %v1056 = vpack.c.bf16 %v1026, %v1025
      %v1057 = vpack.c.bf16 %v1028, %v1027
      %v1058 = vpack.c.bf16 %v1030, %v1029
      %v1059 = vpack.c.bf16 %v1032, %v1031
      %v1060 = vpack.c.bf16 %v1034, %v1033
      %v1061 = vpack.c.bf16 %v1036, %v1035
      %v1062 = vpack.c.bf16 %v1038, %v1037
      %v1063 = vpack.c.bf16 %v1040, %v1039
      %v1064 = vpack.c.bf16 %v1042, %v1041
      %v1065 = vpack.c.bf16 %v1044, %v1043
      %v1066 = vpack.c.bf16 %v1046, %v1045
      %v1067 = vpack.c.bf16 %v1048, %v1047
      %v1068 = vpack.c.bf16 %v1050, %v1049
      %v1069 = vpack.c.bf16 %v1052, %v1051
      %v1070 = vpack.c.bf16 %v1054, %v1053
      %1087 = vrot.lane.b32.xlu0 %v718, 4
      %v1088 = vpop.permute.xlu0 %1087
      %1089 = vrot.lane.b32.xlu0 %v719, 4
      %v1090 = vpop.permute.xlu0 %1089
      %1091 = vrot.lane.b32.xlu0 %v720, 4
      %v1092 = vpop.permute.xlu0 %1091
      %1093 = vrot.lane.b32.xlu0 %v721, 4
      %v1094 = vpop.permute.xlu0 %1093
      %1095 = vrot.lane.b32.xlu0 %v722, 4
      %v1096 = vpop.permute.xlu0 %1095
      %1097 = vrot.lane.b32.xlu0 %v723, 4
      %v1098 = vpop.permute.xlu0 %1097
      %1099 = vrot.lane.b32.xlu0 %v724, 4
      %v1100 = vpop.permute.xlu0 %1099
      %1101 = vrot.lane.b32.xlu0 %v725, 4
      %v1102 = vpop.permute.xlu0 %1101
      %1103 = vrot.lane.b32.xlu0 %v726, 4
      %v1104 = vpop.permute.xlu0 %1103
      %1105 = vrot.lane.b32.xlu0 %v727, 4
      %v1106 = vpop.permute.xlu0 %1105
      %1107 = vrot.lane.b32.xlu0 %v728, 4
      %v1108 = vpop.permute.xlu0 %1107
      %1109 = vrot.lane.b32.xlu0 %v729, 4
      %v1110 = vpop.permute.xlu0 %1109
      %1111 = vrot.lane.b32.xlu0 %v730, 4
      %v1112 = vpop.permute.xlu0 %1111
      %1113 = vrot.lane.b32.xlu0 %v731, 4
      %v1114 = vpop.permute.xlu0 %1113
      %1115 = vrot.lane.b32.xlu0 %v732, 4
      %v1116 = vpop.permute.xlu0 %1115
      %1117 = vrot.lane.b32.xlu0 %v733, 4
      %v1118 = vpop.permute.xlu0 %1117
      %1135 = vrot.lane.b32.xlu0 %v766, 8
      %v1136 = vpop.permute.xlu0 %1135
      %1137 = vrot.lane.b32.xlu0 %v767, 8
      %v1138 = vpop.permute.xlu0 %1137
      %1139 = vrot.lane.b32.xlu0 %v768, 8
      %v1140 = vpop.permute.xlu0 %1139
      %1141 = vrot.lane.b32.xlu0 %v769, 8
      %v1142 = vpop.permute.xlu0 %1141
      %1143 = vrot.lane.b32.xlu0 %v770, 8
      %v1144 = vpop.permute.xlu0 %1143
      %1145 = vrot.lane.b32.xlu0 %v771, 8
      %v1146 = vpop.permute.xlu0 %1145
      %1147 = vrot.lane.b32.xlu0 %v772, 8
      %v1148 = vpop.permute.xlu0 %1147
      %1149 = vrot.lane.b32.xlu0 %v773, 8
      %v1150 = vpop.permute.xlu0 %1149
      %1151 = vrot.lane.b32.xlu0 %v774, 8
      %v1152 = vpop.permute.xlu0 %1151
      %1153 = vrot.lane.b32.xlu0 %v775, 8
      %v1154 = vpop.permute.xlu0 %1153
      %1155 = vrot.lane.b32.xlu0 %v776, 8
      %v1156 = vpop.permute.xlu0 %1155
      %1157 = vrot.lane.b32.xlu0 %v777, 8
      %v1158 = vpop.permute.xlu0 %1157
      %1159 = vrot.lane.b32.xlu0 %v778, 8
      %v1160 = vpop.permute.xlu0 %1159
      %1161 = vrot.lane.b32.xlu0 %v779, 8
      %v1162 = vpop.permute.xlu0 %1161
      %1163 = vrot.lane.b32.xlu0 %v780, 8
      %v1164 = vpop.permute.xlu0 %1163
      %1165 = vrot.lane.b32.xlu0 %v781, 8
      %v1166 = vpop.permute.xlu0 %1165
      %1183 = vrot.lane.b32.xlu0 %v814, 12
      %v1184 = vpop.permute.xlu0 %1183
      %1185 = vrot.lane.b32.xlu0 %v815, 12
      %v1186 = vpop.permute.xlu0 %1185
      %1187 = vrot.lane.b32.xlu0 %v816, 12
      %v1188 = vpop.permute.xlu0 %1187
      %1189 = vrot.lane.b32.xlu0 %v817, 12
      %v1190 = vpop.permute.xlu0 %1189
      %1191 = vrot.lane.b32.xlu0 %v818, 12
      %v1192 = vpop.permute.xlu0 %1191
      %1193 = vrot.lane.b32.xlu0 %v819, 12
      %v1194 = vpop.permute.xlu0 %1193
      %1195 = vrot.lane.b32.xlu0 %v820, 12
      %v1196 = vpop.permute.xlu0 %1195
      %1197 = vrot.lane.b32.xlu0 %v821, 12
      %v1198 = vpop.permute.xlu0 %1197
      %1199 = vrot.lane.b32.xlu0 %v822, 12
      %v1200 = vpop.permute.xlu0 %1199
      %1201 = vrot.lane.b32.xlu0 %v823, 12
      %v1202 = vpop.permute.xlu0 %1201
      %1203 = vrot.lane.b32.xlu0 %v824, 12
      %v1204 = vpop.permute.xlu0 %1203
      %1205 = vrot.lane.b32.xlu0 %v825, 12
      %v1206 = vpop.permute.xlu0 %1205
      %1207 = vrot.lane.b32.xlu0 %v826, 12
      %v1208 = vpop.permute.xlu0 %1207
      %1209 = vrot.lane.b32.xlu0 %v827, 12
      %v1210 = vpop.permute.xlu0 %1209
      %1211 = vrot.lane.b32.xlu0 %v828, 12
      %v1212 = vpop.permute.xlu0 %1211
      %1213 = vrot.lane.b32.xlu0 %v829, 12
      %v1214 = vpop.permute.xlu0 %1213
      %1231 = vrot.lane.b32.xlu0 %v862, 16
      %v1232 = vpop.permute.xlu0 %1231
      %1233 = vrot.lane.b32.xlu0 %v863, 16
      %v1234 = vpop.permute.xlu0 %1233
      %1235 = vrot.lane.b32.xlu0 %v864, 16
      %v1236 = vpop.permute.xlu0 %1235
      %1237 = vrot.lane.b32.xlu0 %v865, 16
      %v1238 = vpop.permute.xlu0 %1237
      %1239 = vrot.lane.b32.xlu0 %v866, 16
      %v1240 = vpop.permute.xlu0 %1239
      %1241 = vrot.lane.b32.xlu0 %v867, 16
      %v1242 = vpop.permute.xlu0 %1241
      %1243 = vrot.lane.b32.xlu0 %v868, 16
      %v1244 = vpop.permute.xlu0 %1243
      %1245 = vrot.lane.b32.xlu0 %v869, 16
      %v1246 = vpop.permute.xlu0 %1245
      %1247 = vrot.lane.b32.xlu0 %v870, 16
      %v1248 = vpop.permute.xlu0 %1247
      %1249 = vrot.lane.b32.xlu0 %v871, 16
      %v1250 = vpop.permute.xlu0 %1249
      %1251 = vrot.lane.b32.xlu0 %v872, 16
      %v1252 = vpop.permute.xlu0 %1251
      %1253 = vrot.lane.b32.xlu0 %v873, 16
      %v1254 = vpop.permute.xlu0 %1253
      %1255 = vrot.lane.b32.xlu0 %v874, 16
      %v1256 = vpop.permute.xlu0 %1255
      %1257 = vrot.lane.b32.xlu0 %v875, 16
      %v1258 = vpop.permute.xlu0 %1257
      %1259 = vrot.lane.b32.xlu0 %v876, 16
      %v1260 = vpop.permute.xlu0 %1259
      %1261 = vrot.lane.b32.xlu0 %v877, 16
      %v1262 = vpop.permute.xlu0 %1261
      %1279 = vrot.lane.b32.xlu0 %v910, 20
      %v1280 = vpop.permute.xlu0 %1279
      %1281 = vrot.lane.b32.xlu0 %v911, 20
      %v1282 = vpop.permute.xlu0 %1281
      %1283 = vrot.lane.b32.xlu0 %v912, 20
      %v1284 = vpop.permute.xlu0 %1283
      %1285 = vrot.lane.b32.xlu0 %v913, 20
      %v1286 = vpop.permute.xlu0 %1285
      %1287 = vrot.lane.b32.xlu0 %v914, 20
      %v1288 = vpop.permute.xlu0 %1287
      %1289 = vrot.lane.b32.xlu0 %v915, 20
      %v1290 = vpop.permute.xlu0 %1289
      %1291 = vrot.lane.b32.xlu0 %v916, 20
      %v1292 = vpop.permute.xlu0 %1291
      %1293 = vrot.lane.b32.xlu0 %v917, 20
      %v1294 = vpop.permute.xlu0 %1293
      %1295 = vrot.lane.b32.xlu0 %v918, 20
      %v1296 = vpop.permute.xlu0 %1295
      %1297 = vrot.lane.b32.xlu0 %v919, 20
      %v1298 = vpop.permute.xlu0 %1297
      %1299 = vrot.lane.b32.xlu0 %v920, 20
      %v1300 = vpop.permute.xlu0 %1299
      %1301 = vrot.lane.b32.xlu0 %v921, 20
      %v1302 = vpop.permute.xlu0 %1301
      %1303 = vrot.lane.b32.xlu0 %v922, 20
      %v1304 = vpop.permute.xlu0 %1303
      %1305 = vrot.lane.b32.xlu0 %v923, 20
      %v1306 = vpop.permute.xlu0 %1305
      %1307 = vrot.lane.b32.xlu0 %v924, 20
      %v1308 = vpop.permute.xlu0 %1307
      %1309 = vrot.lane.b32.xlu0 %v925, 20
      %v1310 = vpop.permute.xlu0 %1309
      %1327 = vrot.lane.b32.xlu0 %v959, 24
      %v1328 = vpop.permute.xlu0 %1327
      %1329 = vrot.lane.b32.xlu0 %v960, 24
      %v1330 = vpop.permute.xlu0 %1329
      %1331 = vrot.lane.b32.xlu0 %v961, 24
      %v1332 = vpop.permute.xlu0 %1331
      %1333 = vrot.lane.b32.xlu0 %v962, 24
      %v1334 = vpop.permute.xlu0 %1333
      %1335 = vrot.lane.b32.xlu0 %v963, 24
      %v1336 = vpop.permute.xlu0 %1335
      %1337 = vrot.lane.b32.xlu0 %v964, 24
      %v1338 = vpop.permute.xlu0 %1337
      %1339 = vrot.lane.b32.xlu0 %v965, 24
      %v1340 = vpop.permute.xlu0 %1339
      %1341 = vrot.lane.b32.xlu0 %v966, 24
      %v1342 = vpop.permute.xlu0 %1341
      %1343 = vrot.lane.b32.xlu0 %v967, 24
      %v1344 = vpop.permute.xlu0 %1343
      %1345 = vrot.lane.b32.xlu0 %v968, 24
      %v1346 = vpop.permute.xlu0 %1345
      %1347 = vrot.lane.b32.xlu0 %v969, 24
      %v1348 = vpop.permute.xlu0 %1347
      %1349 = vrot.lane.b32.xlu0 %v970, 24
      %v1350 = vpop.permute.xlu0 %1349
      %1351 = vrot.lane.b32.xlu0 %v971, 24
      %v1352 = vpop.permute.xlu0 %1351
      %1353 = vrot.lane.b32.xlu0 %v972, 24
      %v1354 = vpop.permute.xlu0 %1353
      %1355 = vrot.lane.b32.xlu0 %v973, 24
      %v1356 = vpop.permute.xlu0 %1355
      %1357 = vrot.lane.b32.xlu0 %v974, 24
      %v1358 = vpop.permute.xlu0 %1357
      %1375 = vrot.lane.b32.xlu0 %v1007, 28
      %v1376 = vpop.permute.xlu0 %1375
      %1377 = vrot.lane.b32.xlu0 %v1008, 28
      %v1378 = vpop.permute.xlu0 %1377
      %1379 = vrot.lane.b32.xlu0 %v1009, 28
      %v1380 = vpop.permute.xlu0 %1379
      %1381 = vrot.lane.b32.xlu0 %v1010, 28
      %v1382 = vpop.permute.xlu0 %1381
      %1383 = vrot.lane.b32.xlu0 %v1011, 28
      %v1384 = vpop.permute.xlu0 %1383
      %1385 = vrot.lane.b32.xlu0 %v1012, 28
      %v1386 = vpop.permute.xlu0 %1385
      %1387 = vrot.lane.b32.xlu0 %v1013, 28
      %v1388 = vpop.permute.xlu0 %1387
      %1389 = vrot.lane.b32.xlu0 %v1014, 28
      %v1390 = vpop.permute.xlu0 %1389
      %1391 = vrot.lane.b32.xlu0 %v1015, 28
      %v1392 = vpop.permute.xlu0 %1391
      %1393 = vrot.lane.b32.xlu0 %v1016, 28
      %v1394 = vpop.permute.xlu0 %1393
      %1395 = vrot.lane.b32.xlu0 %v1017, 28
      %v1396 = vpop.permute.xlu0 %1395
      %1397 = vrot.lane.b32.xlu0 %v1018, 28
      %v1398 = vpop.permute.xlu0 %1397
      %1399 = vrot.lane.b32.xlu0 %v1019, 28
      %v1400 = vpop.permute.xlu0 %1399
      %1401 = vrot.lane.b32.xlu0 %v1020, 28
      %v1402 = vpop.permute.xlu0 %1401
      %1403 = vrot.lane.b32.xlu0 %v1021, 28
      %v1404 = vpop.permute.xlu0 %1403
      %1405 = vrot.lane.b32.xlu0 %v1022, 28
      %v1406 = vpop.permute.xlu0 %1405
      %1423 = vrot.lane.b32.xlu0 %v1055, 32
      %v1424 = vpop.permute.xlu0 %1423
      %1425 = vrot.lane.b32.xlu0 %v1056, 32
      %v1426 = vpop.permute.xlu0 %1425
      %1427 = vrot.lane.b32.xlu0 %v1057, 32
      %v1428 = vpop.permute.xlu0 %1427
      %1429 = vrot.lane.b32.xlu0 %v1058, 32
      %v1430 = vpop.permute.xlu0 %1429
      %1431 = vrot.lane.b32.xlu0 %v1059, 32
      %v1432 = vpop.permute.xlu0 %1431
      %1433 = vrot.lane.b32.xlu0 %v1060, 32
      %v1434 = vpop.permute.xlu0 %1433
      %1435 = vrot.lane.b32.xlu0 %v1061, 32
      %v1436 = vpop.permute.xlu0 %1435
      %1437 = vrot.lane.b32.xlu0 %v1062, 32
      %v1438 = vpop.permute.xlu0 %1437
      %1439 = vrot.lane.b32.xlu0 %v1063, 32
      %v1440 = vpop.permute.xlu0 %1439
      %1441 = vrot.lane.b32.xlu0 %v1064, 32
      %v1442 = vpop.permute.xlu0 %1441
      %1443 = vrot.lane.b32.xlu0 %v1065, 32
      %v1444 = vpop.permute.xlu0 %1443
      %1445 = vrot.lane.b32.xlu0 %v1066, 32
      %v1446 = vpop.permute.xlu0 %1445
      %1447 = vrot.lane.b32.xlu0 %v1067, 32
      %v1448 = vpop.permute.xlu0 %1447
      %1449 = vrot.lane.b32.xlu0 %v1068, 32
      %v1450 = vpop.permute.xlu0 %1449
      %1451 = vrot.lane.b32.xlu0 %v1069, 32
      %v1452 = vpop.permute.xlu0 %1451
      %1453 = vrot.lane.b32.xlu0 %v1070, 32
      %v1454 = vpop.permute.xlu0 %1453
      %v1457 = vsel %vm411, %v670, %v1088
      %v1460 = vsel %vm411, %v671, %v1090
      %v1463 = vsel %vm411, %v672, %v1092
      %v1466 = vsel %vm411, %v673, %v1094
      %v1469 = vsel %vm411, %v674, %v1096
      %v1472 = vsel %vm411, %v675, %v1098
      %v1475 = vsel %vm411, %v676, %v1100
      %v1478 = vsel %vm411, %v677, %v1102
      %v1481 = vsel %vm411, %v678, %v1104
      %v1484 = vsel %vm411, %v679, %v1106
      %v1487 = vsel %vm411, %v680, %v1108
      %v1490 = vsel %vm411, %v681, %v1110
      %v1493 = vsel %vm411, %v682, %v1112
      %v1496 = vsel %vm411, %v683, %v1114
      %v1499 = vsel %vm411, %v684, %v1116
      %v1502 = vsel %vm411, %v685, %v1118
      %vm1503 = vcmask 64512
      %v1505 = vsel %vm1503, %v1457, %v1136
      %v1507 = vsel %vm1503, %v1460, %v1138
      %v1509 = vsel %vm1503, %v1463, %v1140
      %v1511 = vsel %vm1503, %v1466, %v1142
      %v1513 = vsel %vm1503, %v1469, %v1144
      %v1515 = vsel %vm1503, %v1472, %v1146
      %v1517 = vsel %vm1503, %v1475, %v1148
      %v1519 = vsel %vm1503, %v1478, %v1150
      %v1521 = vsel %vm1503, %v1481, %v1152
      %v1523 = vsel %vm1503, %v1484, %v1154
      %v1525 = vsel %vm1503, %v1487, %v1156
      %v1527 = vsel %vm1503, %v1490, %v1158
      %v1529 = vsel %vm1503, %v1493, %v1160
      %v1531 = vsel %vm1503, %v1496, %v1162
      %v1533 = vsel %vm1503, %v1499, %v1164
      %v1535 = vsel %vm1503, %v1502, %v1166
      %vm1536 = vcmask 97280
      %v1538 = vsel %vm1536, %v1505, %v1184
      %v1540 = vsel %vm1536, %v1507, %v1186
      %v1542 = vsel %vm1536, %v1509, %v1188
      %v1544 = vsel %vm1536, %v1511, %v1190
      %v1546 = vsel %vm1536, %v1513, %v1192
      %v1548 = vsel %vm1536, %v1515, %v1194
      %v1550 = vsel %vm1536, %v1517, %v1196
      %v1552 = vsel %vm1536, %v1519, %v1198
      %v1554 = vsel %vm1536, %v1521, %v1200
      %v1556 = vsel %vm1536, %v1523, %v1202
      %v1558 = vsel %vm1536, %v1525, %v1204
      %v1560 = vsel %vm1536, %v1527, %v1206
      %v1562 = vsel %vm1536, %v1529, %v1208
      %v1564 = vsel %vm1536, %v1531, %v1210
      %v1566 = vsel %vm1536, %v1533, %v1212
      %v1568 = vsel %vm1536, %v1535, %v1214
      %vm1569 = vcmask 130048
      %v1571 = vsel %vm1569, %v1538, %v1232
      %v1573 = vsel %vm1569, %v1540, %v1234
      %v1575 = vsel %vm1569, %v1542, %v1236
      %v1577 = vsel %vm1569, %v1544, %v1238
      %v1579 = vsel %vm1569, %v1546, %v1240
      %v1581 = vsel %vm1569, %v1548, %v1242
      %v1583 = vsel %vm1569, %v1550, %v1244
      %v1585 = vsel %vm1569, %v1552, %v1246
      %v1587 = vsel %vm1569, %v1554, %v1248
      %v1589 = vsel %vm1569, %v1556, %v1250
      %v1591 = vsel %vm1569, %v1558, %v1252
      %v1593 = vsel %vm1569, %v1560, %v1254
      %v1595 = vsel %vm1569, %v1562, %v1256
      %v1597 = vsel %vm1569, %v1564, %v1258
      %v1599 = vsel %vm1569, %v1566, %v1260
      %v1601 = vsel %vm1569, %v1568, %v1262
      %vm1602 = vcmask 162816
      %v1604 = vsel %vm1602, %v1571, %v1280
      %v1606 = vsel %vm1602, %v1573, %v1282
      %v1608 = vsel %vm1602, %v1575, %v1284
      %v1610 = vsel %vm1602, %v1577, %v1286
      %v1612 = vsel %vm1602, %v1579, %v1288
      %v1614 = vsel %vm1602, %v1581, %v1290
      %v1616 = vsel %vm1602, %v1583, %v1292
      %v1618 = vsel %vm1602, %v1585, %v1294
      %v1620 = vsel %vm1602, %v1587, %v1296
      %v1622 = vsel %vm1602, %v1589, %v1298
      %v1624 = vsel %vm1602, %v1591, %v1300
      %v1626 = vsel %vm1602, %v1593, %v1302
      %v1628 = vsel %vm1602, %v1595, %v1304
      %v1630 = vsel %vm1602, %v1597, %v1306
      %v1632 = vsel %vm1602, %v1599, %v1308
      %v1634 = vsel %vm1602, %v1601, %v1310
      %vm1635 = vcmask 195584
      %v1637 = vsel %vm1635, %v1604, %v1328
      %v1639 = vsel %vm1635, %v1606, %v1330
      %v1641 = vsel %vm1635, %v1608, %v1332
      %v1643 = vsel %vm1635, %v1610, %v1334
      %v1645 = vsel %vm1635, %v1612, %v1336
      %v1647 = vsel %vm1635, %v1614, %v1338
      %v1649 = vsel %vm1635, %v1616, %v1340
      %v1651 = vsel %vm1635, %v1618, %v1342
      %v1653 = vsel %vm1635, %v1620, %v1344
      %v1655 = vsel %vm1635, %v1622, %v1346
      %v1657 = vsel %vm1635, %v1624, %v1348
      %v1659 = vsel %vm1635, %v1626, %v1350
      %v1661 = vsel %vm1635, %v1628, %v1352
      %v1663 = vsel %vm1635, %v1630, %v1354
      %v1665 = vsel %vm1635, %v1632, %v1356
      %v1667 = vsel %vm1635, %v1634, %v1358
      %vm1668 = vcmask 228352
      %v1670 = vsel %vm1668, %v1637, %v1376
      %v1672 = vsel %vm1668, %v1639, %v1378
      %v1674 = vsel %vm1668, %v1641, %v1380
      %v1676 = vsel %vm1668, %v1643, %v1382
      %v1678 = vsel %vm1668, %v1645, %v1384
      %v1680 = vsel %vm1668, %v1647, %v1386
      %v1682 = vsel %vm1668, %v1649, %v1388
      %v1684 = vsel %vm1668, %v1651, %v1390
      %v1686 = vsel %vm1668, %v1653, %v1392
      %v1688 = vsel %vm1668, %v1655, %v1394
      %v1690 = vsel %vm1668, %v1657, %v1396
      %v1692 = vsel %vm1668, %v1659, %v1398
      %v1694 = vsel %vm1668, %v1661, %v1400
      %v1696 = vsel %vm1668, %v1663, %v1402
      %v1698 = vsel %vm1668, %v1665, %v1404
      %v1700 = vsel %vm1668, %v1667, %v1406
      %vm1701 = vcmask 261120
      %v1703 = vsel %vm1701, %v1670, %v1424
      %v1705 = vsel %vm1701, %v1672, %v1426
      %v1707 = vsel %vm1701, %v1674, %v1428
      %v1709 = vsel %vm1701, %v1676, %v1430
      %v1711 = vsel %vm1701, %v1678, %v1432
      %v1713 = vsel %vm1701, %v1680, %v1434
      %v1715 = vsel %vm1701, %v1682, %v1436
      %v1717 = vsel %vm1701, %v1684, %v1438
      %v1719 = vsel %vm1701, %v1686, %v1440
      %v1721 = vsel %vm1701, %v1688, %v1442
      %v1723 = vsel %vm1701, %v1690, %v1444
      %v1725 = vsel %vm1701, %v1692, %v1446
      %v1727 = vsel %vm1701, %v1694, %v1448
      %v1729 = vsel %vm1701, %v1696, %v1450
      %v1731 = vsel %vm1701, %v1698, %v1452
      %v1733 = vsel %vm1701, %v1700, %v1454
      %v1739 = vunpack.c.l.b16 %v633
      %v1740 = vunpack.c.l.b16 %v634
      %v1741 = vunpack.c.l.b16 %v635
      %v1742 = vunpack.c.l.b16 %v636
      %v1743 = vunpack.c.l.b16 %v637
      %v1744 = vpack.c.b16 %v1740, %v1739
      %v1745 = vpack.c.b16 %v1742, %v1741
      %v1746 = vpack.c.b16 %v1743, %v1743
      %vm1749 = vcmask 293888
      %v1750 = vsel %vm1749, %v1703, 0
      %v1752 = vsel %vm1749, %v1705, 0
      %v1754 = vsel %vm1749, %v1707, 0
      %v1756 = vsel %vm1749, %v1709, 0
      %v1758 = vsel %vm1749, %v1711, 0
      %v1760 = vsel %vm1749, %v1713, 0
      %v1762 = vsel %vm1749, %v1715, 0
      %v1764 = vsel %vm1749, %v1717, 0
      %v1766 = vsel %vm1749, %v1719, 0
      %v1768 = vsel %vm1749, %v1721, 0
      %v1770 = vsel %vm1749, %v1723, 0
      %v1772 = vsel %vm1749, %v1725, 0
      %v1774 = vsel %vm1749, %v1727, 0
      %v1776 = vsel %vm1749, %v1729, 0
      %v1778 = vsel %vm1749, %v1731, 0
      %v1780 = vsel %vm1749, %v1733, 0
      %vm1782 = vcmask 1041408
      %v1784 = vsel %vm1782, %v1746, 0
      %1786 = vmatprep.subr.bf16.mxu0 0
      %1787 = vmatpush1.bf16.msra.mxu0 %v1744
      %1788 = vmatprep.subr.bf16.mxu0 0
      %1789 = vmatpush1.bf16.msra.mxu0 %v1745
      %1790 = vmatprep.subr.bf16.mxu0 0
      %1791 = vmatpush1.bf16.msra.mxu0 %v1784
      %1792 = vmatprep.subr.bf16.mxu0 0
      %1793 = vmatpush1.bf16.msra.mxu0 0
      %1794 = vmatprep.subr.bf16.mxu0 0
      %1795 = vmatpush1.bf16.msra.mxu0 0
      %1796 = vmatprep.subr.bf16.mxu0 0
      %1797 = vmatpush1.bf16.msra.mxu0 0
      %1798 = vmatprep.subr.bf16.mxu0 0
      %1799 = vmatpush1.bf16.msra.mxu0 0
      %1800 = vmatprep.subr.bf16.mxu0 0
      %1801 = vmatpush1.bf16.msra.mxu0 0
      %1802 = vmatprep.subr.bf16.mxu0 0
      %1803 = vmatpush1.bf16.msra.mxu0 0
      %1804 = vmatprep.subr.bf16.mxu0 0
      %1805 = vmatpush1.bf16.msra.mxu0 0
      %1806 = vmatprep.subr.bf16.mxu0 0
      %1807 = vmatpush1.bf16.msra.mxu0 0
      %1808 = vmatprep.subr.bf16.mxu0 0
      %1809 = vmatpush1.bf16.msra.mxu0 0
      %1810 = vmatprep.subr.bf16.mxu0 0
      %1811 = vmatpush1.bf16.msra.mxu0 0
      %1812 = vmatprep.subr.bf16.mxu0 0
      %1813 = vmatpush1.bf16.msra.mxu0 0
      %1814 = vmatprep.subr.bf16.mxu0 0
      %1815 = vmatpush1.bf16.msra.mxu0 0
      %1816 = vmatprep.subr.bf16.mxu0 0
      %1817 = vmatpush1.bf16.msra.mxu0 0
      %1818 = vmatprep.mubr.bf16.mxu0 0
      %1819 = vmatmul.mubr.bf16.gmra.mrb[0].mxu0 %v1750
      %v1820 = vpop.f32.mrb[0].mxu0
      %v1821 = vadd.f32 0.0, %v1820
      %v1822 = vpop.f32.mrb[0].mxu0
      %v1823 = vpop.f32.mrb[0].mxu0
      %v1824 = vadd.f32 0.0, %v1823
      %v1825 = vpop.f32.mrb[0].mxu0
      %1826 = vmatprep.mubr.bf16.mxu0 0
      %1827 = vmatmul.mubr.bf16.gmra.mrb[0].mxu0 %v1752
      %v1828 = vpop.f32.mrb[0].mxu0
      %v1829 = vadd.f32 0.0, %v1828
      %v1830 = vpop.f32.mrb[0].mxu0
      %v1831 = vpop.f32.mrb[0].mxu0
      %v1832 = vadd.f32 0.0, %v1831
      %v1833 = vpop.f32.mrb[0].mxu0
      %1834 = vmatprep.mubr.bf16.mxu0 0
      %1835 = vmatmul.mubr.bf16.gmra.mrb[0].mxu0 %v1754
      %v1836 = vpop.f32.mrb[0].mxu0
      %v1837 = vadd.f32 0.0, %v1836
      %v1838 = vpop.f32.mrb[0].mxu0
      %v1839 = vpop.f32.mrb[0].mxu0
      %v1840 = vadd.f32 0.0, %v1839
      %v1841 = vpop.f32.mrb[0].mxu0
      %1842 = vmatprep.mubr.bf16.mxu0 0
      %1843 = vmatmul.mubr.bf16.gmra.mrb[0].mxu0 %v1756
      %v1844 = vpop.f32.mrb[0].mxu0
      %v1845 = vadd.f32 0.0, %v1844
      %v1846 = vpop.f32.mrb[0].mxu0
      %v1847 = vpop.f32.mrb[0].mxu0
      %v1848 = vadd.f32 0.0, %v1847
      %v1849 = vpop.f32.mrb[0].mxu0
      %1850 = vmatprep.mubr.bf16.mxu0 0
      %1851 = vmatmul.mubr.bf16.gmra.mrb[0].mxu0 %v1758
      %v1852 = vpop.f32.mrb[0].mxu0
      %v1853 = vadd.f32 0.0, %v1852
      %v1854 = vpop.f32.mrb[0].mxu0
      %v1855 = vpop.f32.mrb[0].mxu0
      %v1856 = vadd.f32 0.0, %v1855
      %v1857 = vpop.f32.mrb[0].mxu0
      %1858 = vmatprep.mubr.bf16.mxu0 0
      %1859 = vmatmul.mubr.bf16.gmra.mrb[0].mxu0 %v1760
      %v1860 = vpop.f32.mrb[0].mxu0
      %v1861 = vadd.f32 0.0, %v1860
      %v1862 = vpop.f32.mrb[0].mxu0
      %v1863 = vpop.f32.mrb[0].mxu0
      %v1864 = vadd.f32 0.0, %v1863
      %v1865 = vpop.f32.mrb[0].mxu0
      %1866 = vmatprep.mubr.bf16.mxu0 0
      %1867 = vmatmul.mubr.bf16.gmra.mrb[0].mxu0 %v1762
      %v1868 = vpop.f32.mrb[0].mxu0
      %v1869 = vadd.f32 0.0, %v1868
      %v1870 = vpop.f32.mrb[0].mxu0
      %v1871 = vpop.f32.mrb[0].mxu0
      %v1872 = vadd.f32 0.0, %v1871
      %v1873 = vpop.f32.mrb[0].mxu0
      %1874 = vmatprep.mubr.bf16.mxu0 0
      %1875 = vmatmul.mubr.bf16.gmra.mrb[0].mxu0 %v1764
      %v1876 = vpop.f32.mrb[0].mxu0
      %v1877 = vadd.f32 0.0, %v1876
      %v1878 = vpop.f32.mrb[0].mxu0
      %v1879 = vpop.f32.mrb[0].mxu0
      %v1880 = vadd.f32 0.0, %v1879
      %v1881 = vpop.f32.mrb[0].mxu0
      %1882 = vmatprep.mubr.bf16.mxu0 0
      %1883 = vmatmul.mubr.bf16.gmra.mrb[0].mxu0 %v1766
      %v1884 = vpop.f32.mrb[0].mxu0
      %v1885 = vadd.f32 0.0, %v1884
      %v1886 = vpop.f32.mrb[0].mxu0
      %v1887 = vpop.f32.mrb[0].mxu0
      %v1888 = vadd.f32 0.0, %v1887
      %v1889 = vpop.f32.mrb[0].mxu0
      %1890 = vmatprep.mubr.bf16.mxu0 0
      %1891 = vmatmul.mubr.bf16.gmra.mrb[0].mxu0 %v1768
      %v1892 = vpop.f32.mrb[0].mxu0
      %v1893 = vadd.f32 0.0, %v1892
      %v1894 = vpop.f32.mrb[0].mxu0
      %v1895 = vpop.f32.mrb[0].mxu0
      %v1896 = vadd.f32 0.0, %v1895
      %v1897 = vpop.f32.mrb[0].mxu0
      %1898 = vmatprep.mubr.bf16.mxu0 0
      %1899 = vmatmul.mubr.bf16.gmra.mrb[0].mxu0 %v1770
      %v1900 = vpop.f32.mrb[0].mxu0
      %v1901 = vadd.f32 0.0, %v1900
      %v1902 = vpop.f32.mrb[0].mxu0
      %v1903 = vpop.f32.mrb[0].mxu0
      %v1904 = vadd.f32 0.0, %v1903
      %v1905 = vpop.f32.mrb[0].mxu0
      %1906 = vmatprep.mubr.bf16.mxu0 0
      %1907 = vmatmul.mubr.bf16.gmra.mrb[0].mxu0 %v1772
      %v1908 = vpop.f32.mrb[0].mxu0
      %v1909 = vadd.f32 0.0, %v1908
      %v1910 = vpop.f32.mrb[0].mxu0
      %v1911 = vpop.f32.mrb[0].mxu0
      %v1912 = vadd.f32 0.0, %v1911
      %v1913 = vpop.f32.mrb[0].mxu0
      %1914 = vmatprep.mubr.bf16.mxu0 0
      %1915 = vmatmul.mubr.bf16.gmra.mrb[0].mxu0 %v1774
      %v1916 = vpop.f32.mrb[0].mxu0
      %v1917 = vadd.f32 0.0, %v1916
      %v1918 = vpop.f32.mrb[0].mxu0
      %v1919 = vpop.f32.mrb[0].mxu0
      %v1920 = vadd.f32 0.0, %v1919
      %v1921 = vpop.f32.mrb[0].mxu0
      %1922 = vmatprep.mubr.bf16.mxu0 0
      %1923 = vmatmul.mubr.bf16.gmra.mrb[0].mxu0 %v1776
      %v1924 = vpop.f32.mrb[0].mxu0
      %v1925 = vadd.f32 0.0, %v1924
      %v1926 = vpop.f32.mrb[0].mxu0
      %v1927 = vpop.f32.mrb[0].mxu0
      %v1928 = vadd.f32 0.0, %v1927
      %v1929 = vpop.f32.mrb[0].mxu0
      %1930 = vmatprep.mubr.bf16.mxu0 0
      %1931 = vmatmul.mubr.bf16.gmra.mrb[0].mxu0 %v1778
      %v1932 = vpop.f32.mrb[0].mxu0
      %v1933 = vadd.f32 0.0, %v1932
      %v1934 = vpop.f32.mrb[0].mxu0
      %v1935 = vpop.f32.mrb[0].mxu0
      %v1936 = vadd.f32 0.0, %v1935
      %v1937 = vpop.f32.mrb[0].mxu0
      %1938 = vmatprep.mubr.bf16.mxu0 0
      %1939 = vmatmul.mubr.bf16.gmra.mrb[0].mxu0 %v1780
      %v1940 = vpop.f32.mrb[0].mxu0
      %v1941 = vadd.f32 0.0, %v1940
      %v1942 = vpop.f32.mrb[0].mxu0
      %v1943 = vpop.f32.mrb[0].mxu0
      %v1944 = vadd.f32 0.0, %v1943
      %v1945 = vpop.f32.mrb[0].mxu0
      %1946 = vdwg.mxu0
      %v1947 = vpack.c.bf16 %v1824, %v1821
      %v1948 = vpack.c.bf16 %v1832, %v1829
      %v1949 = vpack.c.bf16 %v1840, %v1837
      %v1950 = vpack.c.bf16 %v1848, %v1845
      %v1951 = vpack.c.bf16 %v1856, %v1853
      %v1952 = vpack.c.bf16 %v1864, %v1861
      %v1953 = vpack.c.bf16 %v1872, %v1869
      %v1954 = vpack.c.bf16 %v1880, %v1877
      %v1955 = vpack.c.bf16 %v1888, %v1885
      %v1956 = vpack.c.bf16 %v1896, %v1893
      %v1957 = vpack.c.bf16 %v1904, %v1901
      %v1958 = vpack.c.bf16 %v1912, %v1909
      %v1959 = vpack.c.bf16 %v1920, %v1917
      %v1960 = vpack.c.bf16 %v1928, %v1925
      %v1961 = vpack.c.bf16 %v1936, %v1933
      %v1962 = vpack.c.bf16 %v1944, %v1941
      %v1979 = vunpack.c.l.b16 %v1947
      %v1980 = vunpack.c.h.b16 %v1947
      %v1981 = vunpack.c.l.b16 %v1948
      %v1982 = vunpack.c.h.b16 %v1948
      %v1983 = vunpack.c.l.b16 %v1949
      %v1984 = vunpack.c.h.b16 %v1949
      %v1985 = vunpack.c.l.b16 %v1950
      %v1986 = vunpack.c.h.b16 %v1950
      %v1987 = vunpack.c.l.b16 %v1951
      %v1988 = vunpack.c.h.b16 %v1951
      %v1989 = vunpack.c.l.b16 %v1952
      %v1990 = vunpack.c.h.b16 %v1952
      %v1991 = vunpack.c.l.b16 %v1953
      %v1992 = vunpack.c.h.b16 %v1953
      %v1993 = vunpack.c.l.b16 %v1954
      %v1994 = vunpack.c.h.b16 %v1954
      %v1995 = vunpack.c.l.b16 %v1955
      %v1996 = vunpack.c.h.b16 %v1955
      %v1997 = vunpack.c.l.b16 %v1956
      %v1998 = vunpack.c.h.b16 %v1956
      %v1999 = vunpack.c.l.b16 %v1957
      %v2000 = vunpack.c.h.b16 %v1957
      %v2001 = vunpack.c.l.b16 %v1958
      %v2002 = vunpack.c.h.b16 %v1958
      %v2003 = vunpack.c.l.b16 %v1959
      %v2004 = vunpack.c.h.b16 %v1959
      %v2005 = vunpack.c.l.b16 %v1960
      %v2006 = vunpack.c.h.b16 %v1960
      %v2007 = vunpack.c.l.b16 %v1961
      %v2008 = vunpack.c.h.b16 %v1961
      %v2009 = vunpack.c.l.b16 %v1962
      %v2010 = vunpack.c.h.b16 %v1962
      %v2011 = vpack.c.b16 %v1979, %v1979
      %v2012 = vpack.c.b16 %v1980, %v1980
      %v2013 = vpack.c.b16 %v1981, %v1981
      %v2014 = vpack.c.b16 %v1982, %v1982
      %v2015 = vpack.c.b16 %v1983, %v1983
      %v2016 = vpack.c.b16 %v1984, %v1984
      %v2017 = vpack.c.b16 %v1985, %v1985
      %v2018 = vpack.c.b16 %v1986, %v1986
      %v2019 = vpack.c.b16 %v1987, %v1987
      %v2020 = vpack.c.b16 %v1988, %v1988
      %v2021 = vpack.c.b16 %v1989, %v1989
      %v2022 = vpack.c.b16 %v1990, %v1990
      %v2023 = vpack.c.b16 %v1991, %v1991
      %v2024 = vpack.c.b16 %v1992, %v1992
      %v2025 = vpack.c.b16 %v1993, %v1993
      %v2026 = vpack.c.b16 %v1994, %v1994
      %v2027 = vpack.c.b16 %v1995, %v1995
      %v2028 = vpack.c.b16 %v1996, %v1996
      %v2029 = vpack.c.b16 %v1997, %v1997
      %v2030 = vpack.c.b16 %v1998, %v1998
      %v2031 = vpack.c.b16 %v1999, %v1999
      %v2032 = vpack.c.b16 %v2000, %v2000
      %v2033 = vpack.c.b16 %v2001, %v2001
      %v2034 = vpack.c.b16 %v2002, %v2002
      %v2035 = vpack.c.b16 %v2003, %v2003
      %v2036 = vpack.c.b16 %v2004, %v2004
      %v2037 = vpack.c.b16 %v2005, %v2005
      %v2038 = vpack.c.b16 %v2006, %v2006
      %v2039 = vpack.c.b16 %v2007, %v2007
      %v2040 = vpack.c.b16 %v2008, %v2008
      %v2041 = vpack.c.b16 %v2009, %v2009
      %v2042 = vpack.c.b16 %v2010, %v2010
      %vm2075 = vcmask 27648
      %2076 = vst.msk [vmem:[%s231] sm:$0xf] %vm2075, %v2011
      %2077 = vst.msk [vmem:[%s231 + $0x4] sm:$0xf] %vm2075, %v2012
      %2078 = vst.msk [vmem:[%s231 + $0x8] sm:$0xf] %vm2075, %v2013
      %2079 = vst.msk [vmem:[%s231 + $0xc] sm:$0xf] %vm2075, %v2014
      %2080 = vst.msk [vmem:[%s231 + $0x10] sm:$0xf] %vm2075, %v2015
      %2081 = vst.msk [vmem:[%s231 + $0x14] sm:$0xf] %vm2075, %v2016
      %2082 = vst.msk [vmem:[%s231 + $0x18] sm:$0xf] %vm2075, %v2017
      %2083 = vst.msk [vmem:[%s231 + $0x1c] sm:$0xf] %vm2075, %v2018
      %2084 = vst.msk [vmem:[%s231 + $0x20] sm:$0xf] %vm2075, %v2019
      %2085 = vst.msk [vmem:[%s231 + $0x24] sm:$0xf] %vm2075, %v2020
      %2086 = vst.msk [vmem:[%s231 + $0x28] sm:$0xf] %vm2075, %v2021
      %2087 = vst.msk [vmem:[%s231 + $0x2c] sm:$0xf] %vm2075, %v2022
      %2088 = vst.msk [vmem:[%s231 + $0x30] sm:$0xf] %vm2075, %v2023
      %2089 = vst.msk [vmem:[%s231 + $0x34] sm:$0xf] %vm2075, %v2024
      %2090 = vst.msk [vmem:[%s231 + $0x38] sm:$0xf] %vm2075, %v2025
      %2091 = vst.msk [vmem:[%s231 + $0x3c] sm:$0xf] %vm2075, %v2026
      %2092 = vst.msk [vmem:[%s231 + $0x40] sm:$0xf] %vm2075, %v2027
      %2093 = vst.msk [vmem:[%s231 + $0x44] sm:$0xf] %vm2075, %v2028
      %2094 = vst.msk [vmem:[%s231 + $0x48] sm:$0xf] %vm2075, %v2029
      %2095 = vst.msk [vmem:[%s231 + $0x4c] sm:$0xf] %vm2075, %v2030
      %2096 = vst.msk [vmem:[%s231 + $0x50] sm:$0xf] %vm2075, %v2031
      %2097 = vst.msk [vmem:[%s231 + $0x54] sm:$0xf] %vm2075, %v2032
      %2098 = vst.msk [vmem:[%s231 + $0x58] sm:$0xf] %vm2075, %v2033
      %2099 = vst.msk [vmem:[%s231 + $0x5c] sm:$0xf] %vm2075, %v2034
      %2100 = vst.msk [vmem:[%s231 + $0x60] sm:$0xf] %vm2075, %v2035
      %2101 = vst.msk [vmem:[%s231 + $0x64] sm:$0xf] %vm2075, %v2036
      %2102 = vst.msk [vmem:[%s231 + $0x68] sm:$0xf] %vm2075, %v2037
      %2103 = vst.msk [vmem:[%s231 + $0x6c] sm:$0xf] %vm2075, %v2038
      %2104 = vst.msk [vmem:[%s231 + $0x70] sm:$0xf] %vm2075, %v2039
      %2105 = vst.msk [vmem:[%s231 + $0x74] sm:$0xf] %vm2075, %v2040
      %2106 = vst.msk [vmem:[%s231 + $0x78] sm:$0xf] %vm2075, %v2041
      %2107 = vst.msk [vmem:[%s231 + $0x7c] sm:$0xf] %vm2075, %v2042
      %v2108 = vsel %vm411, %v1821, 0.0
      %v2109 = vsel %vm411, %v1824, 0.0
      %v2110 = vadd.f32 %v2108, %v2109
      %v2111 = vsel %vm411, %v1829, 0.0
      %v2112 = vadd.f32 %v2110, %v2111
      %v2113 = vsel %vm411, %v1832, 0.0
      %v2114 = vadd.f32 %v2112, %v2113
      %v2115 = vsel %vm411, %v1837, 0.0
      %v2116 = vadd.f32 %v2114, %v2115
      %v2117 = vsel %vm411, %v1840, 0.0
      %v2118 = vadd.f32 %v2116, %v2117
      %v2119 = vsel %vm411, %v1845, 0.0
      %v2120 = vadd.f32 %v2118, %v2119
      %v2121 = vsel %vm411, %v1848, 0.0
      %v2122 = vadd.f32 %v2120, %v2121
      %v2123 = vsel %vm411, %v1853, 0.0
      %v2124 = vadd.f32 %v2122, %v2123
      %v2125 = vsel %vm411, %v1856, 0.0
      %v2126 = vadd.f32 %v2124, %v2125
      %v2127 = vsel %vm411, %v1861, 0.0
      %v2128 = vadd.f32 %v2126, %v2127
      %v2129 = vsel %vm411, %v1864, 0.0
      %v2130 = vadd.f32 %v2128, %v2129
      %v2131 = vsel %vm411, %v1869, 0.0
      %v2132 = vadd.f32 %v2130, %v2131
      %v2133 = vsel %vm411, %v1872, 0.0
      %v2134 = vadd.f32 %v2132, %v2133
      %v2135 = vsel %vm411, %v1877, 0.0
      %v2136 = vadd.f32 %v2134, %v2135
      %v2137 = vsel %vm411, %v1880, 0.0
      %v2138 = vadd.f32 %v2136, %v2137
      %v2139 = vsel %vm411, %v1885, 0.0
      %v2140 = vadd.f32 %v2138, %v2139
      %v2141 = vsel %vm411, %v1888, 0.0
      %v2142 = vadd.f32 %v2140, %v2141
      %v2143 = vsel %vm411, %v1893, 0.0
      %v2144 = vadd.f32 %v2142, %v2143
      %v2145 = vsel %vm411, %v1896, 0.0
      %v2146 = vadd.f32 %v2144, %v2145
      %v2147 = vsel %vm411, %v1901, 0.0
      %v2148 = vadd.f32 %v2146, %v2147
      %v2149 = vsel %vm411, %v1904, 0.0
      %v2150 = vadd.f32 %v2148, %v2149
      %v2151 = vsel %vm411, %v1909, 0.0
      %v2152 = vadd.f32 %v2150, %v2151
      %v2153 = vsel %vm411, %v1912, 0.0
      %v2154 = vadd.f32 %v2152, %v2153
      %v2155 = vsel %vm411, %v1917, 0.0
      %v2156 = vadd.f32 %v2154, %v2155
      %v2157 = vsel %vm411, %v1920, 0.0
      %v2158 = vadd.f32 %v2156, %v2157
      %v2159 = vsel %vm411, %v1925, 0.0
      %v2160 = vadd.f32 %v2158, %v2159
      %v2161 = vsel %vm411, %v1928, 0.0
      %v2162 = vadd.f32 %v2160, %v2161
      %v2163 = vsel %vm411, %v1933, 0.0
      %v2164 = vadd.f32 %v2162, %v2163
      %v2165 = vsel %vm411, %v1936, 0.0
      %v2166 = vadd.f32 %v2164, %v2165
      %v2167 = vsel %vm411, %v1941, 0.0
      %v2168 = vadd.f32 %v2166, %v2167
      %v2169 = vsel %vm411, %v1944, 0.0
      %v2170 = vadd.f32 %v2168, %v2169
      %v2171 = vrot.slane %v2170, 4
      %v2172 = vadd.f32 %v2170, %v2171
      %v2173 = vrot.slane %v2172, 2
      %v2174 = vadd.f32 %v2172, %v2173
      %v2175 = vrot.slane %v2174, 1
      %v2176 = vadd.f32 %v2174, %v2175
      %v2177 = vmul.f32 %v1821, %v1821
      %v2178 = vmul.f32 %v1824, %v1824
      %v2179 = vmul.f32 %v1829, %v1829
      %v2180 = vmul.f32 %v1832, %v1832
      %v2181 = vmul.f32 %v1837, %v1837
      %v2182 = vmul.f32 %v1840, %v1840
      %v2183 = vmul.f32 %v1845, %v1845
      %v2184 = vmul.f32 %v1848, %v1848
      %v2185 = vmul.f32 %v1853, %v1853
      %v2186 = vmul.f32 %v1856, %v1856
      %v2187 = vmul.f32 %v1861, %v1861
      %v2188 = vmul.f32 %v1864, %v1864
      %v2189 = vmul.f32 %v1869, %v1869
      %v2190 = vmul.f32 %v1872, %v1872
      %v2191 = vmul.f32 %v1877, %v1877
      %v2192 = vmul.f32 %v1880, %v1880
      %v2193 = vmul.f32 %v1885, %v1885
      %v2194 = vmul.f32 %v1888, %v1888
      %v2195 = vmul.f32 %v1893, %v1893
      %v2196 = vmul.f32 %v1896, %v1896
      %v2197 = vmul.f32 %v1901, %v1901
      %v2198 = vmul.f32 %v1904, %v1904
      %v2199 = vmul.f32 %v1909, %v1909
      %v2200 = vmul.f32 %v1912, %v1912
      %v2201 = vmul.f32 %v1917, %v1917
      %v2202 = vmul.f32 %v1920, %v1920
      %v2203 = vmul.f32 %v1925, %v1925
      %v2204 = vmul.f32 %v1928, %v1928
      %v2205 = vmul.f32 %v1933, %v1933
      %v2206 = vmul.f32 %v1936, %v1936
      %v2207 = vmul.f32 %v1941, %v1941
      %v2208 = vmul.f32 %v1944, %v1944
      %v2209 = vsel %vm411, %v2177, 0.0
      %v2210 = vsel %vm411, %v2178, 0.0
      %v2211 = vadd.f32 %v2209, %v2210
      %v2212 = vsel %vm411, %v2179, 0.0
      %v2213 = vadd.f32 %v2211, %v2212
      %v2214 = vsel %vm411, %v2180, 0.0
      %v2215 = vadd.f32 %v2213, %v2214
      %v2216 = vsel %vm411, %v2181, 0.0
      %v2217 = vadd.f32 %v2215, %v2216
      %v2218 = vsel %vm411, %v2182, 0.0
      %v2219 = vadd.f32 %v2217, %v2218
      %v2220 = vsel %vm411, %v2183, 0.0
      %v2221 = vadd.f32 %v2219, %v2220
      %v2222 = vsel %vm411, %v2184, 0.0
      %v2223 = vadd.f32 %v2221, %v2222
      %v2224 = vsel %vm411, %v2185, 0.0
      %v2225 = vadd.f32 %v2223, %v2224
      %v2226 = vsel %vm411, %v2186, 0.0
      %v2227 = vadd.f32 %v2225, %v2226
      %v2228 = vsel %vm411, %v2187, 0.0
      %v2229 = vadd.f32 %v2227, %v2228
      %v2230 = vsel %vm411, %v2188, 0.0
      %v2231 = vadd.f32 %v2229, %v2230
      %v2232 = vsel %vm411, %v2189, 0.0
      %v2233 = vadd.f32 %v2231, %v2232
      %v2234 = vsel %vm411, %v2190, 0.0
      %v2235 = vadd.f32 %v2233, %v2234
      %v2236 = vsel %vm411, %v2191, 0.0
      %v2237 = vadd.f32 %v2235, %v2236
      %v2238 = vsel %vm411, %v2192, 0.0
      %v2239 = vadd.f32 %v2237, %v2238
      %v2240 = vsel %vm411, %v2193, 0.0
      %v2241 = vadd.f32 %v2239, %v2240
      %v2242 = vsel %vm411, %v2194, 0.0
      %v2243 = vadd.f32 %v2241, %v2242
      %v2244 = vsel %vm411, %v2195, 0.0
      %v2245 = vadd.f32 %v2243, %v2244
      %v2246 = vsel %vm411, %v2196, 0.0
      %v2247 = vadd.f32 %v2245, %v2246
      %v2248 = vsel %vm411, %v2197, 0.0
      %v2249 = vadd.f32 %v2247, %v2248
      %v2250 = vsel %vm411, %v2198, 0.0
      %v2251 = vadd.f32 %v2249, %v2250
      %v2252 = vsel %vm411, %v2199, 0.0
      %v2253 = vadd.f32 %v2251, %v2252
      %v2254 = vsel %vm411, %v2200, 0.0
      %v2255 = vadd.f32 %v2253, %v2254
      %v2256 = vsel %vm411, %v2201, 0.0
      %v2257 = vadd.f32 %v2255, %v2256
      %v2258 = vsel %vm411, %v2202, 0.0
      %v2259 = vadd.f32 %v2257, %v2258
      %v2260 = vsel %vm411, %v2203, 0.0
      %v2261 = vadd.f32 %v2259, %v2260
      %v2262 = vsel %vm411, %v2204, 0.0
      %v2263 = vadd.f32 %v2261, %v2262
      %v2264 = vsel %vm411, %v2205, 0.0
      %v2265 = vadd.f32 %v2263, %v2264
      %v2266 = vsel %vm411, %v2206, 0.0
      %v2267 = vadd.f32 %v2265, %v2266
      %v2268 = vsel %vm411, %v2207, 0.0
      %v2269 = vadd.f32 %v2267, %v2268
      %v2270 = vsel %vm411, %v2208, 0.0
      %v2271 = vadd.f32 %v2269, %v2270
      %v2272 = vrot.slane %v2271, 4
      %v2273 = vadd.f32 %v2271, %v2272
      %v2274 = vrot.slane %v2273, 2
      %v2275 = vadd.f32 %v2273, %v2274
      %v2276 = vrot.slane %v2275, 1
      %v2277 = vadd.f32 %v2275, %v2276
      %v2278 = vsel %vm454, %v2176, %v2277
      %2279 = vst.msk [vmem:[%s235] sm:$0x3] %vm586, %v2278
      %p2280 = scmp.lt.s32.totalorder %s17, 1
      %s2281 = scalar_select %p2280, %s17, 1
      %s2282 = smul.addr %s2281, 32
      %s2283 = smul.addr %s2282, 4
      %s2284 = scalar_lea.vmem %s4, %s2283
      %p2285 = scmp.lt.s32.totalorder %s17, 1
      %s2286 = scalar_select %p2285, %s17, 1
      %s2287 = smul.addr %s2286, 2
      %s2288 = scalar_lea.vmem %s5, %s2287
      // Predicated region
      $region37: #{basic_block_forward_nhwc.4} parent=35 // pred_check
        %p2289 = pneg %p124
      $region38: #{basic_block_forward_nhwc.4} parent=35 // pred_check_branch
        %2291 = sbr.rel (%p2289) target = $region40
      $region39: #{basic_block_forward_nhwc.4} parent=35 // pred_region
        _
      $region40: #{basic_block_forward_nhwc.4} parent=35 // pred_fallthru
        _
      // Predicated region
      $region41: #{basic_block_forward_nhwc.4} parent=35 // pred_check
        %p2292 = pneg %p150
      $region42: #{basic_block_forward_nhwc.4} parent=35 // pred_check_branch
        %2294 = sbr.rel (%p2292) target = $region44
      $region43: #{basic_block_forward_nhwc.4} parent=35 // pred_region
        _
      $region44: #{basic_block_forward_nhwc.4} parent=35 // pred_fallthru
        _
    $region36: #{basic_block_forward_nhwc.4} parent=5 // pred_fallthru
      _
    %p2295 = scmp.le.s32.totalorder 2, %s12
    // Predicated region
    $region45: #{basic_block_forward_nhwc.4} parent=5 // pred_check
      %p2296 = pneg %p2295
    $region46: #{basic_block_forward_nhwc.4} parent=5 // pred_check_branch
      %2298 = sbr.rel (%p2296) target = $region48
    $region47: #{basic_block_forward_nhwc.4} parent=5 // pred_region
      %s2299 = ssub.s32 %s12, 2
      // Predicated region
      $region49: #{basic_block_forward_nhwc.4} parent=47 // pred_check
        %p2300 = pneg %p130
      $region50: #{basic_block_forward_nhwc.4} parent=47 // pred_check_branch
        %2302 = sbr.rel (%p2300) target = $region52
      $region51: #{basic_block_forward_nhwc.4} parent=47 // pred_region
        %p2303 = scmp.lt.s32.totalorder %s18, 1
        %s2304 = scalar_select %p2303, %s18, 1
        %s2305 = smul.addr %s2304, 32
        %s2306 = smul.addr %s2305, 4
        %s2307 = scalar_lea.vmem %s4, %s2306
      $region52: #{basic_block_forward_nhwc.4} parent=47 // pred_fallthru
        _
      // Predicated region
      $region53: #{basic_block_forward_nhwc.4} parent=47 // pred_check
        %p2308 = pneg %p156
      $region54: #{basic_block_forward_nhwc.4} parent=47 // pred_check_branch
        %2310 = sbr.rel (%p2308) target = $region56
      $region55: #{basic_block_forward_nhwc.4} parent=47 // pred_region
        %p2311 = scmp.lt.s32.totalorder %s18, 1
        %s2312 = scalar_select %p2311, %s18, 1
        %s2313 = smul.addr %s2312, 2
        %s2314 = scalar_lea.vmem %s5, %s2313
      $region56: #{basic_block_forward_nhwc.4} parent=47 // pred_fallthru
        _
    $region48: #{basic_block_forward_nhwc.4} parent=5 // pred_fallthru
      _
  $region6: #{basic_block_forward_nhwc.4} parent=0 // loop_footer
    %s16 = sadd.s32 1, %s12
  $region7: #{basic_block_forward_nhwc.4} parent=0 // loop_footer_branch
    %11 = sbr.rel target = $region3
  $region8: #{basic_block_forward_nhwc.4} parent=0 // loop_exit
    _

// kernel: basic_block_forward_nhwc.3
$region0: #{basic_block_forward_nhwc.3}
  #allocation0 [shape = 'u32[]', space=smem, size = 0x4, offset = 0x4, fixed_abs, tag = 'smem constant byte address 0x4 - core index']
  #allocation1 [shape = 'u32[144,128]{1,0:T(1,128)}', space=vmem, size = 0x12000, scoped, tag = 'internal scratch']
  #allocation2 [shape = 'f32[1,18,25,4]{3,2,1,0:T(8,128)}', space=vmem, size = 0x48000, scoped, tag = 'scratch operand']
  %s0 = inlined_call_operand.vmem [shape: f32[2,16,16,4], index: 0, kind: input, shape index: {}]
  %s1 = inlined_call_operand.vmem [shape: bf16[36,4], index: 1, kind: input, shape index: {}]
  %s2 = inlined_call_operand.vmem [shape: bf16[2,16,16,4], index: 2, kind: output, shape index: {0}]
  %s3 = inlined_call_operand.vmem [shape: f32[2,2,4], index: 3, kind: output, shape index: {1}]
  %4 = xla_tuple %s2, %s3
  %s5 = sld [smem:[#allocation0]]
  $region49: #{basic_block_forward_nhwc.3} parent=0
    _
  %s7 = ssub.s32 1, %s5
  %s8 = scalar_select 0, %s7, %s5
  loop: start=0, step=1, limit=4
  $region2: #{basic_block_forward_nhwc.3} parent=0 // loop_pre_header
    _
  $region3: #{basic_block_forward_nhwc.3} parent=0 // loop_header
    %s10 = sphi 0, %s14
    %p11 = scmp.ge.s32.totalorder %s10, 4
    %s20 = sphi 0, %s22
    %s23 = sphi 0, %s20
    %s24 = sphi 0, %s23
    %s40 = sphi 0, %s24
    %s44 = sphi 0, %s44
    %s46 = sphi 0, %s44
    %s47 = sphi 0, %s46
    %s61 = sphi 0, %s47
    %s67 = sphi 0, %s69
    %s70 = sphi 0, %s67
    %s71 = sphi 0, %s70
    %s87 = sphi 0, %s71
    %s93 = sphi 0, %s95
    %s96 = sphi 0, %s93
    %s97 = sphi 0, %s96
    %s113 = sphi 0, %s97
  $region4: #{basic_block_forward_nhwc.3} parent=0 // loop_header_branch
    %13 = sbr.rel (%p11) target = $region8
  $region5: #{basic_block_forward_nhwc.3} parent=0 // loop_body
    %s15 = ssub.s32 %s10, 1
    %s16 = ssub.s32 %s10, 2
    %s17 = sadd.s32 %s10, 1
    %s18 = ssub.s32 %s10, %s17
    %p19 = scmp.eq.s32.totalorder %s18, 0
    %s21 = sadd.s32 %s20, 1
    %s22 = scalar_select %p19, %s20, %s21
    %p25 = pneg %p19
    %p26 = scmp.eq.s32.totalorder %s10, 1
    %p27 = por %p25, %p26
    %p28 = scmp.ne.s32.totalorder %s20, %s23
    %p29 = scmp.eq.s32.totalorder %s10, 0
    %p30 = por %p28, %p29
    %p31 = scmp.ne.s32.totalorder %s20, %s23
    %p32 = scmp.eq.s32.totalorder %s15, 1
    %p33 = por %p31, %p32
    %p34 = scmp.ne.s32.totalorder %s23, %s24
    %p35 = scmp.eq.s32.totalorder %s15, 0
    %p36 = por %p34, %p35
    %p37 = scmp.ne.s32.totalorder %s23, %s24
    %p38 = scmp.eq.s32.totalorder %s16, 1
    %p39 = por %p37, %p38
    %p41 = scmp.ne.s32.totalorder %s24, %s40
    %p42 = scmp.eq.s32.totalorder %s16, 0
    %p43 = por %p41, %p42
    %s45 = sadd.s32 %s44, 1
    %p48 = scmp.eq.s32.totalorder %s10, 1
    %p49 = scmp.ne.s32.totalorder %s44, %s46
    %p50 = scmp.eq.s32.totalorder %s10, 0
    %p51 = por %p49, %p50
    %p52 = scmp.ne.s32.totalorder %s44, %s46
    %p53 = scmp.eq.s32.totalorder %s15, 1
    %p54 = por %p52, %p53
    %p55 = scmp.ne.s32.totalorder %s46, %s47
    %p56 = scmp.eq.s32.totalorder %s15, 0
    %p57 = por %p55, %p56
    %p58 = scmp.ne.s32.totalorder %s46, %s47
    %p59 = scmp.eq.s32.totalorder %s16, 1
    %p60 = por %p58, %p59
    %p62 = scmp.ne.s32.totalorder %s47, %s61
    %p63 = scmp.eq.s32.totalorder %s16, 0
    %p64 = por %p62, %p63
    %s65 = ssub.s32 %s10, %s17
    %p66 = scmp.eq.s32.totalorder %s65, 0
    %s68 = sadd.s32 %s67, 1
    %s69 = scalar_select %p66, %s67, %s68
    %p72 = pneg %p66
    %p73 = scmp.eq.s32.totalorder %s10, 1
    %p74 = por %p72, %p73
    %p75 = scmp.ne.s32.totalorder %s67, %s70
    %p76 = scmp.eq.s32.totalorder %s10, 0
    %p77 = por %p75, %p76
    %p78 = scmp.ne.s32.totalorder %s67, %s70
    %p79 = scmp.eq.s32.totalorder %s15, 1
    %p80 = por %p78, %p79
    %p81 = scmp.ne.s32.totalorder %s70, %s71
    %p82 = scmp.eq.s32.totalorder %s15, 0
    %p83 = por %p81, %p82
    %p84 = scmp.ne.s32.totalorder %s70, %s71
    %p85 = scmp.eq.s32.totalorder %s16, 1
    %p86 = por %p84, %p85
    %p88 = scmp.ne.s32.totalorder %s71, %s87
    %p89 = scmp.eq.s32.totalorder %s16, 0
    %p90 = por %p88, %p89
    %s91 = ssub.s32 %s10, %s17
    %p92 = scmp.eq.s32.totalorder %s91, 0
    %s94 = sadd.s32 %s93, 1
    %s95 = scalar_select %p92, %s93, %s94
    %p98 = pneg %p92
    %p99 = scmp.eq.s32.totalorder %s10, 1
    %p100 = por %p98, %p99
    %p101 = scmp.ne.s32.totalorder %s93, %s96
    %p102 = scmp.eq.s32.totalorder %s10, 0
    %p103 = por %p101, %p102
    %p104 = scmp.ne.s32.totalorder %s93, %s96
    %p105 = scmp.eq.s32.totalorder %s15, 1
    %p106 = por %p104, %p105
    %p107 = scmp.ne.s32.totalorder %s96, %s97
    %p108 = scmp.eq.s32.totalorder %s15, 0
    %p109 = por %p107, %p108
    %p110 = scmp.ne.s32.totalorder %s96, %s97
    %p111 = scmp.eq.s32.totalorder %s16, 1
    %p112 = por %p110, %p111
    %p114 = scmp.ne.s32.totalorder %s97, %s113
    %p115 = scmp.eq.s32.totalorder %s16, 0
    %p116 = por %p114, %p115
    %p117 = scmp.le.s32.totalorder 1, %s10
    %p118 = scmp.lt.s32.totalorder %s10, 3
    %p119 = pnand %p117, %p118
    %p120 = pneg %p119
    // Predicated region
    $region9: #{basic_block_forward_nhwc.3} parent=5 // pred_check
      _
    $region10: #{basic_block_forward_nhwc.3} parent=5 // pred_check_branch
      %122 = sbr.rel (%p119) target = $region12
    $region11: #{basic_block_forward_nhwc.3} parent=5 // pred_region
      %s123 = ssub.s32 %s10, 1
      // Predicated region
      $region13: #{basic_block_forward_nhwc.3} parent=11 // pred_check
        %p124 = pneg %p57
      $region14: #{basic_block_forward_nhwc.3} parent=11 // pred_check_branch
        %126 = sbr.rel (%p124) target = $region16
      $region15: #{basic_block_forward_nhwc.3} parent=11 // pred_region
        _
      $region16: #{basic_block_forward_nhwc.3} parent=11 // pred_fallthru
        _
    $region12: #{basic_block_forward_nhwc.3} parent=5 // pred_fallthru
      _
    %p127 = scmp.lt.s32.totalorder %s10, 2
    // Predicated region
    $region17: #{basic_block_forward_nhwc.3} parent=5 // pred_check
      %p128 = pneg %p127
    $region18: #{basic_block_forward_nhwc.3} parent=5 // pred_check_branch
      %130 = sbr.rel (%p128) target = $region20
    $region19: #{basic_block_forward_nhwc.3} parent=5 // pred_region
      // Predicated region
      $region21: #{basic_block_forward_nhwc.3} parent=19 // pred_check
        %p131 = pneg %p30
      $region22: #{basic_block_forward_nhwc.3} parent=19 // pred_check_branch
        %133 = sbr.rel (%p131) target = $region24
      $region23: #{basic_block_forward_nhwc.3} parent=19 // pred_region
        %p134 = scmp.lt.s32.totalorder %s10, 1
        %s135 = scalar_select %p134, %s10, 1
        %s136 = smul.addr %s135, 32
        %s137 = smul.addr %s136, 8
        %s138 = scalar_lea.vmem %s0, %s137
      $region24: #{basic_block_forward_nhwc.3} parent=19 // pred_fallthru
        _
    $region20: #{basic_block_forward_nhwc.3} parent=5 // pred_fallthru
      _
    %p139 = scmp.le.s32.totalorder 1, %s10
    %p140 = scmp.lt.s32.totalorder %s10, 3
    %p141 = pnand %p139, %p140
    %p142 = pneg %p141
    // Predicated region
    $region25: #{basic_block_forward_nhwc.3} parent=5 // pred_check
      _
    $region26: #{basic_block_forward_nhwc.3} parent=5 // pred_check_branch
      %144 = sbr.rel (%p141) target = $region28
    $region27: #{basic_block_forward_nhwc.3} parent=5 // pred_region
      %s145 = ssub.s32 %s10, 1
      %p146 = scmp.lt.s32.totalorder %s15, 1
      %s147 = scalar_select %p146, %s15, 1
      %s148 = smul.addr %s147, 32
      %s149 = smul.addr %s148, 8
      %s150 = scalar_lea.vmem %s0, %s149
      %p151 = pneg %p36
      %p152 = pneg %p33
      %p153 = pneg %p57
      %p154 = pneg %p54
      %p155 = pneg %p83
      %p156 = pneg %p80
      %p157 = scmp.lt.s32.totalorder %s15, 1
      %s158 = scalar_select %p157, %s15, 1
      %s159 = smul.addr %s158, 32
      %s160 = smul.addr %s159, 4
      %s161 = scalar_lea.vmem %s2, %s160
      %p162 = pneg %p109
      %p163 = pneg %p106
      %p164 = scmp.lt.s32.totalorder %s15, 1
      %s165 = scalar_select %p164, %s15, 1
      %s166 = smul.addr %s165, 2
      %s167 = scalar_lea.vmem %s3, %s166
      %p168 = scmp.lt.s32.totalorder %s15, 1
      %s169 = scalar_select %p168, %s15, 1
      %s170 = smul.addr %s169, 32
      %s171 = smul.addr %s170, 8
      %s172 = scalar_lea.vmem %s0, %s171
      %p173 = scmp.lt.s32.totalorder %s15, 1
      %s174 = scalar_select %p173, %s15, 1
      %s175 = smul.addr %s174, 32
      %s176 = smul.addr %s175, 4
      %s177 = scalar_lea.vmem %s2, %s176
      %p178 = scmp.lt.s32.totalorder %s15, 1
      %s179 = scalar_select %p178, %s15, 1
      %s180 = smul.addr %s179, 2
      %s181 = scalar_lea.vmem %s3, %s180
      %v183 = vld [vmem:[%s172] sm:$0xff]
      %v184 = vld [vmem:[%s172 + $0x8] sm:$0xff]
      %v185 = vld [vmem:[%s172 + $0x10] sm:$0xff]
      %v186 = vld [vmem:[%s172 + $0x18] sm:$0xff]
      %v187 = vld [vmem:[%s172 + $0x20] sm:$0xff]
      %v188 = vld [vmem:[%s172 + $0x28] sm:$0xff]
      %v189 = vld [vmem:[%s172 + $0x30] sm:$0xff]
      %v190 = vld [vmem:[%s172 + $0x38] sm:$0xff]
      %v191 = vld [vmem:[%s172 + $0x40] sm:$0xff]
      %v192 = vld [vmem:[%s172 + $0x48] sm:$0xff]
      %v193 = vld [vmem:[%s172 + $0x50] sm:$0xff]
      %v194 = vld [vmem:[%s172 + $0x58] sm:$0xff]
      %v195 = vld [vmem:[%s172 + $0x60] sm:$0xff]
      %v196 = vld [vmem:[%s172 + $0x68] sm:$0xff]
      %v197 = vld [vmem:[%s172 + $0x70] sm:$0xff]
      %v198 = vld [vmem:[%s172 + $0x78] sm:$0xff]
      %v199 = vld [vmem:[%s172 + $0x80] sm:$0xff]
      %v200 = vld [vmem:[%s172 + $0x88] sm:$0xff]
      %v201 = vld [vmem:[%s172 + $0x90] sm:$0xff]
      %v202 = vld [vmem:[%s172 + $0x98] sm:$0xff]
      %v203 = vld [vmem:[%s172 + $0xa0] sm:$0xff]
      %v204 = vld [vmem:[%s172 + $0xa8] sm:$0xff]
      %v205 = vld [vmem:[%s172 + $0xb0] sm:$0xff]
      %v206 = vld [vmem:[%s172 + $0xb8] sm:$0xff]
      %v207 = vld [vmem:[%s172 + $0xc0] sm:$0xff]
      %v208 = vld [vmem:[%s172 + $0xc8] sm:$0xff]
      %v209 = vld [vmem:[%s172 + $0xd0] sm:$0xff]
      %v210 = vld [vmem:[%s172 + $0xd8] sm:$0xff]
      %v211 = vld [vmem:[%s172 + $0xe0] sm:$0xff]
      %v212 = vld [vmem:[%s172 + $0xe8] sm:$0xff]
      %v213 = vld [vmem:[%s172 + $0xf0] sm:$0xff]
      %v214 = vld [vmem:[%s172 + $0xf8] sm:$0xff]
      %vm215 = vcmask 31744
      %216 = vst.msk [vmem:[#allocation2] sm:$0xff] %vm215, 0.0
      %217 = vst.msk [vmem:[#allocation2 + $0x8] sm:$0xff] %vm215, 0.0
      %218 = vst.msk [vmem:[#allocation2 + $0x10] sm:$0xff] %vm215, 0.0
      %vm219 = vcmask 24576
      %220 = vst.msk [vmem:[#allocation2 + $0x18] sm:$0x1] %vm219, 0.0
      %s221 = scalar_lea.vmem [#allocation2], 544
      %222 = vst.msk [vmem:[%s221] sm:$0xff] %vm215, 0.0
      %223 = vst.msk [vmem:[%s221 + $0x8] sm:$0xff] %vm215, 0.0
      %224 = vst.msk [vmem:[%s221 + $0x10] sm:$0xff] %vm215, 0.0
      %225 = vst.msk [vmem:[%s221 + $0x18] sm:$0x1] %vm219, 0.0
      %vm258 = vcmask 1040384
      %v259 = vrot.slane %v183, 7
      %v260 = vrot.slane %v184, 7
      %v261 = vsel %vm258, %v259, %v260
      %v262 = vrot.slane %v185, 7
      %v263 = vrot.slane %v186, 7
      %v264 = vsel %vm258, %v262, %v263
      %v265 = vrot.slane %v187, 7
      %v266 = vrot.slane %v188, 7
      %v267 = vsel %vm258, %v265, %v266
      %v268 = vrot.slane %v189, 7
      %v269 = vrot.slane %v190, 7
      %v270 = vsel %vm258, %v268, %v269
      %v271 = vrot.slane %v191, 7
      %v272 = vrot.slane %v192, 7
      %v273 = vsel %vm258, %v271, %v272
      %v274 = vrot.slane %v193, 7
      %v275 = vrot.slane %v194, 7
      %v276 = vsel %vm258, %v274, %v275
      %v277 = vrot.slane %v195, 7
      %v278 = vrot.slane %v196, 7
      %v279 = vsel %vm258, %v277, %v278
      %v280 = vrot.slane %v197, 7
      %v281 = vrot.slane %v198, 7
      %v282 = vsel %vm258, %v280, %v281
      %v283 = vrot.slane %v199, 7
      %v284 = vrot.slane %v200, 7
      %v285 = vsel %vm258, %v283, %v284
      %v286 = vrot.slane %v201, 7
      %v287 = vrot.slane %v202, 7
      %v288 = vsel %vm258, %v286, %v287
      %v289 = vrot.slane %v203, 7
      %v290 = vrot.slane %v204, 7
      %v291 = vsel %vm258, %v289, %v290
      %v292 = vrot.slane %v205, 7
      %v293 = vrot.slane %v206, 7
      %v294 = vsel %vm258, %v292, %v293
      %v295 = vrot.slane %v207, 7
      %v296 = vrot.slane %v208, 7
      %v297 = vsel %vm258, %v295, %v296
      %v298 = vrot.slane %v209, 7
      %v299 = vrot.slane %v210, 7
      %v300 = vsel %vm258, %v298, %v299
      %v301 = vrot.slane %v211, 7
      %v302 = vrot.slane %v212, 7
      %v303 = vsel %vm258, %v301, %v302
      %v304 = vrot.slane %v213, 7
      %v305 = vrot.slane %v214, 7
      %v306 = vsel %vm258, %v304, %v305
      %v355 = vsel %vm258, 0.0, %v259
      %v356 = vsel %vm258, 0.0, %v262
      %v357 = vsel %vm258, 0.0, %v265
      %v358 = vsel %vm258, 0.0, %v268
      %v359 = vsel %vm258, 0.0, %v271
      %v360 = vsel %vm258, 0.0, %v274
      %v361 = vsel %vm258, 0.0, %v277
      %v362 = vsel %vm258, 0.0, %v280
      %v363 = vsel %vm258, 0.0, %v283
      %v364 = vsel %vm258, 0.0, %v286
      %v365 = vsel %vm258, 0.0, %v289
      %v366 = vsel %vm258, 0.0, %v292
      %v367 = vsel %vm258, 0.0, %v295
      %v368 = vsel %vm258, 0.0, %v298
      %v369 = vsel %vm258, 0.0, %v301
      %v370 = vsel %vm258, 0.0, %v304
      %v371 = vsel %vm258, %v260, 0.0
      %v372 = vsel %vm258, %v263, 0.0
      %v373 = vsel %vm258, %v266, 0.0
      %v374 = vsel %vm258, %v269, 0.0
      %v375 = vsel %vm258, %v272, 0.0
      %v376 = vsel %vm258, %v275, 0.0
      %v377 = vsel %vm258, %v278, 0.0
      %v378 = vsel %vm258, %v281, 0.0
      %v379 = vsel %vm258, %v284, 0.0
      %v380 = vsel %vm258, %v287, 0.0
      %v381 = vsel %vm258, %v290, 0.0
      %v382 = vsel %vm258, %v293, 0.0
      %v383 = vsel %vm258, %v296, 0.0
      %v384 = vsel %vm258, %v299, 0.0
      %v385 = vsel %vm258, %v302, 0.0
      %v386 = vsel %vm258, %v305, 0.0
      %s387 = scalar_lea.vmem [#allocation2], 32
      %388 = vst.msk [vmem:[%s387 + $0x7] sm:$0xff] %vm215, %v355
      %389 = vst.msk [vmem:[%s387 + $0xf] sm:$0xff] %vm215, %v261
      %vm390 = vcmask 25600
      %391 = vst.msk [vmem:[%s387 + $0x17] sm:$0x3] %vm390, %v371
      %392 = vst.msk [vmem:[%s387 + $0x27] sm:$0xff] %vm215, %v356
      %393 = vst.msk [vmem:[%s387 + $0x2f] sm:$0xff] %vm215, %v264
      %394 = vst.msk [vmem:[%s387 + $0x37] sm:$0x3] %vm390, %v372
      %395 = vst.msk [vmem:[%s387 + $0x47] sm:$0xff] %vm215, %v357
      %396 = vst.msk [vmem:[%s387 + $0x4f] sm:$0xff] %vm215, %v267
      %397 = vst.msk [vmem:[%s387 + $0x57] sm:$0x3] %vm390, %v373
      %398 = vst.msk [vmem:[%s387 + $0x67] sm:$0xff] %vm215, %v358
      %399 = vst.msk [vmem:[%s387 + $0x6f] sm:$0xff] %vm215, %v270
      %400 = vst.msk [vmem:[%s387 + $0x77] sm:$0x3] %vm390, %v374
      %401 = vst.msk [vmem:[%s387 + $0x87] sm:$0xff] %vm215, %v359
      %402 = vst.msk [vmem:[%s387 + $0x8f] sm:$0xff] %vm215, %v273
      %403 = vst.msk [vmem:[%s387 + $0x97] sm:$0x3] %vm390, %v375
      %404 = vst.msk [vmem:[%s387 + $0xa7] sm:$0xff] %vm215, %v360
      %405 = vst.msk [vmem:[%s387 + $0xaf] sm:$0xff] %vm215, %v276
      %406 = vst.msk [vmem:[%s387 + $0xb7] sm:$0x3] %vm390, %v376
      %407 = vst.msk [vmem:[%s387 + $0xc7] sm:$0xff] %vm215, %v361
      %408 = vst.msk [vmem:[%s387 + $0xcf] sm:$0xff] %vm215, %v279
      %409 = vst.msk [vmem:[%s387 + $0xd7] sm:$0x3] %vm390, %v377
      %410 = vst.msk [vmem:[%s387 + $0xe7] sm:$0xff] %vm215, %v362
      %411 = vst.msk [vmem:[%s387 + $0xef] sm:$0xff] %vm215, %v282
      %412 = vst.msk [vmem:[%s387 + $0xf7] sm:$0x3] %vm390, %v378
      %413 = vst.msk [vmem:[%s387 + $0x107] sm:$0xff] %vm215, %v363
      %414 = vst.msk [vmem:[%s387 + $0x10f] sm:$0xff] %vm215, %v285
      %415 = vst.msk [vmem:[%s387 + $0x117] sm:$0x3] %vm390, %v379
      %416 = vst.msk [vmem:[%s387 + $0x127] sm:$0xff] %vm215, %v364
      %417 = vst.msk [vmem:[%s387 + $0x12f] sm:$0xff] %vm215, %v288
      %418 = vst.msk [vmem:[%s387 + $0x137] sm:$0x3] %vm390, %v380
      %419 = vst.msk [vmem:[%s387 + $0x147] sm:$0xff] %vm215, %v365
      %420 = vst.msk [vmem:[%s387 + $0x14f] sm:$0xff] %vm215, %v291
      %421 = vst.msk [vmem:[%s387 + $0x157] sm:$0x3] %vm390, %v381
      %422 = vst.msk [vmem:[%s387 + $0x167] sm:$0xff] %vm215, %v366
      %423 = vst.msk [vmem:[%s387 + $0x16f] sm:$0xff] %vm215, %v294
      %424 = vst.msk [vmem:[%s387 + $0x177] sm:$0x3] %vm390, %v382
      %425 = vst.msk [vmem:[%s387 + $0x187] sm:$0xff] %vm215, %v367
      %426 = vst.msk [vmem:[%s387 + $0x18f] sm:$0xff] %vm215, %v297
      %427 = vst.msk [vmem:[%s387 + $0x197] sm:$0x3] %vm390, %v383
      %428 = vst.msk [vmem:[%s387 + $0x1a7] sm:$0xff] %vm215, %v368
      %429 = vst.msk [vmem:[%s387 + $0x1af] sm:$0xff] %vm215, %v300
      %430 = vst.msk [vmem:[%s387 + $0x1b7] sm:$0x3] %vm390, %v384
      %431 = vst.msk [vmem:[%s387 + $0x1c7] sm:$0xff] %vm215, %v369
      %432 = vst.msk [vmem:[%s387 + $0x1cf] sm:$0xff] %vm215, %v303
      %433 = vst.msk [vmem:[%s387 + $0x1d7] sm:$0x3] %vm390, %v385
      %434 = vst.msk [vmem:[%s387 + $0x1e7] sm:$0xff] %vm215, %v370
      %435 = vst.msk [vmem:[%s387 + $0x1ef] sm:$0xff] %vm215, %v306
      %436 = vst.msk [vmem:[%s387 + $0x1f7] sm:$0x3] %vm390, %v386
      %v437 = vld [vmem:[%s1] sm:$0xf]
      %v438 = vld [vmem:[%s1 + $0x4] sm:$0xf]
      %v439 = vld [vmem:[%s1 + $0x8] sm:$0xf]
      %v440 = vld [vmem:[%s1 + $0xc] sm:$0xf]
      %v441 = vld [vmem:[%s1 + $0x10] sm:$0x3]
      %v442 = vld [vmem:[#allocation2 + $0x7] sm:$0xff]
      %v443 = vld [vmem:[#allocation2 + $0xf] sm:$0xff]
      %v444 = vld [vmem:[#allocation2 + $0x27] sm:$0xff]
      %v445 = vld [vmem:[#allocation2 + $0x2f] sm:$0xff]
      %v446 = vld [vmem:[#allocation2 + $0x47] sm:$0xff]
      %v447 = vld [vmem:[#allocation2 + $0x4f] sm:$0xff]
      %v448 = vld [vmem:[#allocation2 + $0x67] sm:$0xff]
      %v449 = vld [vmem:[#allocation2 + $0x6f] sm:$0xff]
      %v450 = vld [vmem:[#allocation2 + $0x87] sm:$0xff]
      %v451 = vld [vmem:[#allocation2 + $0x8f] sm:$0xff]
      %v452 = vld [vmem:[#allocation2 + $0xa7] sm:$0xff]
      %v453 = vld [vmem:[#allocation2 + $0xaf] sm:$0xff]
      %v454 = vld [vmem:[#allocation2 + $0xc7] sm:$0xff]
      %v455 = vld [vmem:[#allocation2 + $0xcf] sm:$0xff]
      %v456 = vld [vmem:[#allocation2 + $0xe7] sm:$0xff]
      %v457 = vld [vmem:[#allocation2 + $0xef] sm:$0xff]
      %v458 = vld [vmem:[#allocation2 + $0x107] sm:$0xff]
      %v459 = vld [vmem:[#allocation2 + $0x10f] sm:$0xff]
      %v460 = vld [vmem:[#allocation2 + $0x127] sm:$0xff]
      %v461 = vld [vmem:[#allocation2 + $0x12f] sm:$0xff]
      %v462 = vld [vmem:[#allocation2 + $0x147] sm:$0xff]
      %v463 = vld [vmem:[#allocation2 + $0x14f] sm:$0xff]
      %v464 = vld [vmem:[#allocation2 + $0x167] sm:$0xff]
      %v465 = vld [vmem:[#allocation2 + $0x16f] sm:$0xff]
      %v466 = vld [vmem:[#allocation2 + $0x187] sm:$0xff]
      %v467 = vld [vmem:[#allocation2 + $0x18f] sm:$0xff]
      %v468 = vld [vmem:[#allocation2 + $0x1a7] sm:$0xff]
      %v469 = vld [vmem:[#allocation2 + $0x1af] sm:$0xff]
      %v470 = vld [vmem:[#allocation2 + $0x1c7] sm:$0xff]
      %v471 = vld [vmem:[#allocation2 + $0x1cf] sm:$0xff]
      %v472 = vld [vmem:[#allocation2 + $0x1e7] sm:$0xff]
      %v473 = vld [vmem:[#allocation2 + $0x1ef] sm:$0xff]
      %v474 = vpack.c.bf16 %v443, %v442
      %v475 = vpack.c.bf16 %v445, %v444
      %v476 = vpack.c.bf16 %v447, %v446
      %v477 = vpack.c.bf16 %v449, %v448
      %v478 = vpack.c.bf16 %v451, %v450
      %v479 = vpack.c.bf16 %v453, %v452
      %v480 = vpack.c.bf16 %v455, %v454
      %v481 = vpack.c.bf16 %v457, %v456
      %v482 = vpack.c.bf16 %v459, %v458
      %v483 = vpack.c.bf16 %v461, %v460
      %v484 = vpack.c.bf16 %v463, %v462
      %v485 = vpack.c.bf16 %v465, %v464
      %v486 = vpack.c.bf16 %v467, %v466
      %v487 = vpack.c.bf16 %v469, %v468
      %v488 = vpack.c.bf16 %v471, %v470
      %v489 = vpack.c.bf16 %v473, %v472
      %v490 = vld [vmem:[#allocation2 + $0x8] sm:$0xff]
      %v491 = vld [vmem:[#allocation2 + $0x10] sm:$0xff]
      %v492 = vld [vmem:[#allocation2 + $0x28] sm:$0xff]
      %v493 = vld [vmem:[#allocation2 + $0x30] sm:$0xff]
      %v494 = vld [vmem:[#allocation2 + $0x48] sm:$0xff]
      %v495 = vld [vmem:[#allocation2 + $0x50] sm:$0xff]
      %v496 = vld [vmem:[#allocation2 + $0x68] sm:$0xff]
      %v497 = vld [vmem:[#allocation2 + $0x70] sm:$0xff]
      %v498 = vld [vmem:[#allocation2 + $0x88] sm:$0xff]
      %v499 = vld [vmem:[#allocation2 + $0x90] sm:$0xff]
      %v500 = vld [vmem:[#allocation2 + $0xa8] sm:$0xff]
      %v501 = vld [vmem:[#allocation2 + $0xb0] sm:$0xff]
      %v502 = vld [vmem:[#allocation2 + $0xc8] sm:$0xff]
      %v503 = vld [vmem:[#allocation2 + $0xd0] sm:$0xff]
      %v504 = vld [vmem:[#allocation2 + $0xe8] sm:$0xff]
      %v505 = vld [vmem:[#allocation2 + $0xf0] sm:$0xff]
      %v506 = vld [vmem:[#allocation2 + $0x108] sm:$0xff]
      %v507 = vld [vmem:[#allocation2 + $0x110] sm:$0xff]
      %v508 = vld [vmem:[#allocation2 + $0x128] sm:$0xff]
      %v509 = vld [vmem:[#allocation2 + $0x130] sm:$0xff]
      %v510 = vld [vmem:[#allocation2 + $0x148] sm:$0xff]
      %v511 = vld [vmem:[#allocation2 + $0x150] sm:$0xff]
      %v512 = vld [vmem:[#allocation2 + $0x168] sm:$0xff]
      %v513 = vld [vmem:[#allocation2 + $0x170] sm:$0xff]
      %v514 = vld [vmem:[#allocation2 + $0x188] sm:$0xff]
      %v515 = vld [vmem:[#allocation2 + $0x190] sm:$0xff]
      %v516 = vld [vmem:[#allocation2 + $0x1a8] sm:$0xff]
      %v517 = vld [vmem:[#allocation2 + $0x1b0] sm:$0xff]
      %v518 = vld [vmem:[#allocation2 + $0x1c8] sm:$0xff]
      %v519 = vld [vmem:[#allocation2 + $0x1d0] sm:$0xff]
      %v520 = vld [vmem:[#allocation2 + $0x1e8] sm:$0xff]
      %v521 = vld [vmem:[#allocation2 + $0x1f0] sm:$0xff]
      %v522 = vpack.c.bf16 %v491, %v490
      %v523 = vpack.c.bf16 %v493, %v492
      %v524 = vpack.c.bf16 %v495, %v494
      %v525 = vpack.c.bf16 %v497, %v496
      %v526 = vpack.c.bf16 %v499, %v498
      %v527 = vpack.c.bf16 %v501, %v500
      %v528 = vpack.c.bf16 %v503, %v502
      %v529 = vpack.c.bf16 %v505, %v504
      %v530 = vpack.c.bf16 %v507, %v506
      %v531 = vpack.c.bf16 %v509, %v508
      %v532 = vpack.c.bf16 %v511, %v510
      %v533 = vpack.c.bf16 %v513, %v512
      %v534 = vpack.c.bf16 %v515, %v514
      %v535 = vpack.c.bf16 %v517, %v516
      %v536 = vpack.c.bf16 %v519, %v518
      %v537 = vpack.c.bf16 %v521, %v520
      %v538 = vld [vmem:[#allocation2 + $0x9] sm:$0xff]
      %v539 = vld [vmem:[#allocation2 + $0x11] sm:$0xff]
      %v540 = vld [vmem:[#allocation2 + $0x29] sm:$0xff]
      %v541 = vld [vmem:[#allocation2 + $0x31] sm:$0xff]
      %v542 = vld [vmem:[#allocation2 + $0x49] sm:$0xff]
      %v543 = vld [vmem:[#allocation2 + $0x51] sm:$0xff]
      %v544 = vld [vmem:[#allocation2 + $0x69] sm:$0xff]
      %v545 = vld [vmem:[#allocation2 + $0x71] sm:$0xff]
      %v546 = vld [vmem:[#allocation2 + $0x89] sm:$0xff]
      %v547 = vld [vmem:[#allocation2 + $0x91] sm:$0xff]
      %v548 = vld [vmem:[#allocation2 + $0xa9] sm:$0xff]
      %v549 = vld [vmem:[#allocation2 + $0xb1] sm:$0xff]
      %v550 = vld [vmem:[#allocation2 + $0xc9] sm:$0xff]
      %v551 = vld [vmem:[#allocation2 + $0xd1] sm:$0xff]
      %v552 = vld [vmem:[#allocation2 + $0xe9] sm:$0xff]
      %v553 = vld [vmem:[#allocation2 + $0xf1] sm:$0xff]
      %v554 = vld [vmem:[#allocation2 + $0x109] sm:$0xff]
      %v555 = vld [vmem:[#allocation2 + $0x111] sm:$0xff]
      %v556 = vld [vmem:[#allocation2 + $0x129] sm:$0xff]
      %v557 = vld [vmem:[#allocation2 + $0x131] sm:$0xff]
      %v558 = vld [vmem:[#allocation2 + $0x149] sm:$0xff]
      %v559 = vld [vmem:[#allocation2 + $0x151] sm:$0xff]
      %v560 = vld [vmem:[#allocation2 + $0x169] sm:$0xff]
      %v561 = vld [vmem:[#allocation2 + $0x171] sm:$0xff]
      %v562 = vld [vmem:[#allocation2 + $0x189] sm:$0xff]
      %v563 = vld [vmem:[#allocation2 + $0x191] sm:$0xff]
      %v564 = vld [vmem:[#allocation2 + $0x1a9] sm:$0xff]
      %v565 = vld [vmem:[#allocation2 + $0x1b1] sm:$0xff]
      %v566 = vld [vmem:[#allocation2 + $0x1c9] sm:$0xff]
      %v567 = vld [vmem:[#allocation2 + $0x1d1] sm:$0xff]
      %v568 = vld [vmem:[#allocation2 + $0x1e9] sm:$0xff]
      %v569 = vld [vmem:[#allocation2 + $0x1f1] sm:$0xff]
      %v570 = vpack.c.bf16 %v539, %v538
      %v571 = vpack.c.bf16 %v541, %v540
      %v572 = vpack.c.bf16 %v543, %v542
      %v573 = vpack.c.bf16 %v545, %v544
      %v574 = vpack.c.bf16 %v547, %v546
      %v575 = vpack.c.bf16 %v549, %v548
      %v576 = vpack.c.bf16 %v551, %v550
      %v577 = vpack.c.bf16 %v553, %v552
      %v578 = vpack.c.bf16 %v555, %v554
      %v579 = vpack.c.bf16 %v557, %v556
      %v580 = vpack.c.bf16 %v559, %v558
      %v581 = vpack.c.bf16 %v561, %v560
      %v582 = vpack.c.bf16 %v563, %v562
      %v583 = vpack.c.bf16 %v565, %v564
      %v584 = vpack.c.bf16 %v567, %v566
      %v585 = vpack.c.bf16 %v569, %v568
      %v586 = vld [vmem:[%s387 + $0x7] sm:$0xff]
      %v587 = vld [vmem:[%s387 + $0xf] sm:$0xff]
      %v588 = vld [vmem:[%s387 + $0x27] sm:$0xff]
      %v589 = vld [vmem:[%s387 + $0x2f] sm:$0xff]
      %v590 = vld [vmem:[%s387 + $0x47] sm:$0xff]
      %v591 = vld [vmem:[%s387 + $0x4f] sm:$0xff]
      %v592 = vld [vmem:[%s387 + $0x67] sm:$0xff]
      %v593 = vld [vmem:[%s387 + $0x6f] sm:$0xff]
      %v594 = vld [vmem:[%s387 + $0x87] sm:$0xff]
      %v595 = vld [vmem:[%s387 + $0x8f] sm:$0xff]
      %v596 = vld [vmem:[%s387 + $0xa7] sm:$0xff]
      %v597 = vld [vmem:[%s387 + $0xaf] sm:$0xff]
      %v598 = vld [vmem:[%s387 + $0xc7] sm:$0xff]
      %v599 = vld [vmem:[%s387 + $0xcf] sm:$0xff]
      %v600 = vld [vmem:[%s387 + $0xe7] sm:$0xff]
      %v601 = vld [vmem:[%s387 + $0xef] sm:$0xff]
      %v602 = vld [vmem:[%s387 + $0x107] sm:$0xff]
      %v603 = vld [vmem:[%s387 + $0x10f] sm:$0xff]
      %v604 = vld [vmem:[%s387 + $0x127] sm:$0xff]
      %v605 = vld [vmem:[%s387 + $0x12f] sm:$0xff]
      %v606 = vld [vmem:[%s387 + $0x147] sm:$0xff]
      %v607 = vld [vmem:[%s387 + $0x14f] sm:$0xff]
      %v608 = vld [vmem:[%s387 + $0x167] sm:$0xff]
      %v609 = vld [vmem:[%s387 + $0x16f] sm:$0xff]
      %v610 = vld [vmem:[%s387 + $0x187] sm:$0xff]
      %v611 = vld [vmem:[%s387 + $0x18f] sm:$0xff]
      %v612 = vld [vmem:[%s387 + $0x1a7] sm:$0xff]
      %v613 = vld [vmem:[%s387 + $0x1af] sm:$0xff]
      %v614 = vld [vmem:[%s387 + $0x1c7] sm:$0xff]
      %v615 = vld [vmem:[%s387 + $0x1cf] sm:$0xff]
      %v616 = vld [vmem:[%s387 + $0x1e7] sm:$0xff]
      %v617 = vld [vmem:[%s387 + $0x1ef] sm:$0xff]
      %v618 = vpack.c.bf16 %v587, %v586
      %v619 = vpack.c.bf16 %v589, %v588
      %v620 = vpack.c.bf16 %v591, %v590
      %v621 = vpack.c.bf16 %v593, %v592
      %v622 = vpack.c.bf16 %v595, %v594
      %v623 = vpack.c.bf16 %v597, %v596
      %v624 = vpack.c.bf16 %v599, %v598
      %v625 = vpack.c.bf16 %v601, %v600
      %v626 = vpack.c.bf16 %v603, %v602
      %v627 = vpack.c.bf16 %v605, %v604
      %v628 = vpack.c.bf16 %v607, %v606
      %v629 = vpack.c.bf16 %v609, %v608
      %v630 = vpack.c.bf16 %v611, %v610
      %v631 = vpack.c.bf16 %v613, %v612
      %v632 = vpack.c.bf16 %v615, %v614
      %v633 = vpack.c.bf16 %v617, %v616
      %v634 = vld [vmem:[%s387 + $0x8] sm:$0xff]
      %v635 = vld [vmem:[%s387 + $0x10] sm:$0xff]
      %v636 = vld [vmem:[%s387 + $0x28] sm:$0xff]
      %v637 = vld [vmem:[%s387 + $0x30] sm:$0xff]
      %v638 = vld [vmem:[%s387 + $0x48] sm:$0xff]
      %v639 = vld [vmem:[%s387 + $0x50] sm:$0xff]
      %v640 = vld [vmem:[%s387 + $0x68] sm:$0xff]
      %v641 = vld [vmem:[%s387 + $0x70] sm:$0xff]
      %v642 = vld [vmem:[%s387 + $0x88] sm:$0xff]
      %v643 = vld [vmem:[%s387 + $0x90] sm:$0xff]
      %v644 = vld [vmem:[%s387 + $0xa8] sm:$0xff]
      %v645 = vld [vmem:[%s387 + $0xb0] sm:$0xff]
      %v646 = vld [vmem:[%s387 + $0xc8] sm:$0xff]
      %v647 = vld [vmem:[%s387 + $0xd0] sm:$0xff]
      %v648 = vld [vmem:[%s387 + $0xe8] sm:$0xff]
      %v649 = vld [vmem:[%s387 + $0xf0] sm:$0xff]
      %v650 = vld [vmem:[%s387 + $0x108] sm:$0xff]
      %v651 = vld [vmem:[%s387 + $0x110] sm:$0xff]
      %v652 = vld [vmem:[%s387 + $0x128] sm:$0xff]
      %v653 = vld [vmem:[%s387 + $0x130] sm:$0xff]
      %v654 = vld [vmem:[%s387 + $0x148] sm:$0xff]
      %v655 = vld [vmem:[%s387 + $0x150] sm:$0xff]
      %v656 = vld [vmem:[%s387 + $0x168] sm:$0xff]
      %v657 = vld [vmem:[%s387 + $0x170] sm:$0xff]
      %v658 = vld [vmem:[%s387 + $0x188] sm:$0xff]
      %v659 = vld [vmem:[%s387 + $0x190] sm:$0xff]
      %v660 = vld [vmem:[%s387 + $0x1a8] sm:$0xff]
      %v661 = vld [vmem:[%s387 + $0x1b0] sm:$0xff]
      %v662 = vld [vmem:[%s387 + $0x1c8] sm:$0xff]
      %v663 = vld [vmem:[%s387 + $0x1d0] sm:$0xff]
      %v664 = vld [vmem:[%s387 + $0x1e8] sm:$0xff]
      %v665 = vld [vmem:[%s387 + $0x1f0] sm:$0xff]
      %v666 = vpack.c.bf16 %v635, %v634
      %v667 = vpack.c.bf16 %v637, %v636
      %v668 = vpack.c.bf16 %v639, %v638
      %v669 = vpack.c.bf16 %v641, %v640
      %v670 = vpack.c.bf16 %v643, %v642
      %v671 = vpack.c.bf16 %v645, %v644
      %v672 = vpack.c.bf16 %v647, %v646
      %v673 = vpack.c.bf16 %v649, %v648
      %v674 = vpack.c.bf16 %v651, %v650
      %v675 = vpack.c.bf16 %v653, %v652
      %v676 = vpack.c.bf16 %v655, %v654
      %v677 = vpack.c.bf16 %v657, %v656
      %v678 = vpack.c.bf16 %v659, %v658
      %v679 = vpack.c.bf16 %v661, %v660
      %v680 = vpack.c.bf16 %v663, %v662
      %v681 = vpack.c.bf16 %v665, %v664
      %v682 = vld [vmem:[%s387 + $0x9] sm:$0xff]
      %v683 = vld [vmem:[%s387 + $0x11] sm:$0xff]
      %v684 = vld [vmem:[%s387 + $0x29] sm:$0xff]
      %v685 = vld [vmem:[%s387 + $0x31] sm:$0xff]
      %v686 = vld [vmem:[%s387 + $0x49] sm:$0xff]
      %v687 = vld [vmem:[%s387 + $0x51] sm:$0xff]
      %v688 = vld [vmem:[%s387 + $0x69] sm:$0xff]
      %v689 = vld [vmem:[%s387 + $0x71] sm:$0xff]
      %v690 = vld [vmem:[%s387 + $0x89] sm:$0xff]
      %v691 = vld [vmem:[%s387 + $0x91] sm:$0xff]
      %v692 = vld [vmem:[%s387 + $0xa9] sm:$0xff]
      %v693 = vld [vmem:[%s387 + $0xb1] sm:$0xff]
      %v694 = vld [vmem:[%s387 + $0xc9] sm:$0xff]
      %v695 = vld [vmem:[%s387 + $0xd1] sm:$0xff]
      %v696 = vld [vmem:[%s387 + $0xe9] sm:$0xff]
      %v697 = vld [vmem:[%s387 + $0xf1] sm:$0xff]
      %v698 = vld [vmem:[%s387 + $0x109] sm:$0xff]
      %v699 = vld [vmem:[%s387 + $0x111] sm:$0xff]
      %v700 = vld [vmem:[%s387 + $0x129] sm:$0xff]
      %v701 = vld [vmem:[%s387 + $0x131] sm:$0xff]
      %v702 = vld [vmem:[%s387 + $0x149] sm:$0xff]
      %v703 = vld [vmem:[%s387 + $0x151] sm:$0xff]
      %v704 = vld [vmem:[%s387 + $0x169] sm:$0xff]
      %v705 = vld [vmem:[%s387 + $0x171] sm:$0xff]
      %v706 = vld [vmem:[%s387 + $0x189] sm:$0xff]
      %v707 = vld [vmem:[%s387 + $0x191] sm:$0xff]
      %v708 = vld [vmem:[%s387 + $0x1a9] sm:$0xff]
      %v709 = vld [vmem:[%s387 + $0x1b1] sm:$0xff]
      %v710 = vld [vmem:[%s387 + $0x1c9] sm:$0xff]
      %v711 = vld [vmem:[%s387 + $0x1d1] sm:$0xff]
      %v712 = vld [vmem:[%s387 + $0x1e9] sm:$0xff]
      %v713 = vld [vmem:[%s387 + $0x1f1] sm:$0xff]
      %v714 = vpack.c.bf16 %v683, %v682
      %v715 = vpack.c.bf16 %v685, %v684
      %v716 = vpack.c.bf16 %v687, %v686
      %v717 = vpack.c.bf16 %v689, %v688
      %v718 = vpack.c.bf16 %v691, %v690
      %v719 = vpack.c.bf16 %v693, %v692
      %v720 = vpack.c.bf16 %v695, %v694
      %v721 = vpack.c.bf16 %v697, %v696
      %v722 = vpack.c.bf16 %v699, %v698
      %v723 = vpack.c.bf16 %v701, %v700
      %v724 = vpack.c.bf16 %v703, %v702
      %v725 = vpack.c.bf16 %v705, %v704
      %v726 = vpack.c.bf16 %v707, %v706
      %v727 = vpack.c.bf16 %v709, %v708
      %v728 = vpack.c.bf16 %v711, %v710
      %v729 = vpack.c.bf16 %v713, %v712
      %s730 = scalar_lea.vmem [#allocation2], 64
      %v731 = vld [vmem:[%s730 + $0x7] sm:$0xff]
      %v732 = vld [vmem:[%s730 + $0xf] sm:$0xff]
      %v733 = vld [vmem:[%s730 + $0x27] sm:$0xff]
      %v734 = vld [vmem:[%s730 + $0x2f] sm:$0xff]
      %v735 = vld [vmem:[%s730 + $0x47] sm:$0xff]
      %v736 = vld [vmem:[%s730 + $0x4f] sm:$0xff]
      %v737 = vld [vmem:[%s730 + $0x67] sm:$0xff]
      %v738 = vld [vmem:[%s730 + $0x6f] sm:$0xff]
      %v739 = vld [vmem:[%s730 + $0x87] sm:$0xff]
      %v740 = vld [vmem:[%s730 + $0x8f] sm:$0xff]
      %v741 = vld [vmem:[%s730 + $0xa7] sm:$0xff]
      %v742 = vld [vmem:[%s730 + $0xaf] sm:$0xff]
      %v743 = vld [vmem:[%s730 + $0xc7] sm:$0xff]
      %v744 = vld [vmem:[%s730 + $0xcf] sm:$0xff]
      %v745 = vld [vmem:[%s730 + $0xe7] sm:$0xff]
      %v746 = vld [vmem:[%s730 + $0xef] sm:$0xff]
      %v747 = vld [vmem:[%s730 + $0x107] sm:$0xff]
      %v748 = vld [vmem:[%s730 + $0x10f] sm:$0xff]
      %v749 = vld [vmem:[%s730 + $0x127] sm:$0xff]
      %v750 = vld [vmem:[%s730 + $0x12f] sm:$0xff]
      %v751 = vld [vmem:[%s730 + $0x147] sm:$0xff]
      %v752 = vld [vmem:[%s730 + $0x14f] sm:$0xff]
      %v753 = vld [vmem:[%s730 + $0x167] sm:$0xff]
      %v754 = vld [vmem:[%s730 + $0x16f] sm:$0xff]
      %v755 = vld [vmem:[%s730 + $0x187] sm:$0xff]
      %v756 = vld [vmem:[%s730 + $0x18f] sm:$0xff]
      %v757 = vld [vmem:[%s730 + $0x1a7] sm:$0xff]
      %v758 = vld [vmem:[%s730 + $0x1af] sm:$0xff]
      %v759 = vld [vmem:[%s730 + $0x1c7] sm:$0xff]
      %v760 = vld [vmem:[%s730 + $0x1cf] sm:$0xff]
      %v761 = vld [vmem:[%s730 + $0x1e7] sm:$0xff]
      %v762 = vld [vmem:[%s730 + $0x1ef] sm:$0xff]
      %v763 = vpack.c.bf16 %v732, %v731
      %v764 = vpack.c.bf16 %v734, %v733
      %v765 = vpack.c.bf16 %v736, %v735
      %v766 = vpack.c.bf16 %v738, %v737
      %v767 = vpack.c.bf16 %v740, %v739
      %v768 = vpack.c.bf16 %v742, %v741
      %v769 = vpack.c.bf16 %v744, %v743
      %v770 = vpack.c.bf16 %v746, %v745
      %v771 = vpack.c.bf16 %v748, %v747
      %v772 = vpack.c.bf16 %v750, %v749
      %v773 = vpack.c.bf16 %v752, %v751
      %v774 = vpack.c.bf16 %v754, %v753
      %v775 = vpack.c.bf16 %v756, %v755
      %v776 = vpack.c.bf16 %v758, %v757
      %v777 = vpack.c.bf16 %v760, %v759
      %v778 = vpack.c.bf16 %v762, %v761
      %v779 = vld [vmem:[%s730 + $0x8] sm:$0xff]
      %v780 = vld [vmem:[%s730 + $0x10] sm:$0xff]
      %v781 = vld [vmem:[%s730 + $0x28] sm:$0xff]
      %v782 = vld [vmem:[%s730 + $0x30] sm:$0xff]
      %v783 = vld [vmem:[%s730 + $0x48] sm:$0xff]
      %v784 = vld [vmem:[%s730 + $0x50] sm:$0xff]
      %v785 = vld [vmem:[%s730 + $0x68] sm:$0xff]
      %v786 = vld [vmem:[%s730 + $0x70] sm:$0xff]
      %v787 = vld [vmem:[%s730 + $0x88] sm:$0xff]
      %v788 = vld [vmem:[%s730 + $0x90] sm:$0xff]
      %v789 = vld [vmem:[%s730 + $0xa8] sm:$0xff]
      %v790 = vld [vmem:[%s730 + $0xb0] sm:$0xff]
      %v791 = vld [vmem:[%s730 + $0xc8] sm:$0xff]
      %v792 = vld [vmem:[%s730 + $0xd0] sm:$0xff]
      %v793 = vld [vmem:[%s730 + $0xe8] sm:$0xff]
      %v794 = vld [vmem:[%s730 + $0xf0] sm:$0xff]
      %v795 = vld [vmem:[%s730 + $0x108] sm:$0xff]
      %v796 = vld [vmem:[%s730 + $0x110] sm:$0xff]
      %v797 = vld [vmem:[%s730 + $0x128] sm:$0xff]
      %v798 = vld [vmem:[%s730 + $0x130] sm:$0xff]
      %v799 = vld [vmem:[%s730 + $0x148] sm:$0xff]
      %v800 = vld [vmem:[%s730 + $0x150] sm:$0xff]
      %v801 = vld [vmem:[%s730 + $0x168] sm:$0xff]
      %v802 = vld [vmem:[%s730 + $0x170] sm:$0xff]
      %v803 = vld [vmem:[%s730 + $0x188] sm:$0xff]
      %v804 = vld [vmem:[%s730 + $0x190] sm:$0xff]
      %v805 = vld [vmem:[%s730 + $0x1a8] sm:$0xff]
      %v806 = vld [vmem:[%s730 + $0x1b0] sm:$0xff]
      %v807 = vld [vmem:[%s730 + $0x1c8] sm:$0xff]
      %v808 = vld [vmem:[%s730 + $0x1d0] sm:$0xff]
      %v809 = vld [vmem:[%s730 + $0x1e8] sm:$0xff]
      %v810 = vld [vmem:[%s730 + $0x1f0] sm:$0xff]
      %v811 = vpack.c.bf16 %v780, %v779
      %v812 = vpack.c.bf16 %v782, %v781
      %v813 = vpack.c.bf16 %v784, %v783
      %v814 = vpack.c.bf16 %v786, %v785
      %v815 = vpack.c.bf16 %v788, %v787
      %v816 = vpack.c.bf16 %v790, %v789
      %v817 = vpack.c.bf16 %v792, %v791
      %v818 = vpack.c.bf16 %v794, %v793
      %v819 = vpack.c.bf16 %v796, %v795
      %v820 = vpack.c.bf16 %v798, %v797
      %v821 = vpack.c.bf16 %v800, %v799
      %v822 = vpack.c.bf16 %v802, %v801
      %v823 = vpack.c.bf16 %v804, %v803
      %v824 = vpack.c.bf16 %v806, %v805
      %v825 = vpack.c.bf16 %v808, %v807
      %v826 = vpack.c.bf16 %v810, %v809
      %v827 = vld [vmem:[%s730 + $0x9] sm:$0xff]
      %v828 = vld [vmem:[%s730 + $0x11] sm:$0xff]
      %v829 = vld [vmem:[%s730 + $0x29] sm:$0xff]
      %v830 = vld [vmem:[%s730 + $0x31] sm:$0xff]
      %v831 = vld [vmem:[%s730 + $0x49] sm:$0xff]
      %v832 = vld [vmem:[%s730 + $0x51] sm:$0xff]
      %v833 = vld [vmem:[%s730 + $0x69] sm:$0xff]
      %v834 = vld [vmem:[%s730 + $0x71] sm:$0xff]
      %v835 = vld [vmem:[%s730 + $0x89] sm:$0xff]
      %v836 = vld [vmem:[%s730 + $0x91] sm:$0xff]
      %v837 = vld [vmem:[%s730 + $0xa9] sm:$0xff]
      %v838 = vld [vmem:[%s730 + $0xb1] sm:$0xff]
      %v839 = vld [vmem:[%s730 + $0xc9] sm:$0xff]
      %v840 = vld [vmem:[%s730 + $0xd1] sm:$0xff]
      %v841 = vld [vmem:[%s730 + $0xe9] sm:$0xff]
      %v842 = vld [vmem:[%s730 + $0xf1] sm:$0xff]
      %v843 = vld [vmem:[%s730 + $0x109] sm:$0xff]
      %v844 = vld [vmem:[%s730 + $0x111] sm:$0xff]
      %v845 = vld [vmem:[%s730 + $0x129] sm:$0xff]
      %v846 = vld [vmem:[%s730 + $0x131] sm:$0xff]
      %v847 = vld [vmem:[%s730 + $0x149] sm:$0xff]
      %v848 = vld [vmem:[%s730 + $0x151] sm:$0xff]
      %v849 = vld [vmem:[%s730 + $0x169] sm:$0xff]
      %v850 = vld [vmem:[%s730 + $0x171] sm:$0xff]
      %v851 = vld [vmem:[%s730 + $0x189] sm:$0xff]
      %v852 = vld [vmem:[%s730 + $0x191] sm:$0xff]
      %v853 = vld [vmem:[%s730 + $0x1a9] sm:$0xff]
      %v854 = vld [vmem:[%s730 + $0x1b1] sm:$0xff]
      %v855 = vld [vmem:[%s730 + $0x1c9] sm:$0xff]
      %v856 = vld [vmem:[%s730 + $0x1d1] sm:$0xff]
      %v857 = vld [vmem:[%s730 + $0x1e9] sm:$0xff]
      %v858 = vld [vmem:[%s730 + $0x1f1] sm:$0xff]
      %v859 = vpack.c.bf16 %v828, %v827
      %v860 = vpack.c.bf16 %v830, %v829
      %v861 = vpack.c.bf16 %v832, %v831
      %v862 = vpack.c.bf16 %v834, %v833
      %v863 = vpack.c.bf16 %v836, %v835
      %v864 = vpack.c.bf16 %v838, %v837
      %v865 = vpack.c.bf16 %v840, %v839
      %v866 = vpack.c.bf16 %v842, %v841
      %v867 = vpack.c.bf16 %v844, %v843
      %v868 = vpack.c.bf16 %v846, %v845
      %v869 = vpack.c.bf16 %v848, %v847
      %v870 = vpack.c.bf16 %v850, %v849
      %v871 = vpack.c.bf16 %v852, %v851
      %v872 = vpack.c.bf16 %v854, %v853
      %v873 = vpack.c.bf16 %v856, %v855
      %v874 = vpack.c.bf16 %v858, %v857
      %891 = vrot.lane.b32.xlu0 %v522, 4
      %v892 = vpop.permute.xlu0 %891
      %893 = vrot.lane.b32.xlu0 %v523, 4
      %v894 = vpop.permute.xlu0 %893
      %895 = vrot.lane.b32.xlu0 %v524, 4
      %v896 = vpop.permute.xlu0 %895
      %897 = vrot.lane.b32.xlu0 %v525, 4
      %v898 = vpop.permute.xlu0 %897
      %899 = vrot.lane.b32.xlu0 %v526, 4
      %v900 = vpop.permute.xlu0 %899
      %901 = vrot.lane.b32.xlu0 %v527, 4
      %v902 = vpop.permute.xlu0 %901
      %903 = vrot.lane.b32.xlu0 %v528, 4
      %v904 = vpop.permute.xlu0 %903
      %905 = vrot.lane.b32.xlu0 %v529, 4
      %v906 = vpop.permute.xlu0 %905
      %907 = vrot.lane.b32.xlu0 %v530, 4
      %v908 = vpop.permute.xlu0 %907
      %909 = vrot.lane.b32.xlu0 %v531, 4
      %v910 = vpop.permute.xlu0 %909
      %911 = vrot.lane.b32.xlu0 %v532, 4
      %v912 = vpop.permute.xlu0 %911
      %913 = vrot.lane.b32.xlu0 %v533, 4
      %v914 = vpop.permute.xlu0 %913
      %915 = vrot.lane.b32.xlu0 %v534, 4
      %v916 = vpop.permute.xlu0 %915
      %917 = vrot.lane.b32.xlu0 %v535, 4
      %v918 = vpop.permute.xlu0 %917
      %919 = vrot.lane.b32.xlu0 %v536, 4
      %v920 = vpop.permute.xlu0 %919
      %921 = vrot.lane.b32.xlu0 %v537, 4
      %v922 = vpop.permute.xlu0 %921
      %939 = vrot.lane.b32.xlu0 %v570, 8
      %v940 = vpop.permute.xlu0 %939
      %941 = vrot.lane.b32.xlu0 %v571, 8
      %v942 = vpop.permute.xlu0 %941
      %943 = vrot.lane.b32.xlu0 %v572, 8
      %v944 = vpop.permute.xlu0 %943
      %945 = vrot.lane.b32.xlu0 %v573, 8
      %v946 = vpop.permute.xlu0 %945
      %947 = vrot.lane.b32.xlu0 %v574, 8
      %v948 = vpop.permute.xlu0 %947
      %949 = vrot.lane.b32.xlu0 %v575, 8
      %v950 = vpop.permute.xlu0 %949
      %951 = vrot.lane.b32.xlu0 %v576, 8
      %v952 = vpop.permute.xlu0 %951
      %953 = vrot.lane.b32.xlu0 %v577, 8
      %v954 = vpop.permute.xlu0 %953
      %955 = vrot.lane.b32.xlu0 %v578, 8
      %v956 = vpop.permute.xlu0 %955
      %957 = vrot.lane.b32.xlu0 %v579, 8
      %v958 = vpop.permute.xlu0 %957
      %959 = vrot.lane.b32.xlu0 %v580, 8
      %v960 = vpop.permute.xlu0 %959
      %961 = vrot.lane.b32.xlu0 %v581, 8
      %v962 = vpop.permute.xlu0 %961
      %963 = vrot.lane.b32.xlu0 %v582, 8
      %v964 = vpop.permute.xlu0 %963
      %965 = vrot.lane.b32.xlu0 %v583, 8
      %v966 = vpop.permute.xlu0 %965
      %967 = vrot.lane.b32.xlu0 %v584, 8
      %v968 = vpop.permute.xlu0 %967
      %969 = vrot.lane.b32.xlu0 %v585, 8
      %v970 = vpop.permute.xlu0 %969
      %987 = vrot.lane.b32.xlu0 %v618, 12
      %v988 = vpop.permute.xlu0 %987
      %989 = vrot.lane.b32.xlu0 %v619, 12
      %v990 = vpop.permute.xlu0 %989
      %991 = vrot.lane.b32.xlu0 %v620, 12
      %v992 = vpop.permute.xlu0 %991
      %993 = vrot.lane.b32.xlu0 %v621, 12
      %v994 = vpop.permute.xlu0 %993
      %995 = vrot.lane.b32.xlu0 %v622, 12
      %v996 = vpop.permute.xlu0 %995
      %997 = vrot.lane.b32.xlu0 %v623, 12
      %v998 = vpop.permute.xlu0 %997
      %999 = vrot.lane.b32.xlu0 %v624, 12
      %v1000 = vpop.permute.xlu0 %999
      %1001 = vrot.lane.b32.xlu0 %v625, 12
      %v1002 = vpop.permute.xlu0 %1001
      %1003 = vrot.lane.b32.xlu0 %v626, 12
      %v1004 = vpop.permute.xlu0 %1003
      %1005 = vrot.lane.b32.xlu0 %v627, 12
      %v1006 = vpop.permute.xlu0 %1005
      %1007 = vrot.lane.b32.xlu0 %v628, 12
      %v1008 = vpop.permute.xlu0 %1007
      %1009 = vrot.lane.b32.xlu0 %v629, 12
      %v1010 = vpop.permute.xlu0 %1009
      %1011 = vrot.lane.b32.xlu0 %v630, 12
      %v1012 = vpop.permute.xlu0 %1011
      %1013 = vrot.lane.b32.xlu0 %v631, 12
      %v1014 = vpop.permute.xlu0 %1013
      %1015 = vrot.lane.b32.xlu0 %v632, 12
      %v1016 = vpop.permute.xlu0 %1015
      %1017 = vrot.lane.b32.xlu0 %v633, 12
      %v1018 = vpop.permute.xlu0 %1017
      %1035 = vrot.lane.b32.xlu0 %v666, 16
      %v1036 = vpop.permute.xlu0 %1035
      %1037 = vrot.lane.b32.xlu0 %v667, 16
      %v1038 = vpop.permute.xlu0 %1037
      %1039 = vrot.lane.b32.xlu0 %v668, 16
      %v1040 = vpop.permute.xlu0 %1039
      %1041 = vrot.lane.b32.xlu0 %v669, 16
      %v1042 = vpop.permute.xlu0 %1041
      %1043 = vrot.lane.b32.xlu0 %v670, 16
      %v1044 = vpop.permute.xlu0 %1043
      %1045 = vrot.lane.b32.xlu0 %v671, 16
      %v1046 = vpop.permute.xlu0 %1045
      %1047 = vrot.lane.b32.xlu0 %v672, 16
      %v1048 = vpop.permute.xlu0 %1047
      %1049 = vrot.lane.b32.xlu0 %v673, 16
      %v1050 = vpop.permute.xlu0 %1049
      %1051 = vrot.lane.b32.xlu0 %v674, 16
      %v1052 = vpop.permute.xlu0 %1051
      %1053 = vrot.lane.b32.xlu0 %v675, 16
      %v1054 = vpop.permute.xlu0 %1053
      %1055 = vrot.lane.b32.xlu0 %v676, 16
      %v1056 = vpop.permute.xlu0 %1055
      %1057 = vrot.lane.b32.xlu0 %v677, 16
      %v1058 = vpop.permute.xlu0 %1057
      %1059 = vrot.lane.b32.xlu0 %v678, 16
      %v1060 = vpop.permute.xlu0 %1059
      %1061 = vrot.lane.b32.xlu0 %v679, 16
      %v1062 = vpop.permute.xlu0 %1061
      %1063 = vrot.lane.b32.xlu0 %v680, 16
      %v1064 = vpop.permute.xlu0 %1063
      %1065 = vrot.lane.b32.xlu0 %v681, 16
      %v1066 = vpop.permute.xlu0 %1065
      %1083 = vrot.lane.b32.xlu0 %v714, 20
      %v1084 = vpop.permute.xlu0 %1083
      %1085 = vrot.lane.b32.xlu0 %v715, 20
      %v1086 = vpop.permute.xlu0 %1085
      %1087 = vrot.lane.b32.xlu0 %v716, 20
      %v1088 = vpop.permute.xlu0 %1087
      %1089 = vrot.lane.b32.xlu0 %v717, 20
      %v1090 = vpop.permute.xlu0 %1089
      %1091 = vrot.lane.b32.xlu0 %v718, 20
      %v1092 = vpop.permute.xlu0 %1091
      %1093 = vrot.lane.b32.xlu0 %v719, 20
      %v1094 = vpop.permute.xlu0 %1093
      %1095 = vrot.lane.b32.xlu0 %v720, 20
      %v1096 = vpop.permute.xlu0 %1095
      %1097 = vrot.lane.b32.xlu0 %v721, 20
      %v1098 = vpop.permute.xlu0 %1097
      %1099 = vrot.lane.b32.xlu0 %v722, 20
      %v1100 = vpop.permute.xlu0 %1099
      %1101 = vrot.lane.b32.xlu0 %v723, 20
      %v1102 = vpop.permute.xlu0 %1101
      %1103 = vrot.lane.b32.xlu0 %v724, 20
      %v1104 = vpop.permute.xlu0 %1103
      %1105 = vrot.lane.b32.xlu0 %v725, 20
      %v1106 = vpop.permute.xlu0 %1105
      %1107 = vrot.lane.b32.xlu0 %v726, 20
      %v1108 = vpop.permute.xlu0 %1107
      %1109 = vrot.lane.b32.xlu0 %v727, 20
      %v1110 = vpop.permute.xlu0 %1109
      %1111 = vrot.lane.b32.xlu0 %v728, 20
      %v1112 = vpop.permute.xlu0 %1111
      %1113 = vrot.lane.b32.xlu0 %v729, 20
      %v1114 = vpop.permute.xlu0 %1113
      %1131 = vrot.lane.b32.xlu0 %v763, 24
      %v1132 = vpop.permute.xlu0 %1131
      %1133 = vrot.lane.b32.xlu0 %v764, 24
      %v1134 = vpop.permute.xlu0 %1133
      %1135 = vrot.lane.b32.xlu0 %v765, 24
      %v1136 = vpop.permute.xlu0 %1135
      %1137 = vrot.lane.b32.xlu0 %v766, 24
      %v1138 = vpop.permute.xlu0 %1137
      %1139 = vrot.lane.b32.xlu0 %v767, 24
      %v1140 = vpop.permute.xlu0 %1139
      %1141 = vrot.lane.b32.xlu0 %v768, 24
      %v1142 = vpop.permute.xlu0 %1141
      %1143 = vrot.lane.b32.xlu0 %v769, 24
      %v1144 = vpop.permute.xlu0 %1143
      %1145 = vrot.lane.b32.xlu0 %v770, 24
      %v1146 = vpop.permute.xlu0 %1145
      %1147 = vrot.lane.b32.xlu0 %v771, 24
      %v1148 = vpop.permute.xlu0 %1147
      %1149 = vrot.lane.b32.xlu0 %v772, 24
      %v1150 = vpop.permute.xlu0 %1149
      %1151 = vrot.lane.b32.xlu0 %v773, 24
      %v1152 = vpop.permute.xlu0 %1151
      %1153 = vrot.lane.b32.xlu0 %v774, 24
      %v1154 = vpop.permute.xlu0 %1153
      %1155 = vrot.lane.b32.xlu0 %v775, 24
      %v1156 = vpop.permute.xlu0 %1155
      %1157 = vrot.lane.b32.xlu0 %v776, 24
      %v1158 = vpop.permute.xlu0 %1157
      %1159 = vrot.lane.b32.xlu0 %v777, 24
      %v1160 = vpop.permute.xlu0 %1159
      %1161 = vrot.lane.b32.xlu0 %v778, 24
      %v1162 = vpop.permute.xlu0 %1161
      %1179 = vrot.lane.b32.xlu0 %v811, 28
      %v1180 = vpop.permute.xlu0 %1179
      %1181 = vrot.lane.b32.xlu0 %v812, 28
      %v1182 = vpop.permute.xlu0 %1181
      %1183 = vrot.lane.b32.xlu0 %v813, 28
      %v1184 = vpop.permute.xlu0 %1183
      %1185 = vrot.lane.b32.xlu0 %v814, 28
      %v1186 = vpop.permute.xlu0 %1185
      %1187 = vrot.lane.b32.xlu0 %v815, 28
      %v1188 = vpop.permute.xlu0 %1187
      %1189 = vrot.lane.b32.xlu0 %v816, 28
      %v1190 = vpop.permute.xlu0 %1189
      %1191 = vrot.lane.b32.xlu0 %v817, 28
      %v1192 = vpop.permute.xlu0 %1191
      %1193 = vrot.lane.b32.xlu0 %v818, 28
      %v1194 = vpop.permute.xlu0 %1193
      %1195 = vrot.lane.b32.xlu0 %v819, 28
      %v1196 = vpop.permute.xlu0 %1195
      %1197 = vrot.lane.b32.xlu0 %v820, 28
      %v1198 = vpop.permute.xlu0 %1197
      %1199 = vrot.lane.b32.xlu0 %v821, 28
      %v1200 = vpop.permute.xlu0 %1199
      %1201 = vrot.lane.b32.xlu0 %v822, 28
      %v1202 = vpop.permute.xlu0 %1201
      %1203 = vrot.lane.b32.xlu0 %v823, 28
      %v1204 = vpop.permute.xlu0 %1203
      %1205 = vrot.lane.b32.xlu0 %v824, 28
      %v1206 = vpop.permute.xlu0 %1205
      %1207 = vrot.lane.b32.xlu0 %v825, 28
      %v1208 = vpop.permute.xlu0 %1207
      %1209 = vrot.lane.b32.xlu0 %v826, 28
      %v1210 = vpop.permute.xlu0 %1209
      %1227 = vrot.lane.b32.xlu0 %v859, 32
      %v1228 = vpop.permute.xlu0 %1227
      %1229 = vrot.lane.b32.xlu0 %v860, 32
      %v1230 = vpop.permute.xlu0 %1229
      %1231 = vrot.lane.b32.xlu0 %v861, 32
      %v1232 = vpop.permute.xlu0 %1231
      %1233 = vrot.lane.b32.xlu0 %v862, 32
      %v1234 = vpop.permute.xlu0 %1233
      %1235 = vrot.lane.b32.xlu0 %v863, 32
      %v1236 = vpop.permute.xlu0 %1235
      %1237 = vrot.lane.b32.xlu0 %v864, 32
      %v1238 = vpop.permute.xlu0 %1237
      %1239 = vrot.lane.b32.xlu0 %v865, 32
      %v1240 = vpop.permute.xlu0 %1239
      %1241 = vrot.lane.b32.xlu0 %v866, 32
      %v1242 = vpop.permute.xlu0 %1241
      %1243 = vrot.lane.b32.xlu0 %v867, 32
      %v1244 = vpop.permute.xlu0 %1243
      %1245 = vrot.lane.b32.xlu0 %v868, 32
      %v1246 = vpop.permute.xlu0 %1245
      %1247 = vrot.lane.b32.xlu0 %v869, 32
      %v1248 = vpop.permute.xlu0 %1247
      %1249 = vrot.lane.b32.xlu0 %v870, 32
      %v1250 = vpop.permute.xlu0 %1249
      %1251 = vrot.lane.b32.xlu0 %v871, 32
      %v1252 = vpop.permute.xlu0 %1251
      %1253 = vrot.lane.b32.xlu0 %v872, 32
      %v1254 = vpop.permute.xlu0 %1253
      %1255 = vrot.lane.b32.xlu0 %v873, 32
      %v1256 = vpop.permute.xlu0 %1255
      %1257 = vrot.lane.b32.xlu0 %v874, 32
      %v1258 = vpop.permute.xlu0 %1257
      %v1261 = vsel %vm215, %v474, %v892
      %v1264 = vsel %vm215, %v475, %v894
      %v1267 = vsel %vm215, %v476, %v896
      %v1270 = vsel %vm215, %v477, %v898
      %v1273 = vsel %vm215, %v478, %v900
      %v1276 = vsel %vm215, %v479, %v902
      %v1279 = vsel %vm215, %v480, %v904
      %v1282 = vsel %vm215, %v481, %v906
      %v1285 = vsel %vm215, %v482, %v908
      %v1288 = vsel %vm215, %v483, %v910
      %v1291 = vsel %vm215, %v484, %v912
      %v1294 = vsel %vm215, %v485, %v914
      %v1297 = vsel %vm215, %v486, %v916
      %v1300 = vsel %vm215, %v487, %v918
      %v1303 = vsel %vm215, %v488, %v920
      %v1306 = vsel %vm215, %v489, %v922
      %vm1307 = vcmask 64512
      %v1309 = vsel %vm1307, %v1261, %v940
      %v1311 = vsel %vm1307, %v1264, %v942
      %v1313 = vsel %vm1307, %v1267, %v944
      %v1315 = vsel %vm1307, %v1270, %v946
      %v1317 = vsel %vm1307, %v1273, %v948
      %v1319 = vsel %vm1307, %v1276, %v950
      %v1321 = vsel %vm1307, %v1279, %v952
      %v1323 = vsel %vm1307, %v1282, %v954
      %v1325 = vsel %vm1307, %v1285, %v956
      %v1327 = vsel %vm1307, %v1288, %v958
      %v1329 = vsel %vm1307, %v1291, %v960
      %v1331 = vsel %vm1307, %v1294, %v962
      %v1333 = vsel %vm1307, %v1297, %v964
      %v1335 = vsel %vm1307, %v1300, %v966
      %v1337 = vsel %vm1307, %v1303, %v968
      %v1339 = vsel %vm1307, %v1306, %v970
      %vm1340 = vcmask 97280
      %v1342 = vsel %vm1340, %v1309, %v988
      %v1344 = vsel %vm1340, %v1311, %v990
      %v1346 = vsel %vm1340, %v1313, %v992
      %v1348 = vsel %vm1340, %v1315, %v994
      %v1350 = vsel %vm1340, %v1317, %v996
      %v1352 = vsel %vm1340, %v1319, %v998
      %v1354 = vsel %vm1340, %v1321, %v1000
      %v1356 = vsel %vm1340, %v1323, %v1002
      %v1358 = vsel %vm1340, %v1325, %v1004
      %v1360 = vsel %vm1340, %v1327, %v1006
      %v1362 = vsel %vm1340, %v1329, %v1008
      %v1364 = vsel %vm1340, %v1331, %v1010
      %v1366 = vsel %vm1340, %v1333, %v1012
      %v1368 = vsel %vm1340, %v1335, %v1014
      %v1370 = vsel %vm1340, %v1337, %v1016
      %v1372 = vsel %vm1340, %v1339, %v1018
      %vm1373 = vcmask 130048
      %v1375 = vsel %vm1373, %v1342, %v1036
      %v1377 = vsel %vm1373, %v1344, %v1038
      %v1379 = vsel %vm1373, %v1346, %v1040
      %v1381 = vsel %vm1373, %v1348, %v1042
      %v1383 = vsel %vm1373, %v1350, %v1044
      %v1385 = vsel %vm1373, %v1352, %v1046
      %v1387 = vsel %vm1373, %v1354, %v1048
      %v1389 = vsel %vm1373, %v1356, %v1050
      %v1391 = vsel %vm1373, %v1358, %v1052
      %v1393 = vsel %vm1373, %v1360, %v1054
      %v1395 = vsel %vm1373, %v1362, %v1056
      %v1397 = vsel %vm1373, %v1364, %v1058
      %v1399 = vsel %vm1373, %v1366, %v1060
      %v1401 = vsel %vm1373, %v1368, %v1062
      %v1403 = vsel %vm1373, %v1370, %v1064
      %v1405 = vsel %vm1373, %v1372, %v1066
      %vm1406 = vcmask 162816
      %v1408 = vsel %vm1406, %v1375, %v1084
      %v1410 = vsel %vm1406, %v1377, %v1086
      %v1412 = vsel %vm1406, %v1379, %v1088
      %v1414 = vsel %vm1406, %v1381, %v1090
      %v1416 = vsel %vm1406, %v1383, %v1092
      %v1418 = vsel %vm1406, %v1385, %v1094
      %v1420 = vsel %vm1406, %v1387, %v1096
      %v1422 = vsel %vm1406, %v1389, %v1098
      %v1424 = vsel %vm1406, %v1391, %v1100
      %v1426 = vsel %vm1406, %v1393, %v1102
      %v1428 = vsel %vm1406, %v1395, %v1104
      %v1430 = vsel %vm1406, %v1397, %v1106
      %v1432 = vsel %vm1406, %v1399, %v1108
      %v1434 = vsel %vm1406, %v1401, %v1110
      %v1436 = vsel %vm1406, %v1403, %v1112
      %v1438 = vsel %vm1406, %v1405, %v1114
      %vm1439 = vcmask 195584
      %v1441 = vsel %vm1439, %v1408, %v1132
      %v1443 = vsel %vm1439, %v1410, %v1134
      %v1445 = vsel %vm1439, %v1412, %v1136
      %v1447 = vsel %vm1439, %v1414, %v1138
      %v1449 = vsel %vm1439, %v1416, %v1140
      %v1451 = vsel %vm1439, %v1418, %v1142
      %v1453 = vsel %vm1439, %v1420, %v1144
      %v1455 = vsel %vm1439, %v1422, %v1146
      %v1457 = vsel %vm1439, %v1424, %v1148
      %v1459 = vsel %vm1439, %v1426, %v1150
      %v1461 = vsel %vm1439, %v1428, %v1152
      %v1463 = vsel %vm1439, %v1430, %v1154
      %v1465 = vsel %vm1439, %v1432, %v1156
      %v1467 = vsel %vm1439, %v1434, %v1158
      %v1469 = vsel %vm1439, %v1436, %v1160
      %v1471 = vsel %vm1439, %v1438, %v1162
      %vm1472 = vcmask 228352
      %v1474 = vsel %vm1472, %v1441, %v1180
      %v1476 = vsel %vm1472, %v1443, %v1182
      %v1478 = vsel %vm1472, %v1445, %v1184
      %v1480 = vsel %vm1472, %v1447, %v1186
      %v1482 = vsel %vm1472, %v1449, %v1188
      %v1484 = vsel %vm1472, %v1451, %v1190
      %v1486 = vsel %vm1472, %v1453, %v1192
      %v1488 = vsel %vm1472, %v1455, %v1194
      %v1490 = vsel %vm1472, %v1457, %v1196
      %v1492 = vsel %vm1472, %v1459, %v1198
      %v1494 = vsel %vm1472, %v1461, %v1200
      %v1496 = vsel %vm1472, %v1463, %v1202
      %v1498 = vsel %vm1472, %v1465, %v1204
      %v1500 = vsel %vm1472, %v1467, %v1206
      %v1502 = vsel %vm1472, %v1469, %v1208
      %v1504 = vsel %vm1472, %v1471, %v1210
      %vm1505 = vcmask 261120
      %v1507 = vsel %vm1505, %v1474, %v1228
      %v1509 = vsel %vm1505, %v1476, %v1230
      %v1511 = vsel %vm1505, %v1478, %v1232
      %v1513 = vsel %vm1505, %v1480, %v1234
      %v1515 = vsel %vm1505, %v1482, %v1236
      %v1517 = vsel %vm1505, %v1484, %v1238
      %v1519 = vsel %vm1505, %v1486, %v1240
      %v1521 = vsel %vm1505, %v1488, %v1242
      %v1523 = vsel %vm1505, %v1490, %v1244
      %v1525 = vsel %vm1505, %v1492, %v1246
      %v1527 = vsel %vm1505, %v1494, %v1248
      %v1529 = vsel %vm1505, %v1496, %v1250
      %v1531 = vsel %vm1505, %v1498, %v1252
      %v1533 = vsel %vm1505, %v1500, %v1254
      %v1535 = vsel %vm1505, %v1502, %v1256
      %v1537 = vsel %vm1505, %v1504, %v1258
      %v1543 = vunpack.c.l.b16 %v437
      %v1544 = vunpack.c.l.b16 %v438
      %v1545 = vunpack.c.l.b16 %v439
      %v1546 = vunpack.c.l.b16 %v440
      %v1547 = vunpack.c.l.b16 %v441
      %v1548 = vpack.c.b16 %v1544, %v1543
      %v1549 = vpack.c.b16 %v1546, %v1545
      %v1550 = vpack.c.b16 %v1547, %v1547
      %vm1553 = vcmask 293888
      %v1554 = vsel %vm1553, %v1507, 0
      %v1556 = vsel %vm1553, %v1509, 0
      %v1558 = vsel %vm1553, %v1511, 0
      %v1560 = vsel %vm1553, %v1513, 0
      %v1562 = vsel %vm1553, %v1515, 0
      %v1564 = vsel %vm1553, %v1517, 0
      %v1566 = vsel %vm1553, %v1519, 0
      %v1568 = vsel %vm1553, %v1521, 0
      %v1570 = vsel %vm1553, %v1523, 0
      %v1572 = vsel %vm1553, %v1525, 0
      %v1574 = vsel %vm1553, %v1527, 0
      %v1576 = vsel %vm1553, %v1529, 0
      %v1578 = vsel %vm1553, %v1531, 0
      %v1580 = vsel %vm1553, %v1533, 0
      %v1582 = vsel %vm1553, %v1535, 0
      %v1584 = vsel %vm1553, %v1537, 0
      %vm1586 = vcmask 1041408
      %v1588 = vsel %vm1586, %v1550, 0
      %1590 = vmatprep.subr.bf16.mxu0 0
      %1591 = vmatpush1.bf16.msra.mxu0 %v1548
      %1592 = vmatprep.subr.bf16.mxu0 0
      %1593 = vmatpush1.bf16.msra.mxu0 %v1549
      %1594 = vmatprep.subr.bf16.mxu0 0
      %1595 = vmatpush1.bf16.msra.mxu0 %v1588
      %1596 = vmatprep.subr.bf16.mxu0 0
      %1597 = vmatpush1.bf16.msra.mxu0 0
      %1598 = vmatprep.subr.bf16.mxu0 0
      %1599 = vmatpush1.bf16.msra.mxu0 0
      %1600 = vmatprep.subr.bf16.mxu0 0
      %1601 = vmatpush1.bf16.msra.mxu0 0
      %1602 = vmatprep.subr.bf16.mxu0 0
      %1603 = vmatpush1.bf16.msra.mxu0 0
      %1604 = vmatprep.subr.bf16.mxu0 0
      %1605 = vmatpush1.bf16.msra.mxu0 0
      %1606 = vmatprep.subr.bf16.mxu0 0
      %1607 = vmatpush1.bf16.msra.mxu0 0
      %1608 = vmatprep.subr.bf16.mxu0 0
      %1609 = vmatpush1.bf16.msra.mxu0 0
      %1610 = vmatprep.subr.bf16.mxu0 0
      %1611 = vmatpush1.bf16.msra.mxu0 0
      %1612 = vmatprep.subr.bf16.mxu0 0
      %1613 = vmatpush1.bf16.msra.mxu0 0
      %1614 = vmatprep.subr.bf16.mxu0 0
      %1615 = vmatpush1.bf16.msra.mxu0 0
      %1616 = vmatprep.subr.bf16.mxu0 0
      %1617 = vmatpush1.bf16.msra.mxu0 0
      %1618 = vmatprep.subr.bf16.mxu0 0
      %1619 = vmatpush1.bf16.msra.mxu0 0
      %1620 = vmatprep.subr.bf16.mxu0 0
      %1621 = vmatpush1.bf16.msra.mxu0 0
      %1622 = vmatprep.mubr.bf16.mxu0 0
      %1623 = vmatmul.mubr.bf16.gmra.mrb[0].mxu0 %v1554
      %v1624 = vpop.f32.mrb[0].mxu0
      %v1625 = vadd.f32 0.0, %v1624
      %v1626 = vpop.f32.mrb[0].mxu0
      %v1627 = vpop.f32.mrb[0].mxu0
      %v1628 = vadd.f32 0.0, %v1627
      %v1629 = vpop.f32.mrb[0].mxu0
      %1630 = vmatprep.mubr.bf16.mxu0 0
      %1631 = vmatmul.mubr.bf16.gmra.mrb[0].mxu0 %v1556
      %v1632 = vpop.f32.mrb[0].mxu0
      %v1633 = vadd.f32 0.0, %v1632
      %v1634 = vpop.f32.mrb[0].mxu0
      %v1635 = vpop.f32.mrb[0].mxu0
      %v1636 = vadd.f32 0.0, %v1635
      %v1637 = vpop.f32.mrb[0].mxu0
      %1638 = vmatprep.mubr.bf16.mxu0 0
      %1639 = vmatmul.mubr.bf16.gmra.mrb[0].mxu0 %v1558
      %v1640 = vpop.f32.mrb[0].mxu0
      %v1641 = vadd.f32 0.0, %v1640
      %v1642 = vpop.f32.mrb[0].mxu0
      %v1643 = vpop.f32.mrb[0].mxu0
      %v1644 = vadd.f32 0.0, %v1643
      %v1645 = vpop.f32.mrb[0].mxu0
      %1646 = vmatprep.mubr.bf16.mxu0 0
      %1647 = vmatmul.mubr.bf16.gmra.mrb[0].mxu0 %v1560
      %v1648 = vpop.f32.mrb[0].mxu0
      %v1649 = vadd.f32 0.0, %v1648
      %v1650 = vpop.f32.mrb[0].mxu0
      %v1651 = vpop.f32.mrb[0].mxu0
      %v1652 = vadd.f32 0.0, %v1651
      %v1653 = vpop.f32.mrb[0].mxu0
      %1654 = vmatprep.mubr.bf16.mxu0 0
      %1655 = vmatmul.mubr.bf16.gmra.mrb[0].mxu0 %v1562
      %v1656 = vpop.f32.mrb[0].mxu0
      %v1657 = vadd.f32 0.0, %v1656
      %v1658 = vpop.f32.mrb[0].mxu0
      %v1659 = vpop.f32.mrb[0].mxu0
      %v1660 = vadd.f32 0.0, %v1659
      %v1661 = vpop.f32.mrb[0].mxu0
      %1662 = vmatprep.mubr.bf16.mxu0 0
      %1663 = vmatmul.mubr.bf16.gmra.mrb[0].mxu0 %v1564
      %v1664 = vpop.f32.mrb[0].mxu0
      %v1665 = vadd.f32 0.0, %v1664
      %v1666 = vpop.f32.mrb[0].mxu0
      %v1667 = vpop.f32.mrb[0].mxu0
      %v1668 = vadd.f32 0.0, %v1667
      %v1669 = vpop.f32.mrb[0].mxu0
      %1670 = vmatprep.mubr.bf16.mxu0 0
      %1671 = vmatmul.mubr.bf16.gmra.mrb[0].mxu0 %v1566
      %v1672 = vpop.f32.mrb[0].mxu0
      %v1673 = vadd.f32 0.0, %v1672
      %v1674 = vpop.f32.mrb[0].mxu0
      %v1675 = vpop.f32.mrb[0].mxu0
      %v1676 = vadd.f32 0.0, %v1675
      %v1677 = vpop.f32.mrb[0].mxu0
      %1678 = vmatprep.mubr.bf16.mxu0 0
      %1679 = vmatmul.mubr.bf16.gmra.mrb[0].mxu0 %v1568
      %v1680 = vpop.f32.mrb[0].mxu0
      %v1681 = vadd.f32 0.0, %v1680
      %v1682 = vpop.f32.mrb[0].mxu0
      %v1683 = vpop.f32.mrb[0].mxu0
      %v1684 = vadd.f32 0.0, %v1683
      %v1685 = vpop.f32.mrb[0].mxu0
      %1686 = vmatprep.mubr.bf16.mxu0 0
      %1687 = vmatmul.mubr.bf16.gmra.mrb[0].mxu0 %v1570
      %v1688 = vpop.f32.mrb[0].mxu0
      %v1689 = vadd.f32 0.0, %v1688
      %v1690 = vpop.f32.mrb[0].mxu0
      %v1691 = vpop.f32.mrb[0].mxu0
      %v1692 = vadd.f32 0.0, %v1691
      %v1693 = vpop.f32.mrb[0].mxu0
      %1694 = vmatprep.mubr.bf16.mxu0 0
      %1695 = vmatmul.mubr.bf16.gmra.mrb[0].mxu0 %v1572
      %v1696 = vpop.f32.mrb[0].mxu0
      %v1697 = vadd.f32 0.0, %v1696
      %v1698 = vpop.f32.mrb[0].mxu0
      %v1699 = vpop.f32.mrb[0].mxu0
      %v1700 = vadd.f32 0.0, %v1699
      %v1701 = vpop.f32.mrb[0].mxu0
      %1702 = vmatprep.mubr.bf16.mxu0 0
      %1703 = vmatmul.mubr.bf16.gmra.mrb[0].mxu0 %v1574
      %v1704 = vpop.f32.mrb[0].mxu0
      %v1705 = vadd.f32 0.0, %v1704
      %v1706 = vpop.f32.mrb[0].mxu0
      %v1707 = vpop.f32.mrb[0].mxu0
      %v1708 = vadd.f32 0.0, %v1707
      %v1709 = vpop.f32.mrb[0].mxu0
      %1710 = vmatprep.mubr.bf16.mxu0 0
      %1711 = vmatmul.mubr.bf16.gmra.mrb[0].mxu0 %v1576
      %v1712 = vpop.f32.mrb[0].mxu0
      %v1713 = vadd.f32 0.0, %v1712
      %v1714 = vpop.f32.mrb[0].mxu0
      %v1715 = vpop.f32.mrb[0].mxu0
      %v1716 = vadd.f32 0.0, %v1715
      %v1717 = vpop.f32.mrb[0].mxu0
      %1718 = vmatprep.mubr.bf16.mxu0 0
      %1719 = vmatmul.mubr.bf16.gmra.mrb[0].mxu0 %v1578
      %v1720 = vpop.f32.mrb[0].mxu0
      %v1721 = vadd.f32 0.0, %v1720
      %v1722 = vpop.f32.mrb[0].mxu0
      %v1723 = vpop.f32.mrb[0].mxu0
      %v1724 = vadd.f32 0.0, %v1723
      %v1725 = vpop.f32.mrb[0].mxu0
      %1726 = vmatprep.mubr.bf16.mxu0 0
      %1727 = vmatmul.mubr.bf16.gmra.mrb[0].mxu0 %v1580
      %v1728 = vpop.f32.mrb[0].mxu0
      %v1729 = vadd.f32 0.0, %v1728
      %v1730 = vpop.f32.mrb[0].mxu0
      %v1731 = vpop.f32.mrb[0].mxu0
      %v1732 = vadd.f32 0.0, %v1731
      %v1733 = vpop.f32.mrb[0].mxu0
      %1734 = vmatprep.mubr.bf16.mxu0 0
      %1735 = vmatmul.mubr.bf16.gmra.mrb[0].mxu0 %v1582
      %v1736 = vpop.f32.mrb[0].mxu0
      %v1737 = vadd.f32 0.0, %v1736
      %v1738 = vpop.f32.mrb[0].mxu0
      %v1739 = vpop.f32.mrb[0].mxu0
      %v1740 = vadd.f32 0.0, %v1739
      %v1741 = vpop.f32.mrb[0].mxu0
      %1742 = vmatprep.mubr.bf16.mxu0 0
      %1743 = vmatmul.mubr.bf16.gmra.mrb[0].mxu0 %v1584
      %v1744 = vpop.f32.mrb[0].mxu0
      %v1745 = vadd.f32 0.0, %v1744
      %v1746 = vpop.f32.mrb[0].mxu0
      %v1747 = vpop.f32.mrb[0].mxu0
      %v1748 = vadd.f32 0.0, %v1747
      %v1749 = vpop.f32.mrb[0].mxu0
      %1750 = vdwg.mxu0
      %v1751 = vpack.c.bf16 %v1628, %v1625
      %v1752 = vpack.c.bf16 %v1636, %v1633
      %v1753 = vpack.c.bf16 %v1644, %v1641
      %v1754 = vpack.c.bf16 %v1652, %v1649
      %v1755 = vpack.c.bf16 %v1660, %v1657
      %v1756 = vpack.c.bf16 %v1668, %v1665
      %v1757 = vpack.c.bf16 %v1676, %v1673
      %v1758 = vpack.c.bf16 %v1684, %v1681
      %v1759 = vpack.c.bf16 %v1692, %v1689
      %v1760 = vpack.c.bf16 %v1700, %v1697
      %v1761 = vpack.c.bf16 %v1708, %v1705
      %v1762 = vpack.c.bf16 %v1716, %v1713
      %v1763 = vpack.c.bf16 %v1724, %v1721
      %v1764 = vpack.c.bf16 %v1732, %v1729
      %v1765 = vpack.c.bf16 %v1740, %v1737
      %v1766 = vpack.c.bf16 %v1748, %v1745
      %v1783 = vunpack.c.l.b16 %v1751
      %v1784 = vunpack.c.h.b16 %v1751
      %v1785 = vunpack.c.l.b16 %v1752
      %v1786 = vunpack.c.h.b16 %v1752
      %v1787 = vunpack.c.l.b16 %v1753
      %v1788 = vunpack.c.h.b16 %v1753
      %v1789 = vunpack.c.l.b16 %v1754
      %v1790 = vunpack.c.h.b16 %v1754
      %v1791 = vunpack.c.l.b16 %v1755
      %v1792 = vunpack.c.h.b16 %v1755
      %v1793 = vunpack.c.l.b16 %v1756
      %v1794 = vunpack.c.h.b16 %v1756
      %v1795 = vunpack.c.l.b16 %v1757
      %v1796 = vunpack.c.h.b16 %v1757
      %v1797 = vunpack.c.l.b16 %v1758
      %v1798 = vunpack.c.h.b16 %v1758
      %v1799 = vunpack.c.l.b16 %v1759
      %v1800 = vunpack.c.h.b16 %v1759
      %v1801 = vunpack.c.l.b16 %v1760
      %v1802 = vunpack.c.h.b16 %v1760
      %v1803 = vunpack.c.l.b16 %v1761
      %v1804 = vunpack.c.h.b16 %v1761
      %v1805 = vunpack.c.l.b16 %v1762
      %v1806 = vunpack.c.h.b16 %v1762
      %v1807 = vunpack.c.l.b16 %v1763
      %v1808 = vunpack.c.h.b16 %v1763
      %v1809 = vunpack.c.l.b16 %v1764
      %v1810 = vunpack.c.h.b16 %v1764
      %v1811 = vunpack.c.l.b16 %v1765
      %v1812 = vunpack.c.h.b16 %v1765
      %v1813 = vunpack.c.l.b16 %v1766
      %v1814 = vunpack.c.h.b16 %v1766
      %v1815 = vpack.c.b16 %v1783, %v1783
      %v1816 = vpack.c.b16 %v1784, %v1784
      %v1817 = vpack.c.b16 %v1785, %v1785
      %v1818 = vpack.c.b16 %v1786, %v1786
      %v1819 = vpack.c.b16 %v1787, %v1787
      %v1820 = vpack.c.b16 %v1788, %v1788
      %v1821 = vpack.c.b16 %v1789, %v1789
      %v1822 = vpack.c.b16 %v1790, %v1790
      %v1823 = vpack.c.b16 %v1791, %v1791
      %v1824 = vpack.c.b16 %v1792, %v1792
      %v1825 = vpack.c.b16 %v1793, %v1793
      %v1826 = vpack.c.b16 %v1794, %v1794
      %v1827 = vpack.c.b16 %v1795, %v1795
      %v1828 = vpack.c.b16 %v1796, %v1796
      %v1829 = vpack.c.b16 %v1797, %v1797
      %v1830 = vpack.c.b16 %v1798, %v1798
      %v1831 = vpack.c.b16 %v1799, %v1799
      %v1832 = vpack.c.b16 %v1800, %v1800
      %v1833 = vpack.c.b16 %v1801, %v1801
      %v1834 = vpack.c.b16 %v1802, %v1802
      %v1835 = vpack.c.b16 %v1803, %v1803
      %v1836 = vpack.c.b16 %v1804, %v1804
      %v1837 = vpack.c.b16 %v1805, %v1805
      %v1838 = vpack.c.b16 %v1806, %v1806
      %v1839 = vpack.c.b16 %v1807, %v1807
      %v1840 = vpack.c.b16 %v1808, %v1808
      %v1841 = vpack.c.b16 %v1809, %v1809
      %v1842 = vpack.c.b16 %v1810, %v1810
      %v1843 = vpack.c.b16 %v1811, %v1811
      %v1844 = vpack.c.b16 %v1812, %v1812
      %v1845 = vpack.c.b16 %v1813, %v1813
      %v1846 = vpack.c.b16 %v1814, %v1814
      %vm1879 = vcmask 27648
      %1880 = vst.msk [vmem:[%s177] sm:$0xf] %vm1879, %v1815
      %1881 = vst.msk [vmem:[%s177 + $0x4] sm:$0xf] %vm1879, %v1816
      %1882 = vst.msk [vmem:[%s177 + $0x8] sm:$0xf] %vm1879, %v1817
      %1883 = vst.msk [vmem:[%s177 + $0xc] sm:$0xf] %vm1879, %v1818
      %1884 = vst.msk [vmem:[%s177 + $0x10] sm:$0xf] %vm1879, %v1819
      %1885 = vst.msk [vmem:[%s177 + $0x14] sm:$0xf] %vm1879, %v1820
      %1886 = vst.msk [vmem:[%s177 + $0x18] sm:$0xf] %vm1879, %v1821
      %1887 = vst.msk [vmem:[%s177 + $0x1c] sm:$0xf] %vm1879, %v1822
      %1888 = vst.msk [vmem:[%s177 + $0x20] sm:$0xf] %vm1879, %v1823
      %1889 = vst.msk [vmem:[%s177 + $0x24] sm:$0xf] %vm1879, %v1824
      %1890 = vst.msk [vmem:[%s177 + $0x28] sm:$0xf] %vm1879, %v1825
      %1891 = vst.msk [vmem:[%s177 + $0x2c] sm:$0xf] %vm1879, %v1826
      %1892 = vst.msk [vmem:[%s177 + $0x30] sm:$0xf] %vm1879, %v1827
      %1893 = vst.msk [vmem:[%s177 + $0x34] sm:$0xf] %vm1879, %v1828
      %1894 = vst.msk [vmem:[%s177 + $0x38] sm:$0xf] %vm1879, %v1829
      %1895 = vst.msk [vmem:[%s177 + $0x3c] sm:$0xf] %vm1879, %v1830
      %1896 = vst.msk [vmem:[%s177 + $0x40] sm:$0xf] %vm1879, %v1831
      %1897 = vst.msk [vmem:[%s177 + $0x44] sm:$0xf] %vm1879, %v1832
      %1898 = vst.msk [vmem:[%s177 + $0x48] sm:$0xf] %vm1879, %v1833
      %1899 = vst.msk [vmem:[%s177 + $0x4c] sm:$0xf] %vm1879, %v1834
      %1900 = vst.msk [vmem:[%s177 + $0x50] sm:$0xf] %vm1879, %v1835
      %1901 = vst.msk [vmem:[%s177 + $0x54] sm:$0xf] %vm1879, %v1836
      %1902 = vst.msk [vmem:[%s177 + $0x58] sm:$0xf] %vm1879, %v1837
      %1903 = vst.msk [vmem:[%s177 + $0x5c] sm:$0xf] %vm1879, %v1838
      %1904 = vst.msk [vmem:[%s177 + $0x60] sm:$0xf] %vm1879, %v1839
      %1905 = vst.msk [vmem:[%s177 + $0x64] sm:$0xf] %vm1879, %v1840
      %1906 = vst.msk [vmem:[%s177 + $0x68] sm:$0xf] %vm1879, %v1841
      %1907 = vst.msk [vmem:[%s177 + $0x6c] sm:$0xf] %vm1879, %v1842
      %1908 = vst.msk [vmem:[%s177 + $0x70] sm:$0xf] %vm1879, %v1843
      %1909 = vst.msk [vmem:[%s177 + $0x74] sm:$0xf] %vm1879, %v1844
      %1910 = vst.msk [vmem:[%s177 + $0x78] sm:$0xf] %vm1879, %v1845
      %1911 = vst.msk [vmem:[%s177 + $0x7c] sm:$0xf] %vm1879, %v1846
      %v1912 = vsel %vm215, %v1625, 0.0
      %v1913 = vsel %vm215, %v1628, 0.0
      %v1914 = vadd.f32 %v1912, %v1913
      %v1915 = vsel %vm215, %v1633, 0.0
      %v1916 = vadd.f32 %v1914, %v1915
      %v1917 = vsel %vm215, %v1636, 0.0
      %v1918 = vadd.f32 %v1916, %v1917
      %v1919 = vsel %vm215, %v1641, 0.0
      %v1920 = vadd.f32 %v1918, %v1919
      %v1921 = vsel %vm215, %v1644, 0.0
      %v1922 = vadd.f32 %v1920, %v1921
      %v1923 = vsel %vm215, %v1649, 0.0
      %v1924 = vadd.f32 %v1922, %v1923
      %v1925 = vsel %vm215, %v1652, 0.0
      %v1926 = vadd.f32 %v1924, %v1925
      %v1927 = vsel %vm215, %v1657, 0.0
      %v1928 = vadd.f32 %v1926, %v1927
      %v1929 = vsel %vm215, %v1660, 0.0
      %v1930 = vadd.f32 %v1928, %v1929
      %v1931 = vsel %vm215, %v1665, 0.0
      %v1932 = vadd.f32 %v1930, %v1931
      %v1933 = vsel %vm215, %v1668, 0.0
      %v1934 = vadd.f32 %v1932, %v1933
      %v1935 = vsel %vm215, %v1673, 0.0
      %v1936 = vadd.f32 %v1934, %v1935
      %v1937 = vsel %vm215, %v1676, 0.0
      %v1938 = vadd.f32 %v1936, %v1937
      %v1939 = vsel %vm215, %v1681, 0.0
      %v1940 = vadd.f32 %v1938, %v1939
      %v1941 = vsel %vm215, %v1684, 0.0
      %v1942 = vadd.f32 %v1940, %v1941
      %v1943 = vsel %vm215, %v1689, 0.0
      %v1944 = vadd.f32 %v1942, %v1943
      %v1945 = vsel %vm215, %v1692, 0.0
      %v1946 = vadd.f32 %v1944, %v1945
      %v1947 = vsel %vm215, %v1697, 0.0
      %v1948 = vadd.f32 %v1946, %v1947
      %v1949 = vsel %vm215, %v1700, 0.0
      %v1950 = vadd.f32 %v1948, %v1949
      %v1951 = vsel %vm215, %v1705, 0.0
      %v1952 = vadd.f32 %v1950, %v1951
      %v1953 = vsel %vm215, %v1708, 0.0
      %v1954 = vadd.f32 %v1952, %v1953
      %v1955 = vsel %vm215, %v1713, 0.0
      %v1956 = vadd.f32 %v1954, %v1955
      %v1957 = vsel %vm215, %v1716, 0.0
      %v1958 = vadd.f32 %v1956, %v1957
      %v1959 = vsel %vm215, %v1721, 0.0
      %v1960 = vadd.f32 %v1958, %v1959
      %v1961 = vsel %vm215, %v1724, 0.0
      %v1962 = vadd.f32 %v1960, %v1961
      %v1963 = vsel %vm215, %v1729, 0.0
      %v1964 = vadd.f32 %v1962, %v1963
      %v1965 = vsel %vm215, %v1732, 0.0
      %v1966 = vadd.f32 %v1964, %v1965
      %v1967 = vsel %vm215, %v1737, 0.0
      %v1968 = vadd.f32 %v1966, %v1967
      %v1969 = vsel %vm215, %v1740, 0.0
      %v1970 = vadd.f32 %v1968, %v1969
      %v1971 = vsel %vm215, %v1745, 0.0
      %v1972 = vadd.f32 %v1970, %v1971
      %v1973 = vsel %vm215, %v1748, 0.0
      %v1974 = vadd.f32 %v1972, %v1973
      %v1975 = vrot.slane %v1974, 4
      %v1976 = vadd.f32 %v1974, %v1975
      %v1977 = vrot.slane %v1976, 2
      %v1978 = vadd.f32 %v1976, %v1977
      %v1979 = vrot.slane %v1978, 1
      %v1980 = vadd.f32 %v1978, %v1979
      %v1981 = vmul.f32 %v1625, %v1625
      %v1982 = vmul.f32 %v1628, %v1628
      %v1983 = vmul.f32 %v1633, %v1633
      %v1984 = vmul.f32 %v1636, %v1636
      %v1985 = vmul.f32 %v1641, %v1641
      %v1986 = vmul.f32 %v1644, %v1644
      %v1987 = vmul.f32 %v1649, %v1649
      %v1988 = vmul.f32 %v1652, %v1652
      %v1989 = vmul.f32 %v1657, %v1657
      %v1990 = vmul.f32 %v1660, %v1660
      %v1991 = vmul.f32 %v1665, %v1665
      %v1992 = vmul.f32 %v1668, %v1668
      %v1993 = vmul.f32 %v1673, %v1673
      %v1994 = vmul.f32 %v1676, %v1676
      %v1995 = vmul.f32 %v1681, %v1681
      %v1996 = vmul.f32 %v1684, %v1684
      %v1997 = vmul.f32 %v1689, %v1689
      %v1998 = vmul.f32 %v1692, %v1692
      %v1999 = vmul.f32 %v1697, %v1697
      %v2000 = vmul.f32 %v1700, %v1700
      %v2001 = vmul.f32 %v1705, %v1705
      %v2002 = vmul.f32 %v1708, %v1708
      %v2003 = vmul.f32 %v1713, %v1713
      %v2004 = vmul.f32 %v1716, %v1716
      %v2005 = vmul.f32 %v1721, %v1721
      %v2006 = vmul.f32 %v1724, %v1724
      %v2007 = vmul.f32 %v1729, %v1729
      %v2008 = vmul.f32 %v1732, %v1732
      %v2009 = vmul.f32 %v1737, %v1737
      %v2010 = vmul.f32 %v1740, %v1740
      %v2011 = vmul.f32 %v1745, %v1745
      %v2012 = vmul.f32 %v1748, %v1748
      %v2013 = vsel %vm215, %v1981, 0.0
      %v2014 = vsel %vm215, %v1982, 0.0
      %v2015 = vadd.f32 %v2013, %v2014
      %v2016 = vsel %vm215, %v1983, 0.0
      %v2017 = vadd.f32 %v2015, %v2016
      %v2018 = vsel %vm215, %v1984, 0.0
      %v2019 = vadd.f32 %v2017, %v2018
      %v2020 = vsel %vm215, %v1985, 0.0
      %v2021 = vadd.f32 %v2019, %v2020
      %v2022 = vsel %vm215, %v1986, 0.0
      %v2023 = vadd.f32 %v2021, %v2022
      %v2024 = vsel %vm215, %v1987, 0.0
      %v2025 = vadd.f32 %v2023, %v2024
      %v2026 = vsel %vm215, %v1988, 0.0
      %v2027 = vadd.f32 %v2025, %v2026
      %v2028 = vsel %vm215, %v1989, 0.0
      %v2029 = vadd.f32 %v2027, %v2028
      %v2030 = vsel %vm215, %v1990, 0.0
      %v2031 = vadd.f32 %v2029, %v2030
      %v2032 = vsel %vm215, %v1991, 0.0
      %v2033 = vadd.f32 %v2031, %v2032
      %v2034 = vsel %vm215, %v1992, 0.0
      %v2035 = vadd.f32 %v2033, %v2034
      %v2036 = vsel %vm215, %v1993, 0.0
      %v2037 = vadd.f32 %v2035, %v2036
      %v2038 = vsel %vm215, %v1994, 0.0
      %v2039 = vadd.f32 %v2037, %v2038
      %v2040 = vsel %vm215, %v1995, 0.0
      %v2041 = vadd.f32 %v2039, %v2040
      %v2042 = vsel %vm215, %v1996, 0.0
      %v2043 = vadd.f32 %v2041, %v2042
      %v2044 = vsel %vm215, %v1997, 0.0
      %v2045 = vadd.f32 %v2043, %v2044
      %v2046 = vsel %vm215, %v1998, 0.0
      %v2047 = vadd.f32 %v2045, %v2046
      %v2048 = vsel %vm215, %v1999, 0.0
      %v2049 = vadd.f32 %v2047, %v2048
      %v2050 = vsel %vm215, %v2000, 0.0
      %v2051 = vadd.f32 %v2049, %v2050
      %v2052 = vsel %vm215, %v2001, 0.0
      %v2053 = vadd.f32 %v2051, %v2052
      %v2054 = vsel %vm215, %v2002, 0.0
      %v2055 = vadd.f32 %v2053, %v2054
      %v2056 = vsel %vm215, %v2003, 0.0
      %v2057 = vadd.f32 %v2055, %v2056
      %v2058 = vsel %vm215, %v2004, 0.0
      %v2059 = vadd.f32 %v2057, %v2058
      %v2060 = vsel %vm215, %v2005, 0.0
      %v2061 = vadd.f32 %v2059, %v2060
      %v2062 = vsel %vm215, %v2006, 0.0
      %v2063 = vadd.f32 %v2061, %v2062
      %v2064 = vsel %vm215, %v2007, 0.0
      %v2065 = vadd.f32 %v2063, %v2064
      %v2066 = vsel %vm215, %v2008, 0.0
      %v2067 = vadd.f32 %v2065, %v2066
      %v2068 = vsel %vm215, %v2009, 0.0
      %v2069 = vadd.f32 %v2067, %v2068
      %v2070 = vsel %vm215, %v2010, 0.0
      %v2071 = vadd.f32 %v2069, %v2070
      %v2072 = vsel %vm215, %v2011, 0.0
      %v2073 = vadd.f32 %v2071, %v2072
      %v2074 = vsel %vm215, %v2012, 0.0
      %v2075 = vadd.f32 %v2073, %v2074
      %v2076 = vrot.slane %v2075, 4
      %v2077 = vadd.f32 %v2075, %v2076
      %v2078 = vrot.slane %v2077, 2
      %v2079 = vadd.f32 %v2077, %v2078
      %v2080 = vrot.slane %v2079, 1
      %v2081 = vadd.f32 %v2079, %v2080
      %v2082 = vsel %vm258, %v1980, %v2081
      %2083 = vst.msk [vmem:[%s181] sm:$0x3] %vm390, %v2082
      %p2084 = scmp.lt.s32.totalorder %s15, 1
      %s2085 = scalar_select %p2084, %s15, 1
      %s2086 = smul.addr %s2085, 32
      %s2087 = smul.addr %s2086, 4
      %s2088 = scalar_lea.vmem %s2, %s2087
      %p2089 = scmp.lt.s32.totalorder %s15, 1
      %s2090 = scalar_select %p2089, %s15, 1
      %s2091 = smul.addr %s2090, 2
      %s2092 = scalar_lea.vmem %s3, %s2091
      // Predicated region
      $region29: #{basic_block_forward_nhwc.3} parent=27 // pred_check
        %p2093 = pneg %p80
      $region30: #{basic_block_forward_nhwc.3} parent=27 // pred_check_branch
        %2095 = sbr.rel (%p2093) target = $region32
      $region31: #{basic_block_forward_nhwc.3} parent=27 // pred_region
        _
      $region32: #{basic_block_forward_nhwc.3} parent=27 // pred_fallthru
        _
      // Predicated region
      $region33: #{basic_block_forward_nhwc.3} parent=27 // pred_check
        %p2096 = pneg %p106
      $region34: #{basic_block_forward_nhwc.3} parent=27 // pred_check_branch
        %2098 = sbr.rel (%p2096) target = $region36
      $region35: #{basic_block_forward_nhwc.3} parent=27 // pred_region
        _
      $region36: #{basic_block_forward_nhwc.3} parent=27 // pred_fallthru
        _
    $region28: #{basic_block_forward_nhwc.3} parent=5 // pred_fallthru
      _
    %p2099 = scmp.le.s32.totalorder 2, %s10
    // Predicated region
    $region37: #{basic_block_forward_nhwc.3} parent=5 // pred_check
      %p2100 = pneg %p2099
    $region38: #{basic_block_forward_nhwc.3} parent=5 // pred_check_branch
      %2102 = sbr.rel (%p2100) target = $region40
    $region39: #{basic_block_forward_nhwc.3} parent=5 // pred_region
      %s2103 = ssub.s32 %s10, 2
      // Predicated region
      $region41: #{basic_block_forward_nhwc.3} parent=39 // pred_check
        %p2104 = pneg %p86
      $region42: #{basic_block_forward_nhwc.3} parent=39 // pred_check_branch
        %2106 = sbr.rel (%p2104) target = $region44
      $region43: #{basic_block_forward_nhwc.3} parent=39 // pred_region
        %p2107 = scmp.lt.s32.totalorder %s16, 1
        %s2108 = scalar_select %p2107, %s16, 1
        %s2109 = smul.addr %s2108, 32
        %s2110 = smul.addr %s2109, 4
        %s2111 = scalar_lea.vmem %s2, %s2110
      $region44: #{basic_block_forward_nhwc.3} parent=39 // pred_fallthru
        _
      // Predicated region
      $region45: #{basic_block_forward_nhwc.3} parent=39 // pred_check
        %p2112 = pneg %p112
      $region46: #{basic_block_forward_nhwc.3} parent=39 // pred_check_branch
        %2114 = sbr.rel (%p2112) target = $region48
      $region47: #{basic_block_forward_nhwc.3} parent=39 // pred_region
        %p2115 = scmp.lt.s32.totalorder %s16, 1
        %s2116 = scalar_select %p2115, %s16, 1
        %s2117 = smul.addr %s2116, 2
        %s2118 = scalar_lea.vmem %s3, %s2117
      $region48: #{basic_block_forward_nhwc.3} parent=39 // pred_fallthru
        _
    $region40: #{basic_block_forward_nhwc.3} parent=5 // pred_fallthru
      _
  $region6: #{basic_block_forward_nhwc.3} parent=0 // loop_footer
    %s14 = sadd.s32 1, %s10
  $region7: #{basic_block_forward_nhwc.3} parent=0 // loop_footer_branch
    %9 = sbr.rel target = $region3
  $region8: #{basic_block_forward_nhwc.3} parent=0 // loop_exit
    _

</llo_original>
